<compile_context>
chip_gen: v5e
topology: v5e:2x2
jax: 0.10.0
libtpu: 0.0.40
codegen_flags: <defaults>
</compile_context>

<pallas_src>
import functools
import math

import jax
import jax.numpy as jnp
from jax import lax
from jax.experimental import pallas as pl
from jax.experimental.pallas import tpu as pltpu


# ------------------------------- global config --------------------------------

def _default_vmem_limit():
    # Raise the scoped-VMEM limit above the 16/32 MiB defaults but leave headroom
    # (v7x only has 64 MiB physical per TensorCore).
    try:
        cap = pltpu.get_tpu_info().vmem_capacity_bytes
        return int(min(max(cap * 3 // 4, 32 * 1024 * 1024), 112 * 1024 * 1024))
    except Exception:
        return 48 * 1024 * 1024


_VMEM_LIMIT = _default_vmem_limit()


def _pick_tile(dim, preferred, align):
    """Largest tile <= preferred that is a multiple of `align` and divides `dim`.
    Falls back to the full dim for small / odd sizes (keeps (8,128) rules happy).
    TODO(synk): a padded/masked remainder path would avoid the full-dim fallback for
    awkward sequence lengths."""
    if dim <= preferred:
        return dim
    t = (preferred // align) * align
    while t >= align:
        if dim % t == 0:
            return t
        t -= align
    return dim


def _heads_per_block(num_heads, head_dim):
    """Smallest head group whose lane width is a multiple of 128 (or all heads, in
    which case the block equals the full last dim and is always legal)."""
    if (num_heads * head_dim) % 128 != 0:
        return num_heads
    g = 1
    while (g * head_dim) % 128 != 0 or num_heads % g != 0:
        g += 1
    return g


# ----------------------- fused QKV projection + norm + RoPE -------------------


def qkv_norm_rope_kernel(x_ref, w_ref, b_ref, gq_ref, gk_ref,
                         cos_ref, sina_ref, sinb_ref,
                         q_ref, k_ref, v_ref, acc_ref,
                         *, num_heads, inner, head_dim, eps, scale):
    kk = pl.program_id(2)

    @pl.when(kk == 0)
    def _init():
        acc_ref[...] = jnp.zeros_like(acc_ref)

    # (tl, tk) @ (tk, 3*inner) -> accumulate in f32 on the MXU.
    acc_ref[...] += jnp.dot(x_ref[0], w_ref[...],
                            preferred_element_type=jnp.float32)

    @pl.when(kk == pl.num_programs(2) - 1)
    def _finalize():
        half = head_dim // 2

        # Ref-sliced reads (lane-aligned): only (tl, inner) is loaded per piece.
        q = acc_ref[:, :inner] + b_ref[:, :inner].astype(jnp.float32)
        k = acc_ref[:, inner:2 * inner] + b_ref[:, inner:2 * inner].astype(jnp.float32)
        v = acc_ref[:, 2 * inner:] + b_ref[:, 2 * inner:].astype(jnp.float32)

        def rms(t, g):
            inv = lax.rsqrt(jnp.mean(t * t, axis=-1, keepdims=True) + eps)
            return t * inv * g

        q = rms(q, gq_ref[...].astype(jnp.float32))
        k = rms(k, gk_ref[...].astype(jnp.float32))

        # Broadcast the small per-head (tl, head_dim) tables across heads (lane tiling).
        def tile_heads(t):
            t = t.astype(jnp.float32)
            if num_heads == 1:
                return t
            return jnp.concatenate([t] * num_heads, axis=1)

        cos = tile_heads(cos_ref[...])
        sa = tile_heads(sina_ref[...])    # -sin on first half of each head, else 0
        sb = tile_heads(sinb_ref[...])    # +sin on second half of each head, else 0

        def rope(t):
            # Per-head rotate_half via two whole-row XLU rotations:
            #   fwd[p] = t[(p + half) % inner]   (used on first-half positions)
            #   bwd[p] = t[(p - half) % inner]   (used on second-half positions)
            # sa/sb are zero wherever the rotated source would cross a head boundary,
            # so the roll wrap-around never leaks between heads.
            fwd = pltpu.roll(t, inner - half, 1)
            bwd = pltpu.roll(t, half, 1)
            return t * cos + fwd * sa + bwd * sb

        # Fold 1/sqrt(Dh) into q here so attention skips the per-score multiply.
        q_ref[0] = (rope(q) * scale).astype(q_ref.dtype)
        k_ref[0] = rope(k).astype(k_ref.dtype)
        v_ref[0] = v.astype(v_ref.dtype)


def pallas_fused_qkv(x, w_qkv, b_qkv, g_q, g_k, cos_d, sin_a_d, sin_b_d,
                     num_heads, head_dim, eps, *, tl=512, tk=256):
    B, L, C = x.shape
    inner = num_heads * head_dim
    n3 = 3 * inner
    scale = 1.0 / math.sqrt(head_dim)

    # Cap the row tile so the (tl, 3*inner) f32 accumulator stays well inside VMEM
    # (matters on v7x with large inner); otherwise prefer large tl (weight reuse).
    acc_budget = _VMEM_LIMIT // 6
    max_rows = max(8, (acc_budget // (n3 * 4)) // 8 * 8)
    tl = _pick_tile(L, min(tl, max_rows), 8)
    tk = _pick_tile(C, tk, 128)
    grid = (B, L // tl, C // tk)

    out_sds = jax.ShapeDtypeStruct((B, L, inner), x.dtype)
    out_spec = pl.BlockSpec((1, tl, inner), lambda b, i, kk: (b, i, 0))
    tbl_spec = pl.BlockSpec((tl, head_dim), lambda b, i, kk: (i, 0))

    kernel = functools.partial(qkv_norm_rope_kernel, num_heads=num_heads,
                               inner=inner, head_dim=head_dim, eps=eps, scale=scale)

    return pl.pallas_call(
        kernel,
        out_shape=(out_sds, out_sds, out_sds),
        grid=grid,
        in_specs=[
            pl.BlockSpec((1, tl, tk), lambda b, i, kk: (b, i, kk)),   # x
            pl.BlockSpec((tk, n3), lambda b, i, kk: (kk, 0)),         # W_qkv
            pl.BlockSpec((1, n3), lambda b, i, kk: (0, 0)),           # bias
            pl.BlockSpec((1, inner), lambda b, i, kk: (0, 0)),        # g_q
            pl.BlockSpec((1, inner), lambda b, i, kk: (0, 0)),        # g_k
            tbl_spec,                                                 # cos   (L, Dh)
            tbl_spec,                                                 # sin_a (L, Dh)
            tbl_spec,                                                 # sin_b (L, Dh)
        ],
        out_specs=(out_spec, out_spec, out_spec),
        scratch_shapes=[pltpu.VMEM((tl, n3), jnp.float32)],
        compiler_params=pltpu.CompilerParams(
            dimension_semantics=("parallel", "parallel", "arbitrary"),
            vmem_limit_bytes=_VMEM_LIMIT),
    )(x, w_qkv, b_qkv, g_q, g_k, cos_d, sin_a_d, sin_b_d)


# --------------------------- flash attention (head grid axis) -----------------


def mh_flash_attn_kernel(q_ref, k_ref, v_ref, o_ref, m_ref, l_ref, acc_ref,
                         *, heads_per_blk, head_dim):
    ki = pl.program_id(3)

    @pl.when(ki == 0)
    def _init():
        m_ref[...] = jnp.full_like(m_ref, -jnp.inf)
        l_ref[...] = jnp.zeros_like(l_ref)
        acc_ref[...] = jnp.zeros_like(acc_ref)

    # heads_per_blk is 1 whenever head_dim is lane-aligned (the realistic case);
    # otherwise a small static loop over the heads packed into this block.
    for h in range(heads_per_blk):
        sl = slice(h * head_dim, (h + 1) * head_dim)
        q_h = q_ref[0, :, sl]                    # (tq,  Dh)  ref-sliced load
        k_h = k_ref[0, :, sl]                    # (tkv, Dh)
        # contract over head_dim without transposing K; q already carries 1/sqrt(Dh).
        s = lax.dot_general(q_h, k_h, (((1,), (1,)), ((), ())),
                            preferred_element_type=jnp.float32)      # (tq, tkv)

        m_prev = m_ref[:, h:h + 1]                                   # (tq, 1)
        m_new = jnp.maximum(m_prev, jnp.max(s, axis=-1, keepdims=True))
        alpha = jnp.exp(m_prev - m_new)
        p = jnp.exp(s - m_new)
        l_ref[:, h:h + 1] = alpha * l_ref[:, h:h + 1] + jnp.sum(p, axis=-1, keepdims=True)
        pv = jnp.dot(p.astype(v_ref.dtype), v_ref[0, :, sl],
                     preferred_element_type=jnp.float32)             # (tq, Dh)
        acc_ref[:, sl] = alpha * acc_ref[:, sl] + pv
        m_ref[:, h:h + 1] = m_new

    @pl.when(ki == pl.num_programs(3) - 1)
    def _finalize():
        for h in range(heads_per_blk):
            sl = slice(h * head_dim, (h + 1) * head_dim)
            l_h = l_ref[:, h:h + 1]
            inv = pl.reciprocal(l_h, approx=True)      # EUP; one Newton step for accuracy
            inv = inv * (2.0 - l_h * inv)
            o_ref[0, :, sl] = (acc_ref[:, sl] * inv).astype(o_ref.dtype)


def pallas_attention(q, k, v, num_heads, head_dim, *, tq=256, tkv=512):
    B, L, inner = q.shape
    hpb = _heads_per_block(num_heads, head_dim)
    gw = hpb * head_dim                 # lane width of one head block
    n_hg = num_heads // hpb
    tq = _pick_tile(L, tq, 8)
    tkv = _pick_tile(L, tkv, 8)
    grid = (B, n_hg, L // tq, L // tkv)

    q_spec = pl.BlockSpec((1, tq, gw), lambda b, hg, qi, ki: (b, qi, hg))
    kv_spec = pl.BlockSpec((1, tkv, gw), lambda b, hg, qi, ki: (b, ki, hg))
    o_spec = pl.BlockSpec((1, tq, gw), lambda b, hg, qi, ki: (b, qi, hg))

    kernel = functools.partial(mh_flash_attn_kernel,
                               heads_per_blk=hpb, head_dim=head_dim)

    return pl.pallas_call(
        kernel,
        out_shape=jax.ShapeDtypeStruct((B, L, inner), q.dtype),
        grid=grid,
        in_specs=[q_spec, kv_spec, kv_spec],
        out_specs=o_spec,
        scratch_shapes=[
            pltpu.VMEM((tq, hpb), jnp.float32),    # running max  m
            pltpu.VMEM((tq, hpb), jnp.float32),    # running sum  l
            pltpu.VMEM((tq, gw), jnp.float32),     # accumulator
        ],
        compiler_params=pltpu.CompilerParams(
            dimension_semantics=("parallel", "parallel", "parallel", "arbitrary"),
            vmem_limit_bytes=_VMEM_LIMIT),
    )(q, k, v)


# ------------------------------- tiled linear ---------------------------------


def linear_kernel(x_ref, w_ref, b_ref, o_ref, acc_ref):
    kk = pl.program_id(2)

    @pl.when(kk == 0)
    def _init():
        acc_ref[...] = jnp.zeros_like(acc_ref)

    acc_ref[...] += jnp.dot(x_ref[...], w_ref[...],
                            preferred_element_type=jnp.float32)

    @pl.when(kk == pl.num_programs(2) - 1)
    def _finalize():
        o_ref[...] = (acc_ref[...] + b_ref[...].astype(jnp.float32)).astype(o_ref.dtype)


def pallas_linear(x2d, w, b, *, tm=1024, tn=256, tk=512):
    M, K = x2d.shape
    N = w.shape[1]
    tm = _pick_tile(M, tm, 8)
    tn = _pick_tile(N, tn, 128)
    tk = _pick_tile(K, tk, 128)
    grid = (M // tm, N // tn, K // tk)
    return pl.pallas_call(
        linear_kernel,
        out_shape=jax.ShapeDtypeStruct((M, N), x2d.dtype),
        grid=grid,
        in_specs=[
            pl.BlockSpec((tm, tk), lambda i, j, kk: (i, kk)),
            pl.BlockSpec((tk, tn), lambda i, j, kk: (kk, j)),
            pl.BlockSpec((1, tn), lambda i, j, kk: (0, j)),
        ],
        out_specs=pl.BlockSpec((tm, tn), lambda i, j, kk: (i, j)),
        scratch_shapes=[pltpu.VMEM((tm, tn), jnp.float32)],
        compiler_params=pltpu.CompilerParams(
            dimension_semantics=("parallel", "parallel", "arbitrary"),
            vmem_limit_bytes=_VMEM_LIMIT),
    )(x2d, w, b.reshape(1, N))


# ------------------------------ module plumbing --------------------------------


def rope_tables(seq_len, head_dim, base=10000.0, dtype=jnp.float32):
    """Small per-head (L, head_dim) cos / sign-masked sin tables (not tiled per head)."""
    half = head_dim // 2
    inv = 1.0 / (base ** (jnp.arange(half, dtype=jnp.float32) / half))
    t = jnp.arange(seq_len, dtype=jnp.float32)
    freqs = jnp.outer(t, inv)
    freqs = jnp.concatenate([freqs, freqs], axis=-1)          # (L, Dh) -- as get_rope_freqs
    cos = jnp.cos(freqs)
    sin = jnp.sin(freqs)
    zeros = jnp.zeros_like(sin[:, :half])
    sin_a = jnp.concatenate([-sin[:, :half], zeros], axis=-1)  # multiplies x[p + Dh/2]
    sin_b = jnp.concatenate([zeros, sin[:, half:]], axis=-1)   # multiplies x[p - Dh/2]
    return cos.astype(dtype), sin_a.astype(dtype), sin_b.astype(dtype)


def init_params(key, dim, num_heads, head_dim):
    inner = num_heads * head_dim
    ks = jax.random.split(key, 9)
    s_in = 1.0 / math.sqrt(dim)
    s_inner = 1.0 / math.sqrt(inner)
    return {
        "wq": jax.random.normal(ks[0], (dim, inner), jnp.float32) * s_in,
        "bq": jax.random.normal(ks[1], (inner,), jnp.float32) * 0.01,
        "wk": jax.random.normal(ks[2], (dim, inner), jnp.float32) * s_in,
        "bk": jax.random.normal(ks[3], (inner,), jnp.float32) * 0.01,
        "wv": jax.random.normal(ks[4], (dim, inner), jnp.float32) * s_in,
        "bv": jax.random.normal(ks[5], (inner,), jnp.float32) * 0.01,
        "wo": jax.random.normal(ks[6], (inner, dim), jnp.float32) * s_inner,
        "bo": jax.random.normal(ks[7], (dim,), jnp.float32) * 0.01,
        # RMSNorm weights (torch inits to ones; perturb deterministically)
        "g_q": 1.0 + 0.05 * jax.random.normal(ks[8], (inner,), jnp.float32),
        "g_k": 1.0 - 0.05 * jax.random.normal(ks[8], (inner,), jnp.float32),
    }


def prepare_wan_attention(params, seq_len, num_heads, head_dim, dtype=jnp.float32):
    """Hoisted, one-time packing: QKV weight/bias concat, g reshapes, RoPE tables."""
    inner = num_heads * head_dim
    w_qkv = jnp.concatenate([params["wq"], params["wk"], params["wv"]],
                            axis=1).astype(dtype)
    b_qkv = jnp.concatenate([params["bq"], params["bk"], params["bv"]]
                            ).reshape(1, 3 * inner).astype(jnp.float32)
    cos_d, sin_a_d, sin_b_d = rope_tables(seq_len, head_dim, dtype=dtype)
    return {
        "w_qkv": w_qkv,
        "b_qkv": b_qkv,
        "g_q": params["g_q"].reshape(1, inner).astype(jnp.float32),
        "g_k": params["g_k"].reshape(1, inner).astype(jnp.float32),
        "cos": cos_d, "sin_a": sin_a_d, "sin_b": sin_b_d,
        "w_o": params["wo"].astype(dtype),
        "b_o": params["bo"].astype(jnp.float32),
    }


def wan_self_attention_forward(x, prep, num_heads, head_dim, eps=1e-6):
    B, L, C = x.shape
    inner = num_heads * head_dim

    q, k, v = pallas_fused_qkv(x, prep["w_qkv"], prep["b_qkv"], prep["g_q"], prep["g_k"],
                               prep["cos"], prep["sin_a"], prep["sin_b"],
                               num_heads, head_dim, eps)

    o = pallas_attention(q, k, v, num_heads, head_dim)            # [B, L, H*Dh], lane-dense
    out = pallas_linear(o.reshape(B * L, inner), prep["w_o"], prep["b_o"])
    return out.reshape(B, L, C)


# ------------------------------- pure-JAX reference ----------------------------


def reference_forward(x, params, num_heads, head_dim, eps=1e-6):
    B, L, C = x.shape
    inner = num_heads * head_dim

    def rms(t, g):
        tf = t.astype(jnp.float32)
        r = jnp.sqrt(jnp.mean(tf * tf, axis=-1, keepdims=True) + eps)
        return (tf / r * g).astype(t.dtype)

    def rotate_half(t):
        t1, t2 = jnp.split(t, 2, axis=-1)
        return jnp.concatenate([-t2, t1], axis=-1)

    q = rms(x @ params["wq"] + params["bq"], params["g_q"])
    k = rms(x @ params["wk"] + params["bk"], params["g_k"])
    v = x @ params["wv"] + params["bv"]

    q = q.reshape(B, L, num_heads, head_dim).transpose(0, 2, 1, 3)
    k = k.reshape(B, L, num_heads, head_dim).transpose(0, 2, 1, 3)
    v = v.reshape(B, L, num_heads, head_dim).transpose(0, 2, 1, 3)

    half = head_dim // 2
    inv = 1.0 / (10000.0 ** (jnp.arange(half, dtype=jnp.float32) / half))
    freqs = jnp.outer(jnp.arange(L, dtype=jnp.float32), inv)
    freqs = jnp.concatenate([freqs, freqs], axis=-1)
    cos, sin = jnp.cos(freqs), jnp.sin(freqs)
    q = q * cos + rotate_half(q) * sin
    k = k * cos + rotate_half(k) * sin

    s = jnp.einsum("bhqd,bhkd->bhqk", q, k) / math.sqrt(head_dim)
    p = jax.nn.softmax(s, axis=-1)
    o = jnp.einsum("bhqk,bhkd->bhqd", p, v)
    o = o.transpose(0, 2, 1, 3).reshape(B, L, inner)
    return o @ params["wo"] + params["bo"]


# ------------------------------------- main -------------------------------------


if __name__ == "__main__":
    # Wan-like head_dim=128 keeps every block lane-aligned; small everywhere else.
    B, L, DIM, H, DH = 2, 64, 256, 2, 128       # inner_dim = H*DH = 256
    key = jax.random.PRNGKey(0)
    kx, kp = jax.random.split(key)
    x = jax.random.normal(kx, (B, L, DIM), jnp.float32)
    params = init_params(kp, DIM, H, DH)

    with jax.default_matmul_precision("highest"):
        ref = reference_forward(x, params, H, DH)
    ref = jax.block_until_ready(ref)

    fwd = jax.jit(functools.partial(wan_self_attention_forward, num_heads=H, head_dim=DH))

    # f32 path: tight correctness check against the reference.
    prep32 = prepare_wan_attention(params, L, H, DH, dtype=jnp.float32)
    out32 = jax.block_until_ready(fwd(x, prep32))
    assert out32.shape == (B, L, DIM)
    err32 = float(jnp.max(jnp.abs(out32 - ref)))
    assert err32 < 5e-3, f"f32 max abs err too large: {err32}"

    # bf16 path: bf16 activations/weights/tables with f32 accumulators (loose check).
    prep16 = prepare_wan_attention(params, L, H, DH, dtype=jnp.bfloat16)
    out16 = jax.block_until_ready(fwd(x.astype(jnp.bfloat16), prep16))
    err16 = float(jnp.max(jnp.abs(out16.astype(jnp.float32) - ref)))
    assert err16 < 2.5e-1, f"bf16 max abs err too large: {err16}"

    print("KERNEL_OK")
</pallas_src>

<mosaic_0001>
module attributes {stable_mosaic.version = 11 : i64} {
  func.func @linear_kernel(%arg0: i32, %arg1: i32, %arg2: i32, %arg3: memref<128x256xf32, #tpu.memory_space<vmem>>, %arg4: memref<256x256xf32, #tpu.memory_space<vmem>>, %arg5: memref<1x256xf32, #tpu.memory_space<vmem>>, %arg6: memref<128x256xf32, #tpu.memory_space<vmem>>, %arg7: memref<128x256xf32, #tpu.memory_space<vmem>>) attributes {dimension_semantics = [#tpu.dimension_semantics<parallel>, #tpu.dimension_semantics<parallel>, #tpu.dimension_semantics<arbitrary>], iteration_bounds = array<i64: 1, 1, 1>, scalar_prefetch = 0 : i64, scratch_operands = 1 : i64, tpu.core_type = #tpu.core_type<tc>, window_params = [{transform_indices = @transform_0, window_bounds = array<i64: 128, 256>}, {transform_indices = @transform_1, window_bounds = array<i64: 256, 256>}, {transform_indices = @transform_2, window_bounds = array<i64: 1, 256>}, {transform_indices = @transform_3, window_bounds = array<i64: 128, 256>}]} {
    %c0_i32 = arith.constant 0 : i32
    %0 = arith.cmpi eq, %arg2, %c0_i32 : i32
    %1 = arith.extui %0 : i1 to i32
    %c0_i32_0 = arith.constant 0 : i32
    %2 = arith.cmpi ne, %1, %c0_i32_0 : i32
    scf.if %2 {
      %cst_10 = arith.constant 0.000000e+00 : f32
      %12 = vector.broadcast %cst_10 : f32 to vector<128x256xf32>
      %c0_11 = arith.constant 0 : index
      %c0_12 = arith.constant 0 : index
      %13 = vector.load %arg7[%c0_11, %c0_12] : memref<128x256xf32, #tpu.memory_space<vmem>>, vector<128x256xf32>
      tpu.vector_store %arg7[%c0_11, %c0_12], %12 {strides = array<i32>} : memref<128x256xf32, #tpu.memory_space<vmem>>, vector<128x256xf32>,
    } else {
    }
    %c0 = arith.constant 0 : index
    %c0_1 = arith.constant 0 : index
    %3 = vector.load %arg7[%c0, %c0_1] : memref<128x256xf32, #tpu.memory_space<vmem>>, vector<128x256xf32>
    %c0_2 = arith.constant 0 : index
    %c0_3 = arith.constant 0 : index
    %4 = vector.load %arg3[%c0_2, %c0_3] : memref<128x256xf32, #tpu.memory_space<vmem>>, vector<128x256xf32>
    %c0_4 = arith.constant 0 : index
    %c0_5 = arith.constant 0 : index
    %5 = vector.load %arg4[%c0_4, %c0_5] : memref<256x256xf32, #tpu.memory_space<vmem>>, vector<256x256xf32>
    %cst = arith.constant dense<0.000000e+00> : vector<128x256xf32>
    %6 = tpu.matmul %4, %5, %cst {dimension_numbers = #tpu.dot_dimension_numbers<[1], [0], [0], [1], [0, 0, 1, 1], [], []>} : vector<128x256xf32>, vector<256x256xf32>, vector<128x256xf32> -> vector<128x256xf32>
    %7 = arith.addf %3, %6 : vector<128x256xf32>
    %c0_6 = arith.constant 0 : index
    %c0_7 = arith.constant 0 : index
    %8 = vector.load %arg7[%c0_6, %c0_7] : memref<128x256xf32, #tpu.memory_space<vmem>>, vector<128x256xf32>
    tpu.vector_store %arg7[%c0_6, %c0_7], %7 {strides = array<i32>} : memref<128x256xf32, #tpu.memory_space<vmem>>, vector<128x256xf32>,
    %c0_i32_8 = arith.constant 0 : i32
    %9 = arith.cmpi eq, %arg2, %c0_i32_8 : i32
    %10 = arith.extui %9 : i1 to i32
    %c0_i32_9 = arith.constant 0 : i32
    %11 = arith.cmpi ne, %10, %c0_i32_9 : i32
    scf.if %11 {
      %c0_10 = arith.constant 0 : index
      %c0_11 = arith.constant 0 : index
      %12 = vector.load %arg7[%c0_10, %c0_11] : memref<128x256xf32, #tpu.memory_space<vmem>>, vector<128x256xf32>
      %c0_12 = arith.constant 0 : index
      %c0_13 = arith.constant 0 : index
      %13 = vector.load %arg5[%c0_12, %c0_13] : memref<1x256xf32, #tpu.memory_space<vmem>>, vector<1x256xf32>
      %14 = vector.broadcast %13 : vector<1x256xf32> to vector<128x256xf32>
      %15 = arith.addf %12, %14 : vector<128x256xf32>
      %c0_14 = arith.constant 0 : index
      %c0_15 = arith.constant 0 : index
      %16 = vector.load %arg6[%c0_14, %c0_15] : memref<128x256xf32, #tpu.memory_space<vmem>>, vector<128x256xf32>
      tpu.vector_store %arg6[%c0_14, %c0_15], %15 {strides = array<i32>} : memref<128x256xf32, #tpu.memory_space<vmem>>, vector<128x256xf32>,
    } else {
    }
    return
  }
  func.func @transform_0(%arg0: i32, %arg1: i32, %arg2: i32) -> (i32, i32) {
    %c0_i32 = arith.constant 0 : i32
    return %arg0, %arg2 : i32, i32
  }
  func.func @transform_1(%arg0: i32, %arg1: i32, %arg2: i32) -> (i32, i32) {
    %c0_i32 = arith.constant 0 : i32
    return %arg2, %arg1 : i32, i32
  }
  func.func @transform_2(%arg0: i32, %arg1: i32, %arg2: i32) -> (i32, i32) {
    %c0_i32 = arith.constant 0 : i32
    %c0_i32_0 = arith.constant 0 : i32
    return %c0_i32, %arg1 : i32, i32
  }
  func.func @transform_3(%arg0: i32, %arg1: i32, %arg2: i32) -> (i32, i32) {
    %c0_i32 = arith.constant 0 : i32
    return %arg0, %arg1 : i32, i32
  }
}

module attributes {stable_mosaic.version = 11 : i64} {
  func.func @mh_flash_attn_kernel(%arg0: i32, %arg1: i32, %arg2: i32, %arg3: i32, %arg4: memref<1x64x128xf32, #tpu.memory_space<vmem>>, %arg5: memref<1x64x128xf32, #tpu.memory_space<vmem>>, %arg6: memref<1x64x128xf32, #tpu.memory_space<vmem>>, %arg7: memref<1x64x128xf32, #tpu.memory_space<vmem>>, %arg8: memref<64x1xf32, #tpu.memory_space<vmem>>, %arg9: memref<64x1xf32, #tpu.memory_space<vmem>>, %arg10: memref<64x128xf32, #tpu.memory_space<vmem>>) attributes {dimension_semantics = [#tpu.dimension_semantics<parallel>, #tpu.dimension_semantics<parallel>, #tpu.dimension_semantics<parallel>, #tpu.dimension_semantics<arbitrary>], iteration_bounds = array<i64: 2, 2, 1, 1>, scalar_prefetch = 0 : i64, scratch_operands = 3 : i64, tpu.core_type = #tpu.core_type<tc>, window_params = [{transform_indices = @transform_0, window_bounds = array<i64: 1, 64, 128>}, {transform_indices = @transform_1, window_bounds = array<i64: 1, 64, 128>}, {transform_indices = @transform_2, window_bounds = array<i64: 1, 64, 128>}, {transform_indices = @transform_3, window_bounds = array<i64: 1, 64, 128>}]} {
    %c0_i32 = arith.constant 0 : i32
    %0 = arith.cmpi eq, %arg3, %c0_i32 : i32
    %1 = arith.extui %0 : i1 to i32
    %c0_i32_0 = arith.constant 0 : i32
    %2 = arith.cmpi ne, %1, %c0_i32_0 : i32
    scf.if %2 {
      %cst_26 = arith.constant 0xFF800000 : f32
      %35 = vector.broadcast %cst_26 : f32 to vector<64x1xf32>
      %c0_27 = arith.constant 0 : index
      %c0_28 = arith.constant 0 : index
      %36 = vector.load %arg8[%c0_27, %c0_28] : memref<64x1xf32, #tpu.memory_space<vmem>>, vector<64x1xf32>
      tpu.vector_store %arg8[%c0_27, %c0_28], %35 {strides = array<i32>} : memref<64x1xf32, #tpu.memory_space<vmem>>, vector<64x1xf32>,
      %cst_29 = arith.constant 0.000000e+00 : f32
      %37 = vector.broadcast %cst_29 : f32 to vector<64x1xf32>
      %c0_30 = arith.constant 0 : index
      %c0_31 = arith.constant 0 : index
      %38 = vector.load %arg9[%c0_30, %c0_31] : memref<64x1xf32, #tpu.memory_space<vmem>>, vector<64x1xf32>
      tpu.vector_store %arg9[%c0_30, %c0_31], %37 {strides = array<i32>} : memref<64x1xf32, #tpu.memory_space<vmem>>, vector<64x1xf32>,
      %cst_32 = arith.constant 0.000000e+00 : f32
      %39 = vector.broadcast %cst_32 : f32 to vector<64x128xf32>
      %c0_33 = arith.constant 0 : index
      %c0_34 = arith.constant 0 : index
      %40 = vector.load %arg10[%c0_33, %c0_34] : memref<64x128xf32, #tpu.memory_space<vmem>>, vector<64x128xf32>
      tpu.vector_store %arg10[%c0_33, %c0_34], %39 {strides = array<i32>} : memref<64x128xf32, #tpu.memory_space<vmem>>, vector<64x128xf32>,
    } else {
    }
    %c0 = arith.constant 0 : index
    %c0_1 = arith.constant 0 : index
    %c0_2 = arith.constant 0 : index
    %3 = vector.load %arg4[%c0, %c0_1, %c0_2] : memref<1x64x128xf32, #tpu.memory_space<vmem>>, vector<1x64x128xf32>
    %4 = vector.shape_cast %3 : vector<1x64x128xf32> to vector<64x128xf32>
    %c0_3 = arith.constant 0 : index
    %c0_4 = arith.constant 0 : index
    %c0_5 = arith.constant 0 : index
    %5 = vector.load %arg5[%c0_3, %c0_4, %c0_5] : memref<1x64x128xf32, #tpu.memory_space<vmem>>, vector<1x64x128xf32>
    %6 = vector.shape_cast %5 : vector<1x64x128xf32> to vector<64x128xf32>
    %cst = arith.constant dense<0.000000e+00> : vector<64x64xf32>
    %7 = tpu.matmul %4, %6, %cst {dimension_numbers = #tpu.dot_dimension_numbers<[1], [1], [0], [0], [0, 0, 1, 0], [], []>} : vector<64x128xf32>, vector<64x128xf32>, vector<64x64xf32> -> vector<64x64xf32>
    %c0_6 = arith.constant 0 : index
    %c0_7 = arith.constant 0 : index
    %8 = vector.load %arg8[%c0_6, %c0_7] : memref<64x1xf32, #tpu.memory_space<vmem>>, vector<64x1xf32>
    %cst_8 = arith.constant dense<0xFF800000> : vector<64xf32>
    %9 = vector.multi_reduction <maximumf>, %7, %cst_8 [1] : vector<64x64xf32> to vector<64xf32>
    %10 = vector.shape_cast %9 : vector<64xf32> to vector<64x1xf32>
    %11 = arith.maximumf %8, %10 : vector<64x1xf32>
    %12 = arith.subf %8, %11 : vector<64x1xf32>
    %13 = math.exp %12 : vector<64x1xf32>
    %14 = vector.broadcast %11 : vector<64x1xf32> to vector<64x64xf32>
    %15 = arith.subf %7, %14 : vector<64x64xf32>
    %16 = math.exp %15 : vector<64x64xf32>
    %c0_9 = arith.constant 0 : index
    %c0_10 = arith.constant 0 : index
    %17 = vector.load %arg9[%c0_9, %c0_10] : memref<64x1xf32, #tpu.memory_space<vmem>>, vector<64x1xf32>
    %18 = arith.mulf %13, %17 : vector<64x1xf32>
    %cst_11 = arith.constant dense<0.000000e+00> : vector<64xf32>
    %19 = vector.multi_reduction <add>, %16, %cst_11 [1] : vector<64x64xf32> to vector<64xf32>
    %20 = vector.shape_cast %19 : vector<64xf32> to vector<64x1xf32>
    %21 = arith.addf %18, %20 : vector<64x1xf32>
    %c0_12 = arith.constant 0 : index
    %c0_13 = arith.constant 0 : index
    %22 = vector.load %arg9[%c0_12, %c0_13] : memref<64x1xf32, #tpu.memory_space<vmem>>, vector<64x1xf32>
    tpu.vector_store %arg9[%c0_12, %c0_13], %21 {strides = array<i32>} : memref<64x1xf32, #tpu.memory_space<vmem>>, vector<64x1xf32>,
    %c0_14 = arith.constant 0 : index
    %c0_15 = arith.constant 0 : index
    %c0_16 = arith.constant 0 : index
    %23 = vector.load %arg6[%c0_14, %c0_15, %c0_16] : memref<1x64x128xf32, #tpu.memory_space<vmem>>, vector<1x64x128xf32>
    %24 = vector.shape_cast %23 : vector<1x64x128xf32> to vector<64x128xf32>
    %cst_17 = arith.constant dense<0.000000e+00> : vector<64x128xf32>
    %25 = tpu.matmul %16, %24, %cst_17 {dimension_numbers = #tpu.dot_dimension_numbers<[1], [0], [0], [1], [0, 0, 1, 1], [], []>} : vector<64x64xf32>, vector<64x128xf32>, vector<64x128xf32> -> vector<64x128xf32>
    %c0_18 = arith.constant 0 : index
    %c0_19 = arith.constant 0 : index
    %26 = vector.load %arg10[%c0_18, %c0_19] : memref<64x128xf32, #tpu.memory_space<vmem>>, vector<64x128xf32>
    %27 = vector.broadcast %13 : vector<64x1xf32> to vector<64x128xf32>
    %28 = arith.mulf %27, %26 : vector<64x128xf32>
    %29 = arith.addf %28, %25 : vector<64x128xf32>
    %c0_20 = arith.constant 0 : index
    %c0_21 = arith.constant 0 : index
    %30 = vector.load %arg10[%c0_20, %c0_21] : memref<64x128xf32, #tpu.memory_space<vmem>>, vector<64x128xf32>
    tpu.vector_store %arg10[%c0_20, %c0_21], %29 {strides = array<i32>} : memref<64x128xf32, #tpu.memory_space<vmem>>, vector<64x128xf32>,
    %c0_22 = arith.constant 0 : index
    %c0_23 = arith.constant 0 : index
    %31 = vector.load %arg8[%c0_22, %c0_23] : memref<64x1xf32, #tpu.memory_space<vmem>>, vector<64x1xf32>
    tpu.vector_store %arg8[%c0_22, %c0_23], %11 {strides = array<i32>} : memref<64x1xf32, #tpu.memory_space<vmem>>, vector<64x1xf32>,
    %c0_i32_24 = arith.constant 0 : i32
    %32 = arith.cmpi eq, %arg3, %c0_i32_24 : i32
    %33 = arith.extui %32 : i1 to i32
    %c0_i32_25 = arith.constant 0 : i32
    %34 = arith.cmpi ne, %33, %c0_i32_25 : i32
    scf.if %34 {
      %c0_26 = arith.constant 0 : index
      %c0_27 = arith.constant 0 : index
      %35 = vector.load %arg9[%c0_26, %c0_27] : memref<64x1xf32, #tpu.memory_space<vmem>>, vector<64x1xf32>
      %36 = tpu.reciprocal %35 {approx = true} : vector<64x1xf32> -> vector<64x1xf32>
      %37 = arith.mulf %35, %36 : vector<64x1xf32>
      %cst_28 = arith.constant 2.000000e+00 : f32
      %38 = vector.broadcast %cst_28 : f32 to vector<64x1xf32>
      %39 = arith.subf %38, %37 : vector<64x1xf32>
      %40 = arith.mulf %36, %39 : vector<64x1xf32>
      %c0_29 = arith.constant 0 : index
      %c0_30 = arith.constant 0 : index
      %41 = vector.load %arg10[%c0_29, %c0_30] : memref<64x128xf32, #tpu.memory_space<vmem>>, vector<64x128xf32>
      %42 = vector.broadcast %40 : vector<64x1xf32> to vector<64x128xf32>
      %43 = arith.mulf %41, %42 : vector<64x128xf32>
      %c0_31 = arith.constant 0 : index
      %c0_32 = arith.constant 0 : index
      %c0_33 = arith.constant 0 : index
      %44 = vector.load %arg7[%c0_31, %c0_32, %c0_33] : memref<1x64x128xf32, #tpu.memory_space<vmem>>, vector<1x64x128xf32>
      %45 = vector.shape_cast %44 : vector<1x64x128xf32> to vector<64x128xf32>
      %46 = vector.shape_cast %43 : vector<64x128xf32> to vector<1x64x128xf32>
      tpu.vector_store %arg7[%c0_31, %c0_32, %c0_33], %46 {strides = array<i32>} : memref<1x64x128xf32, #tpu.memory_space<vmem>>, vector<1x64x128xf32>,
    } else {
    }
    return
  }
  func.func @transform_0(%arg0: i32, %arg1: i32, %arg2: i32, %arg3: i32) -> (i32, i32, i32) {
    %c0_i32 = arith.constant 0 : i32
    return %arg0, %arg2, %arg1 : i32, i32, i32
  }
  func.func @transform_1(%arg0: i32, %arg1: i32, %arg2: i32, %arg3: i32) -> (i32, i32, i32) {
    %c0_i32 = arith.constant 0 : i32
    return %arg0, %arg3, %arg1 : i32, i32, i32
  }
  func.func @transform_2(%arg0: i32, %arg1: i32, %arg2: i32, %arg3: i32) -> (i32, i32, i32) {
    %c0_i32 = arith.constant 0 : i32
    return %arg0, %arg3, %arg1 : i32, i32, i32
  }
  func.func @transform_3(%arg0: i32, %arg1: i32, %arg2: i32, %arg3: i32) -> (i32, i32, i32) {
    %c0_i32 = arith.constant 0 : i32
    return %arg0, %arg2, %arg1 : i32, i32, i32
  }
}

module attributes {stable_mosaic.version = 11 : i64} {
  func.func @qkv_norm_rope_kernel(%arg0: i32, %arg1: i32, %arg2: i32, %arg3: memref<1x64x256xf32, #tpu.memory_space<vmem>>, %arg4: memref<256x768xf32, #tpu.memory_space<vmem>>, %arg5: memref<1x768xf32, #tpu.memory_space<vmem>>, %arg6: memref<1x256xf32, #tpu.memory_space<vmem>>, %arg7: memref<1x256xf32, #tpu.memory_space<vmem>>, %arg8: memref<64x128xf32, #tpu.memory_space<vmem>>, %arg9: memref<64x128xf32, #tpu.memory_space<vmem>>, %arg10: memref<64x128xf32, #tpu.memory_space<vmem>>, %arg11: memref<1x64x256xf32, #tpu.memory_space<vmem>>, %arg12: memref<1x64x256xf32, #tpu.memory_space<vmem>>, %arg13: memref<1x64x256xf32, #tpu.memory_space<vmem>>, %arg14: memref<64x768xf32, #tpu.memory_space<vmem>>) attributes {dimension_semantics = [#tpu.dimension_semantics<parallel>, #tpu.dimension_semantics<parallel>, #tpu.dimension_semantics<arbitrary>], iteration_bounds = array<i64: 2, 1, 1>, scalar_prefetch = 0 : i64, scratch_operands = 1 : i64, tpu.core_type = #tpu.core_type<tc>, window_params = [{transform_indices = @transform_0, window_bounds = array<i64: 1, 64, 256>}, {transform_indices = @transform_1, window_bounds = array<i64: 256, 768>}, {pipeline_mode = #tpu.pipeline_mode<synchronous>, transform_indices = @transform_2, window_bounds = array<i64: 1, 768>}, {pipeline_mode = #tpu.pipeline_mode<synchronous>, transform_indices = @transform_3, window_bounds = array<i64: 1, 256>}, {pipeline_mode = #tpu.pipeline_mode<synchronous>, transform_indices = @transform_4, window_bounds = array<i64: 1, 256>}, {transform_indices = @transform_5, window_bounds = array<i64: 64, 128>}, {transform_indices = @transform_6, window_bounds = array<i64: 64, 128>}, {transform_indices = @transform_7, window_bounds = array<i64: 64, 128>}, {transform_indices = @transform_8, window_bounds = array<i64: 1, 64, 256>}, {transform_indices = @transform_9, window_bounds = array<i64: 1, 64, 256>}, {transform_indices = @transform_10, window_bounds = array<i64: 1, 64, 256>}]} {
    %c0_i32 = arith.constant 0 : i32
    %0 = arith.cmpi eq, %arg2, %c0_i32 : i32
    %1 = arith.extui %0 : i1 to i32
    %c0_i32_0 = arith.constant 0 : i32
    %2 = arith.cmpi ne, %1, %c0_i32_0 : i32
    scf.if %2 {
      %cst_11 = arith.constant 0.000000e+00 : f32
      %13 = vector.broadcast %cst_11 : f32 to vector<64x768xf32>
      %c0_12 = arith.constant 0 : index
      %c0_13 = arith.constant 0 : index
      %14 = vector.load %arg14[%c0_12, %c0_13] : memref<64x768xf32, #tpu.memory_space<vmem>>, vector<64x768xf32>
      tpu.vector_store %arg14[%c0_12, %c0_13], %13 {strides = array<i32>} : memref<64x768xf32, #tpu.memory_space<vmem>>, vector<64x768xf32>,
    } else {
    }
    %c0 = arith.constant 0 : index
    %c0_1 = arith.constant 0 : index
    %3 = vector.load %arg14[%c0, %c0_1] : memref<64x768xf32, #tpu.memory_space<vmem>>, vector<64x768xf32>
    %c0_2 = arith.constant 0 : index
    %c0_3 = arith.constant 0 : index
    %c0_4 = arith.constant 0 : index
    %4 = vector.load %arg3[%c0_2, %c0_3, %c0_4] : memref<1x64x256xf32, #tpu.memory_space<vmem>>, vector<1x64x256xf32>
    %5 = vector.shape_cast %4 : vector<1x64x256xf32> to vector<64x256xf32>
    %c0_5 = arith.constant 0 : index
    %c0_6 = arith.constant 0 : index
    %6 = vector.load %arg4[%c0_5, %c0_6] : memref<256x768xf32, #tpu.memory_space<vmem>>, vector<256x768xf32>
    %cst = arith.constant dense<0.000000e+00> : vector<64x768xf32>
    %7 = tpu.matmul %5, %6, %cst {dimension_numbers = #tpu.dot_dimension_numbers<[1], [0], [0], [1], [0, 0, 1, 1], [], []>} : vector<64x256xf32>, vector<256x768xf32>, vector<64x768xf32> -> vector<64x768xf32>
    %8 = arith.addf %3, %7 : vector<64x768xf32>
    %c0_7 = arith.constant 0 : index
    %c0_8 = arith.constant 0 : index
    %9 = vector.load %arg14[%c0_7, %c0_8] : memref<64x768xf32, #tpu.memory_space<vmem>>, vector<64x768xf32>
    tpu.vector_store %arg14[%c0_7, %c0_8], %8 {strides = array<i32>} : memref<64x768xf32, #tpu.memory_space<vmem>>, vector<64x768xf32>,
    %c0_i32_9 = arith.constant 0 : i32
    %10 = arith.cmpi eq, %arg2, %c0_i32_9 : i32
    %11 = arith.extui %10 : i1 to i32
    %c0_i32_10 = arith.constant 0 : i32
    %12 = arith.cmpi ne, %11, %c0_i32_10 : i32
    scf.if %12 {
      %c0_11 = arith.constant 0 : index
      %c0_12 = arith.constant 0 : index
      %13 = vector.load %arg14[%c0_11, %c0_12] : memref<64x768xf32, #tpu.memory_space<vmem>>, vector<64x256xf32>
      %c0_13 = arith.constant 0 : index
      %c0_14 = arith.constant 0 : index
      %14 = vector.load %arg5[%c0_13, %c0_14] : memref<1x768xf32, #tpu.memory_space<vmem>>, vector<1x256xf32>
      %15 = vector.broadcast %14 : vector<1x256xf32> to vector<64x256xf32>
      %16 = arith.addf %13, %15 : vector<64x256xf32>
      %c0_15 = arith.constant 0 : index
      %c256 = arith.constant 256 : index
      %17 = vector.load %arg14[%c0_15, %c256] : memref<64x768xf32, #tpu.memory_space<vmem>>, vector<64x256xf32>
      %c0_16 = arith.constant 0 : index
      %c256_17 = arith.constant 256 : index
      %18 = vector.load %arg5[%c0_16, %c256_17] : memref<1x768xf32, #tpu.memory_space<vmem>>, vector<1x256xf32>
      %19 = vector.broadcast %18 : vector<1x256xf32> to vector<64x256xf32>
      %20 = arith.addf %17, %19 : vector<64x256xf32>
      %c0_18 = arith.constant 0 : index
      %c512 = arith.constant 512 : index
      %21 = vector.load %arg14[%c0_18, %c512] : memref<64x768xf32, #tpu.memory_space<vmem>>, vector<64x256xf32>
      %c0_19 = arith.constant 0 : index
      %c512_20 = arith.constant 512 : index
      %22 = vector.load %arg5[%c0_19, %c512_20] : memref<1x768xf32, #tpu.memory_space<vmem>>, vector<1x256xf32>
      %23 = vector.broadcast %22 : vector<1x256xf32> to vector<64x256xf32>
      %24 = arith.addf %21, %23 : vector<64x256xf32>
      %c0_21 = arith.constant 0 : index
      %c0_22 = arith.constant 0 : index
      %25 = vector.load %arg6[%c0_21, %c0_22] : memref<1x256xf32, #tpu.memory_space<vmem>>, vector<1x256xf32>
      %26 = arith.mulf %16, %16 : vector<64x256xf32>
      %cst_23 = arith.constant dense<0.000000e+00> : vector<64xf32>
      %27 = vector.multi_reduction <add>, %26, %cst_23 [1] : vector<64x256xf32> to vector<64xf32>
      %28 = vector.shape_cast %27 : vector<64xf32> to vector<64x1xf32>
      %cst_24 = arith.constant 2.560000e+02 : f32
      %29 = vector.broadcast %cst_24 : f32 to vector<64x1xf32>
      %30 = arith.divf %28, %29 : vector<64x1xf32>
      %cst_25 = arith.constant 9.99999997E-7 : f32
      %31 = vector.broadcast %cst_25 : f32 to vector<64x1xf32>
      %32 = arith.addf %30, %31 : vector<64x1xf32>
      %33 = math.rsqrt %32 : vector<64x1xf32>
      %34 = vector.broadcast %33 : vector<64x1xf32> to vector<64x256xf32>
      %35 = arith.mulf %16, %34 : vector<64x256xf32>
      %36 = vector.broadcast %25 : vector<1x256xf32> to vector<64x256xf32>
      %37 = arith.mulf %35, %36 : vector<64x256xf32>
      %c0_26 = arith.constant 0 : index
      %c0_27 = arith.constant 0 : index
      %38 = vector.load %arg7[%c0_26, %c0_27] : memref<1x256xf32, #tpu.memory_space<vmem>>, vector<1x256xf32>
      %39 = arith.mulf %20, %20 : vector<64x256xf32>
      %cst_28 = arith.constant dense<0.000000e+00> : vector<64xf32>
      %40 = vector.multi_reduction <add>, %39, %cst_28 [1] : vector<64x256xf32> to vector<64xf32>
      %41 = vector.shape_cast %40 : vector<64xf32> to vector<64x1xf32>
      %cst_29 = arith.constant 2.560000e+02 : f32
      %42 = vector.broadcast %cst_29 : f32 to vector<64x1xf32>
      %43 = arith.divf %41, %42 : vector<64x1xf32>
      %cst_30 = arith.constant 9.99999997E-7 : f32
      %44 = vector.broadcast %cst_30 : f32 to vector<64x1xf32>
      %45 = arith.addf %43, %44 : vector<64x1xf32>
      %46 = math.rsqrt %45 : vector<64x1xf32>
      %47 = vector.broadcast %46 : vector<64x1xf32> to vector<64x256xf32>
      %48 = arith.mulf %20, %47 : vector<64x256xf32>
      %49 = vector.broadcast %38 : vector<1x256xf32> to vector<64x256xf32>
      %50 = arith.mulf %48, %49 : vector<64x256xf32>
      %c0_31 = arith.constant 0 : index
      %c0_32 = arith.constant 0 : index
      %51 = vector.load %arg8[%c0_31, %c0_32] : memref<64x128xf32, #tpu.memory_space<vmem>>, vector<64x128xf32>
      %52 = tpu.concatenate %51, %51 in 1 : vector<64x128xf32>, vector<64x128xf32> -> vector<64x256xf32>
      %c0_33 = arith.constant 0 : index
      %c0_34 = arith.constant 0 : index
      %53 = vector.load %arg9[%c0_33, %c0_34] : memref<64x128xf32, #tpu.memory_space<vmem>>, vector<64x128xf32>
      %54 = tpu.concatenate %53, %53 in 1 : vector<64x128xf32>, vector<64x128xf32> -> vector<64x256xf32>
      %c0_35 = arith.constant 0 : index
      %c0_36 = arith.constant 0 : index
      %55 = vector.load %arg10[%c0_35, %c0_36] : memref<64x128xf32, #tpu.memory_space<vmem>>, vector<64x128xf32>
      %56 = tpu.concatenate %55, %55 in 1 : vector<64x128xf32>, vector<64x128xf32> -> vector<64x256xf32>
      %c192_i32 = arith.constant 192 : i32
      %57 = tpu.dynamic_rotate %37 by %c192_i32 dim 1 : vector<64x256xf32>, i32 -> vector<64x256xf32>
      %c64_i32 = arith.constant 64 : i32
      %58 = tpu.dynamic_rotate %37 by %c64_i32 dim 1 : vector<64x256xf32>, i32 -> vector<64x256xf32>
      %59 = arith.mulf %37, %52 : vector<64x256xf32>
      %60 = arith.mulf %57, %54 : vector<64x256xf32>
      %61 = arith.addf %59, %60 : vector<64x256xf32>
      %62 = arith.mulf %58, %56 : vector<64x256xf32>
      %63 = arith.addf %61, %62 : vector<64x256xf32>
      %cst_37 = arith.constant 0.0883883461 : f32
      %64 = vector.broadcast %cst_37 : f32 to vector<64x256xf32>
      %65 = arith.mulf %63, %64 : vector<64x256xf32>
      %c0_38 = arith.constant 0 : index
      %c0_39 = arith.constant 0 : index
      %c0_40 = arith.constant 0 : index
      %66 = vector.load %arg11[%c0_38, %c0_39, %c0_40] : memref<1x64x256xf32, #tpu.memory_space<vmem>>, vector<1x64x256xf32>
      %67 = vector.shape_cast %66 : vector<1x64x256xf32> to vector<64x256xf32>
      %68 = vector.shape_cast %65 : vector<64x256xf32> to vector<1x64x256xf32>
      tpu.vector_store %arg11[%c0_38, %c0_39, %c0_40], %68 {strides = array<i32>} : memref<1x64x256xf32, #tpu.memory_space<vmem>>, vector<1x64x256xf32>,
      %c192_i32_41 = arith.constant 192 : i32
      %69 = tpu.dynamic_rotate %50 by %c192_i32_41 dim 1 : vector<64x256xf32>, i32 -> vector<64x256xf32>
      %c64_i32_42 = arith.constant 64 : i32
      %70 = tpu.dynamic_rotate %50 by %c64_i32_42 dim 1 : vector<64x256xf32>, i32 -> vector<64x256xf32>
      %71 = arith.mulf %50, %52 : vector<64x256xf32>
      %72 = arith.mulf %69, %54 : vector<64x256xf32>
      %73 = arith.addf %71, %72 : vector<64x256xf32>
      %74 = arith.mulf %70, %56 : vector<64x256xf32>
      %75 = arith.addf %73, %74 : vector<64x256xf32>
      %c0_43 = arith.constant 0 : index
      %c0_44 = arith.constant 0 : index
      %c0_45 = arith.constant 0 : index
      %76 = vector.load %arg12[%c0_43, %c0_44, %c0_45] : memref<1x64x256xf32, #tpu.memory_space<vmem>>, vector<1x64x256xf32>
      %77 = vector.shape_cast %76 : vector<1x64x256xf32> to vector<64x256xf32>
      %78 = vector.shape_cast %75 : vector<64x256xf32> to vector<1x64x256xf32>
      tpu.vector_store %arg12[%c0_43, %c0_44, %c0_45], %78 {strides = array<i32>} : memref<1x64x256xf32, #tpu.memory_space<vmem>>, vector<1x64x256xf32>,
      %c0_46 = arith.constant 0 : index
      %c0_47 = arith.constant 0 : index
      %c0_48 = arith.constant 0 : index
      %79 = vector.load %arg13[%c0_46, %c0_47, %c0_48] : memref<1x64x256xf32, #tpu.memory_space<vmem>>, vector<1x64x256xf32>
      %80 = vector.shape_cast %79 : vector<1x64x256xf32> to vector<64x256xf32>
      %81 = vector.shape_cast %24 : vector<64x256xf32> to vector<1x64x256xf32>
      tpu.vector_store %arg13[%c0_46, %c0_47, %c0_48], %81 {strides = array<i32>} : memref<1x64x256xf32, #tpu.memory_space<vmem>>, vector<1x64x256xf32>,
    } else {
    }
    return
  }
  func.func @transform_0(%arg0: i32, %arg1: i32, %arg2: i32) -> (i32, i32, i32) {
    %c0_i32 = arith.constant 0 : i32
    return %arg0, %arg1, %arg2 : i32, i32, i32
  }
  func.func @transform_1(%arg0: i32, %arg1: i32, %arg2: i32) -> (i32, i32) {
    %c0_i32 = arith.constant 0 : i32
    %c0_i32_0 = arith.constant 0 : i32
    return %arg2, %c0_i32 : i32, i32
  }
  func.func @transform_2(%arg0: i32, %arg1: i32, %arg2: i32) -> (i32, i32) {
    %c0_i32 = arith.constant 0 : i32
    %c0_i32_0 = arith.constant 0 : i32
    %c0_i32_1 = arith.constant 0 : i32
    return %c0_i32, %c0_i32_0 : i32, i32
  }
  func.func @transform_3(%arg0: i32, %arg1: i32, %arg2: i32) -> (i32, i32) {
    %c0_i32 = arith.constant 0 : i32
    %c0_i32_0 = arith.constant 0 : i32
    %c0_i32_1 = arith.constant 0 : i32
    return %c0_i32, %c0_i32_0 : i32, i32
  }
  func.func @transform_4(%arg0: i32, %arg1: i32, %arg2: i32) -> (i32, i32) {
    %c0_i32 = arith.constant 0 : i32
    %c0_i32_0 = arith.constant 0 : i32
    %c0_i32_1 = arith.constant 0 : i32
    return %c0_i32, %c0_i32_0 : i32, i32
  }
  func.func @transform_5(%arg0: i32, %arg1: i32, %arg2: i32) -> (i32, i32) {
    %c0_i32 = arith.constant 0 : i32
    %c0_i32_0 = arith.constant 0 : i32
    return %arg1, %c0_i32 : i32, i32
  }
  func.func @transform_6(%arg0: i32, %arg1: i32, %arg2: i32) -> (i32, i32) {
    %c0_i32 = arith.constant 0 : i32
    %c0_i32_0 = arith.constant 0 : i32
    return %arg1, %c0_i32 : i32, i32
  }
  func.func @transform_7(%arg0: i32, %arg1: i32, %arg2: i32) -> (i32, i32) {
    %c0_i32 = arith.constant 0 : i32
    %c0_i32_0 = arith.constant 0 : i32
    return %arg1, %c0_i32 : i32, i32
  }
  func.func @transform_8(%arg0: i32, %arg1: i32, %arg2: i32) -> (i32, i32, i32) {
    %c0_i32 = arith.constant 0 : i32
    %c0_i32_0 = arith.constant 0 : i32
    return %arg0, %arg1, %c0_i32 : i32, i32, i32
  }
  func.func @transform_9(%arg0: i32, %arg1: i32, %arg2: i32) -> (i32, i32, i32) {
    %c0_i32 = arith.constant 0 : i32
    %c0_i32_0 = arith.constant 0 : i32
    return %arg0, %arg1, %c0_i32 : i32, i32, i32
  }
  func.func @transform_10(%arg0: i32, %arg1: i32, %arg2: i32) -> (i32, i32, i32) {
    %c0_i32 = arith.constant 0 : i32
    %c0_i32_0 = arith.constant 0 : i32
    return %arg0, %arg1, %c0_i32 : i32, i32, i32
  }
}

</mosaic_0001>

<llo_original>
// kernel: wan_self_attention_forward.4
$region0: #{wan_self_attention_forward.4}
  #allocation0 [shape = 'u32[]', space=smem, size = 0x4, offset = 0x4, fixed_abs, tag = 'smem constant byte address 0x4 - core index']
  #allocation1 [shape = 'u32[72,128]{1,0:T(1,128)}', space=vmem, size = 0x9000, scoped, tag = 'internal scratch']
  #allocation2 [shape = 'f32[64,1]{1,0:T(8,128)}', space=vmem, size = 0x8000, scoped, tag = 'scratch operand']
  #allocation3 [shape = 'f32[64,1]{1,0:T(8,128)}', space=vmem, size = 0x8000, scoped, tag = 'scratch operand']
  #allocation4 [shape = 'f32[64,128]{1,0:T(8,128)}', space=vmem, size = 0x8000, scoped, tag = 'scratch operand']
  %s0 = inlined_call_operand.vmem [shape: f32[2,64,256], index: 0, kind: input, shape index: {}]
  %s1 = inlined_call_operand.vmem [shape: f32[2,64,256], index: 1, kind: input, shape index: {}]
  %s2 = inlined_call_operand.vmem [shape: f32[2,64,256], index: 2, kind: input, shape index: {}]
  %s3 = inlined_call_operand.vmem [shape: f32[2,64,256], index: 3, kind: output, shape index: {}]
  %s4 = sld [smem:[#allocation0]]
  $region201: #{wan_self_attention_forward.4} parent=0
    _
  %s6 = ssub.s32 1, %s4
  %s7 = scalar_select 0, %s6, %s4
  $region1: #{wan_self_attention_forward.4} parent=0
    #allocation5 [shape = 'u8[65536]{0}', space=vmem, size = 0x10000, scoped, tag = 'input window, operand 0']
    #allocation6 [shape = 'u8[65536]{0}', space=vmem, size = 0x10000, scoped, tag = 'input window, operand 1']
    #allocation7 [shape = 'u8[65536]{0}', space=vmem, size = 0x10000, scoped, tag = 'input window, operand 2']
    #allocation8 [shape = 'u8[65536]{0}', space=vmem, size = 0x10000, scoped, tag = 'output window, operand 0']
    loop: start=0, step=1, limit=6
    $region2: #{wan_self_attention_forward.4} parent=1 // loop_pre_header
      _
    $region3: #{wan_self_attention_forward.4} parent=1 // loop_header
      %s9 = sphi 0, %s13
      %p10 = scmp.ge.s32.totalorder %s9, 6
      %s16 = sphi 0, %s42
      %s17 = sphi 0, %s38
      %s18 = sphi 0, %s34
      %s19 = sphi 0, %s30
      %s20 = sphi 0, %s16
      %s21 = sphi 0, %s17
      %s22 = sphi 0, %s18
      %s23 = sphi 0, %s19
      %s24 = sphi 0, %s20
      %s25 = sphi 0, %s21
      %s26 = sphi 0, %s22
      %s27 = sphi 0, %s23
      %s49 = sphi 0, %s51
      %s52 = sphi 0, %s49
      %s53 = sphi 0, %s52
      %s69 = sphi 0, %s53
      %s79 = sphi 0, %s81
      %s82 = sphi 0, %s79
      %s83 = sphi 0, %s82
      %s99 = sphi 0, %s83
      %s109 = sphi 0, %s111
      %s112 = sphi 0, %s109
      %s113 = sphi 0, %s112
      %s129 = sphi 0, %s113
      %s139 = sphi 0, %s141
      %s142 = sphi 0, %s139
      %s143 = sphi 0, %s142
      %s159 = sphi 0, %s143
    $region4: #{wan_self_attention_forward.4} parent=1 // loop_header_branch
      %12 = sbr.rel (%p10) target = $region8
    $region5: #{wan_self_attention_forward.4} parent=1 // loop_body
      %s14 = ssub.s32 %s9, 1
      %s15 = ssub.s32 %s9, 2
      %s28 = sadd.s32 1, %s19
      %p29 = scmp.ge.s32.totalorder %s28, 1
      %s30 = scalar_select %p29, 0, %s28
      %s31 = sadd.s32 1, %s18
      %s32 = scalar_select %p29, %s31, %s18
      %p33 = scmp.ge.s32.totalorder %s32, 1
      %s34 = scalar_select %p33, 0, %s32
      %s35 = sadd.s32 1, %s17
      %s36 = scalar_select %p33, %s35, %s17
      %p37 = scmp.ge.s32.totalorder %s36, 2
      %s38 = scalar_select %p37, 0, %s36
      %s39 = sadd.s32 1, %s16
      %s40 = scalar_select %p37, %s39, %s16
      %p41 = scmp.ge.s32.totalorder %s40, 2
      %s42 = scalar_select %p41, 0, %s40
      %s43 = ssub.s32 %s16, %s42
      %s44 = ssub.s32 %s18, %s34
      %s45 = sor.u32 %s43, %s44
      %s46 = ssub.s32 %s17, %s38
      %s47 = sor.u32 %s45, %s46
      %p48 = scmp.eq.s32.totalorder %s47, 0
      %s50 = sadd.s32 %s49, 1
      %s51 = scalar_select %p48, %s49, %s50
      %p54 = pneg %p48
      %p55 = scmp.eq.s32.totalorder %s9, 3
      %p56 = por %p54, %p55
      %p57 = scmp.ne.s32.totalorder %s49, %s52
      %p58 = scmp.eq.s32.totalorder %s9, 0
      %p59 = por %p57, %p58
      %p60 = scmp.ne.s32.totalorder %s49, %s52
      %p61 = scmp.eq.s32.totalorder %s14, 3
      %p62 = por %p60, %p61
      %p63 = scmp.ne.s32.totalorder %s52, %s53
      %p64 = scmp.eq.s32.totalorder %s14, 0
      %p65 = por %p63, %p64
      %p66 = scmp.ne.s32.totalorder %s52, %s53
      %p67 = scmp.eq.s32.totalorder %s15, 3
      %p68 = por %p66, %p67
      %p70 = scmp.ne.s32.totalorder %s53, %s69
      %p71 = scmp.eq.s32.totalorder %s15, 0
      %p72 = por %p70, %p71
      %s73 = ssub.s32 %s16, %s42
      %s74 = ssub.s32 %s19, %s30
      %s75 = sor.u32 %s73, %s74
      %s76 = ssub.s32 %s17, %s38
      %s77 = sor.u32 %s75, %s76
      %p78 = scmp.eq.s32.totalorder %s77, 0
      %s80 = sadd.s32 %s79, 1
      %s81 = scalar_select %p78, %s79, %s80
      %p84 = pneg %p78
      %p85 = scmp.eq.s32.totalorder %s9, 3
      %p86 = por %p84, %p85
      %p87 = scmp.ne.s32.totalorder %s79, %s82
      %p88 = scmp.eq.s32.totalorder %s9, 0
      %p89 = por %p87, %p88
      %p90 = scmp.ne.s32.totalorder %s79, %s82
      %p91 = scmp.eq.s32.totalorder %s14, 3
      %p92 = por %p90, %p91
      %p93 = scmp.ne.s32.totalorder %s82, %s83
      %p94 = scmp.eq.s32.totalorder %s14, 0
      %p95 = por %p93, %p94
      %p96 = scmp.ne.s32.totalorder %s82, %s83
      %p97 = scmp.eq.s32.totalorder %s15, 3
      %p98 = por %p96, %p97
      %p100 = scmp.ne.s32.totalorder %s83, %s99
      %p101 = scmp.eq.s32.totalorder %s15, 0
      %p102 = por %p100, %p101
      %s103 = ssub.s32 %s16, %s42
      %s104 = ssub.s32 %s19, %s30
      %s105 = sor.u32 %s103, %s104
      %s106 = ssub.s32 %s17, %s38
      %s107 = sor.u32 %s105, %s106
      %p108 = scmp.eq.s32.totalorder %s107, 0
      %s110 = sadd.s32 %s109, 1
      %s111 = scalar_select %p108, %s109, %s110
      %p114 = pneg %p108
      %p115 = scmp.eq.s32.totalorder %s9, 3
      %p116 = por %p114, %p115
      %p117 = scmp.ne.s32.totalorder %s109, %s112
      %p118 = scmp.eq.s32.totalorder %s9, 0
      %p119 = por %p117, %p118
      %p120 = scmp.ne.s32.totalorder %s109, %s112
      %p121 = scmp.eq.s32.totalorder %s14, 3
      %p122 = por %p120, %p121
      %p123 = scmp.ne.s32.totalorder %s112, %s113
      %p124 = scmp.eq.s32.totalorder %s14, 0
      %p125 = por %p123, %p124
      %p126 = scmp.ne.s32.totalorder %s112, %s113
      %p127 = scmp.eq.s32.totalorder %s15, 3
      %p128 = por %p126, %p127
      %p130 = scmp.ne.s32.totalorder %s113, %s129
      %p131 = scmp.eq.s32.totalorder %s15, 0
      %p132 = por %p130, %p131
      %s133 = ssub.s32 %s16, %s42
      %s134 = ssub.s32 %s18, %s34
      %s135 = sor.u32 %s133, %s134
      %s136 = ssub.s32 %s17, %s38
      %s137 = sor.u32 %s135, %s136
      %p138 = scmp.eq.s32.totalorder %s137, 0
      %s140 = sadd.s32 %s139, 1
      %s141 = scalar_select %p138, %s139, %s140
      %p144 = pneg %p138
      %p145 = scmp.eq.s32.totalorder %s9, 3
      %p146 = por %p144, %p145
      %p147 = scmp.ne.s32.totalorder %s139, %s142
      %p148 = scmp.eq.s32.totalorder %s9, 0
      %p149 = por %p147, %p148
      %p150 = scmp.ne.s32.totalorder %s139, %s142
      %p151 = scmp.eq.s32.totalorder %s14, 3
      %p152 = por %p150, %p151
      %p153 = scmp.ne.s32.totalorder %s142, %s143
      %p154 = scmp.eq.s32.totalorder %s14, 0
      %p155 = por %p153, %p154
      %p156 = scmp.ne.s32.totalorder %s142, %s143
      %p157 = scmp.eq.s32.totalorder %s15, 3
      %p158 = por %p156, %p157
      %p160 = scmp.ne.s32.totalorder %s143, %s159
      %p161 = scmp.eq.s32.totalorder %s15, 0
      %p162 = por %p160, %p161
      %p163 = scmp.le.s32.totalorder 1, %s9
      %p164 = scmp.lt.s32.totalorder %s9, 5
      %p165 = pnand %p163, %p164
      %p166 = pneg %p165
      // Predicated region
      $region9: #{wan_self_attention_forward.4} parent=5 // pred_check
        _
      $region10: #{wan_self_attention_forward.4} parent=5 // pred_check_branch
        %168 = sbr.rel (%p165) target = $region12
      $region11: #{wan_self_attention_forward.4} parent=5 // pred_region
        %s169 = ssub.s32 %s9, 1
      $region12: #{wan_self_attention_forward.4} parent=5 // pred_fallthru
        _
      %p170 = scmp.lt.s32.totalorder %s9, 4
      // Predicated region
      $region13: #{wan_self_attention_forward.4} parent=5 // pred_check
        %p171 = pneg %p170
      $region14: #{wan_self_attention_forward.4} parent=5 // pred_check_branch
        %173 = sbr.rel (%p171) target = $region16
      $region15: #{wan_self_attention_forward.4} parent=5 // pred_region
        // Predicated region
        $region17: #{wan_self_attention_forward.4} parent=15 // pred_check
          %p174 = pneg %p59
        $region18: #{wan_self_attention_forward.4} parent=15 // pred_check_branch
          %176 = sbr.rel (%p174) target = $region20
        $region19: #{wan_self_attention_forward.4} parent=15 // pred_region
          %s177 = sand.u32 %s49, 1
          %s178 = sand.u32 %s49, 1
          %s179 = smul.addr %s178, 64
          %s180 = scalar_lea.vmem [#allocation5], %s179
          %s181 = smul.u32 8, %s18
          %s182 = smul.addr %s181, 2
          %s183 = sadd.s32 %s17, %s182
          %s184 = smul.addr %s16, 16
          %s185 = sadd.s32 %s183, %s184
          %s186 = smul.addr %s185, 8
          %s187 = scalar_lea.vmem %s0, %s186
          // Predicated region
          $region21: #{wan_self_attention_forward.4} parent=19 // pred_check
            _
          $region22: #{wan_self_attention_forward.4} parent=19 // pred_check_branch
            %189 = sbr.rel (0) target = $region24
          $region23: #{wan_self_attention_forward.4} parent=19 // pred_region
            // Predicated region
            $region25: #{wan_self_attention_forward.4} parent=23 // pred_check
              _
            $region26: #{wan_self_attention_forward.4} parent=23 // pred_check_branch
              %191 = sbr.rel (0) target = $region28
            $region27: #{wan_self_attention_forward.4} parent=23 // pred_region
              // Predicated region
              $region40: #{wan_self_attention_forward.4} parent=27 // pred_check
                _
              $region41: #{wan_self_attention_forward.4} parent=27 // pred_check_branch
                %221 = sbr.rel (0) target = $region43
              $region42: #{wan_self_attention_forward.4} parent=27 // pred_region
                loop: start=0, step=1, limit=1
                $region44: #{wan_self_attention_forward.4} parent=42 // loop_pre_header
                  _
                $region45: #{wan_self_attention_forward.4} parent=42 // loop_header
                  %s223 = sphi 0, %s227
                  %p224 = scmp.ge.s32.totalorder %s223, 1
                  %s228 = sphi %s187, %s187
                  %s229 = sphi %s180, %s180
                $region46: #{wan_self_attention_forward.4} parent=42 // loop_header_branch
                  %226 = sbr.rel (%p224) target = $region50
                $region47: #{wan_self_attention_forward.4} parent=42 // loop_body
                  %v230 = vld [vmem:[%s228] sm:$0xff]
                  %231 = vst [vmem:[%s229] sm:$0xff] %v230
                  %v232 = vld [vmem:[%s228 + $0x10] sm:$0xff]
                  %233 = vst [vmem:[%s229 + $0x8] sm:$0xff] %v232
                  %v234 = vld [vmem:[%s228 + $0x20] sm:$0xff]
                  %235 = vst [vmem:[%s229 + $0x10] sm:$0xff] %v234
                  %v236 = vld [vmem:[%s228 + $0x30] sm:$0xff]
                  %237 = vst [vmem:[%s229 + $0x18] sm:$0xff] %v236
                  %v238 = vld [vmem:[%s228 + $0x40] sm:$0xff]
                  %239 = vst [vmem:[%s229 + $0x20] sm:$0xff] %v238
                  %v240 = vld [vmem:[%s228 + $0x50] sm:$0xff]
                  %241 = vst [vmem:[%s229 + $0x28] sm:$0xff] %v240
                  %v242 = vld [vmem:[%s228 + $0x60] sm:$0xff]
                  %243 = vst [vmem:[%s229 + $0x30] sm:$0xff] %v242
                  %v244 = vld [vmem:[%s228 + $0x70] sm:$0xff]
                  %245 = vst [vmem:[%s229 + $0x38] sm:$0xff] %v244
                $region48: #{wan_self_attention_forward.4} parent=42 // loop_footer
                  %s227 = sadd.s32 1, %s223
                $region49: #{wan_self_attention_forward.4} parent=42 // loop_footer_branch
                  %222 = sbr.rel target = $region45
                $region50: #{wan_self_attention_forward.4} parent=42 // loop_exit
                  _
              $region43: #{wan_self_attention_forward.4} parent=27 // pred_fallthru
                _
              // Predicated region
              $region51: #{wan_self_attention_forward.4} parent=27 // pred_check
                _
              $region52: #{wan_self_attention_forward.4} parent=27 // pred_check_branch
                %247 = sbr.rel target = $region54
              $region53: #{wan_self_attention_forward.4} parent=27 // pred_region
                _
              $region54: #{wan_self_attention_forward.4} parent=27 // pred_fallthru
                _
            $region28: #{wan_self_attention_forward.4} parent=23 // pred_fallthru
              _
            // Predicated region
            $region29: #{wan_self_attention_forward.4} parent=23 // pred_check
              _
            $region30: #{wan_self_attention_forward.4} parent=23 // pred_check_branch
              %193 = sbr.rel target = $region32
            $region31: #{wan_self_attention_forward.4} parent=23 // pred_region
              %s195 = ssub.s32 256, 1
              loop: start=0, step=1, limit=1
              $region33: #{wan_self_attention_forward.4} parent=31 // loop_pre_header
                _
              $region34: #{wan_self_attention_forward.4} parent=31 // loop_header
                %s197 = sphi 0, %s201
                %p198 = scmp.ge.s32.totalorder %s197, 1
                %s202 = sphi %s187, %s187
                %s203 = sphi %s180, %s180
              $region35: #{wan_self_attention_forward.4} parent=31 // loop_header_branch
                %200 = sbr.rel (%p198) target = $region39
              $region36: #{wan_self_attention_forward.4} parent=31 // loop_body
                %v204 = vld [vmem:[%s202] sm:%s195]
                %205 = vst [vmem:[%s203] sm:%s195] %v204
                %v206 = vld [vmem:[%s202 + $0x10] sm:%s195]
                %207 = vst [vmem:[%s203 + $0x8] sm:%s195] %v206
                %v208 = vld [vmem:[%s202 + $0x20] sm:%s195]
                %209 = vst [vmem:[%s203 + $0x10] sm:%s195] %v208
                %v210 = vld [vmem:[%s202 + $0x30] sm:%s195]
                %211 = vst [vmem:[%s203 + $0x18] sm:%s195] %v210
                %v212 = vld [vmem:[%s202 + $0x40] sm:%s195]
                %213 = vst [vmem:[%s203 + $0x20] sm:%s195] %v212
                %v214 = vld [vmem:[%s202 + $0x50] sm:%s195]
                %215 = vst [vmem:[%s203 + $0x28] sm:%s195] %v214
                %v216 = vld [vmem:[%s202 + $0x60] sm:%s195]
                %217 = vst [vmem:[%s203 + $0x30] sm:%s195] %v216
                %v218 = vld [vmem:[%s202 + $0x70] sm:%s195]
                %219 = vst [vmem:[%s203 + $0x38] sm:%s195] %v218
              $region37: #{wan_self_attention_forward.4} parent=31 // loop_footer
                %s201 = sadd.s32 1, %s197
              $region38: #{wan_self_attention_forward.4} parent=31 // loop_footer_branch
                %196 = sbr.rel target = $region34
              $region39: #{wan_self_attention_forward.4} parent=31 // loop_exit
                _
            $region32: #{wan_self_attention_forward.4} parent=23 // pred_fallthru
              _
          $region24: #{wan_self_attention_forward.4} parent=19 // pred_fallthru
            _
          %248 = vnop
        $region20: #{wan_self_attention_forward.4} parent=15 // pred_fallthru
          _
        // Predicated region
        $region55: #{wan_self_attention_forward.4} parent=15 // pred_check
          %p249 = pneg %p89
        $region56: #{wan_self_attention_forward.4} parent=15 // pred_check_branch
          %251 = sbr.rel (%p249) target = $region58
        $region57: #{wan_self_attention_forward.4} parent=15 // pred_region
          %s252 = sand.u32 %s79, 1
          %s253 = sand.u32 %s79, 1
          %s254 = smul.addr %s253, 64
          %s255 = scalar_lea.vmem [#allocation6], %s254
          %s256 = smul.u32 8, %s19
          %s257 = smul.addr %s256, 2
          %s258 = sadd.s32 %s17, %s257
          %s259 = smul.addr %s16, 16
          %s260 = sadd.s32 %s258, %s259
          %s261 = smul.addr %s260, 8
          %s262 = scalar_lea.vmem %s1, %s261
          // Predicated region
          $region59: #{wan_self_attention_forward.4} parent=57 // pred_check
            _
          $region60: #{wan_self_attention_forward.4} parent=57 // pred_check_branch
            %264 = sbr.rel (0) target = $region62
          $region61: #{wan_self_attention_forward.4} parent=57 // pred_region
            // Predicated region
            $region63: #{wan_self_attention_forward.4} parent=61 // pred_check
              _
            $region64: #{wan_self_attention_forward.4} parent=61 // pred_check_branch
              %266 = sbr.rel (0) target = $region66
            $region65: #{wan_self_attention_forward.4} parent=61 // pred_region
              // Predicated region
              $region78: #{wan_self_attention_forward.4} parent=65 // pred_check
                _
              $region79: #{wan_self_attention_forward.4} parent=65 // pred_check_branch
                %296 = sbr.rel (0) target = $region81
              $region80: #{wan_self_attention_forward.4} parent=65 // pred_region
                loop: start=0, step=1, limit=1
                $region82: #{wan_self_attention_forward.4} parent=80 // loop_pre_header
                  _
                $region83: #{wan_self_attention_forward.4} parent=80 // loop_header
                  %s298 = sphi 0, %s302
                  %p299 = scmp.ge.s32.totalorder %s298, 1
                  %s303 = sphi %s262, %s262
                  %s304 = sphi %s255, %s255
                $region84: #{wan_self_attention_forward.4} parent=80 // loop_header_branch
                  %301 = sbr.rel (%p299) target = $region88
                $region85: #{wan_self_attention_forward.4} parent=80 // loop_body
                  %v305 = vld [vmem:[%s303] sm:$0xff]
                  %306 = vst [vmem:[%s304] sm:$0xff] %v305
                  %v307 = vld [vmem:[%s303 + $0x10] sm:$0xff]
                  %308 = vst [vmem:[%s304 + $0x8] sm:$0xff] %v307
                  %v309 = vld [vmem:[%s303 + $0x20] sm:$0xff]
                  %310 = vst [vmem:[%s304 + $0x10] sm:$0xff] %v309
                  %v311 = vld [vmem:[%s303 + $0x30] sm:$0xff]
                  %312 = vst [vmem:[%s304 + $0x18] sm:$0xff] %v311
                  %v313 = vld [vmem:[%s303 + $0x40] sm:$0xff]
                  %314 = vst [vmem:[%s304 + $0x20] sm:$0xff] %v313
                  %v315 = vld [vmem:[%s303 + $0x50] sm:$0xff]
                  %316 = vst [vmem:[%s304 + $0x28] sm:$0xff] %v315
                  %v317 = vld [vmem:[%s303 + $0x60] sm:$0xff]
                  %318 = vst [vmem:[%s304 + $0x30] sm:$0xff] %v317
                  %v319 = vld [vmem:[%s303 + $0x70] sm:$0xff]
                  %320 = vst [vmem:[%s304 + $0x38] sm:$0xff] %v319
                $region86: #{wan_self_attention_forward.4} parent=80 // loop_footer
                  %s302 = sadd.s32 1, %s298
                $region87: #{wan_self_attention_forward.4} parent=80 // loop_footer_branch
                  %297 = sbr.rel target = $region83
                $region88: #{wan_self_attention_forward.4} parent=80 // loop_exit
                  _
              $region81: #{wan_self_attention_forward.4} parent=65 // pred_fallthru
                _
              // Predicated region
              $region89: #{wan_self_attention_forward.4} parent=65 // pred_check
                _
              $region90: #{wan_self_attention_forward.4} parent=65 // pred_check_branch
                %322 = sbr.rel target = $region92
              $region91: #{wan_self_attention_forward.4} parent=65 // pred_region
                _
              $region92: #{wan_self_attention_forward.4} parent=65 // pred_fallthru
                _
            $region66: #{wan_self_attention_forward.4} parent=61 // pred_fallthru
              _
            // Predicated region
            $region67: #{wan_self_attention_forward.4} parent=61 // pred_check
              _
            $region68: #{wan_self_attention_forward.4} parent=61 // pred_check_branch
              %268 = sbr.rel target = $region70
            $region69: #{wan_self_attention_forward.4} parent=61 // pred_region
              %s270 = ssub.s32 256, 1
              loop: start=0, step=1, limit=1
              $region71: #{wan_self_attention_forward.4} parent=69 // loop_pre_header
                _
              $region72: #{wan_self_attention_forward.4} parent=69 // loop_header
                %s272 = sphi 0, %s276
                %p273 = scmp.ge.s32.totalorder %s272, 1
                %s277 = sphi %s262, %s262
                %s278 = sphi %s255, %s255
              $region73: #{wan_self_attention_forward.4} parent=69 // loop_header_branch
                %275 = sbr.rel (%p273) target = $region77
              $region74: #{wan_self_attention_forward.4} parent=69 // loop_body
                %v279 = vld [vmem:[%s277] sm:%s270]
                %280 = vst [vmem:[%s278] sm:%s270] %v279
                %v281 = vld [vmem:[%s277 + $0x10] sm:%s270]
                %282 = vst [vmem:[%s278 + $0x8] sm:%s270] %v281
                %v283 = vld [vmem:[%s277 + $0x20] sm:%s270]
                %284 = vst [vmem:[%s278 + $0x10] sm:%s270] %v283
                %v285 = vld [vmem:[%s277 + $0x30] sm:%s270]
                %286 = vst [vmem:[%s278 + $0x18] sm:%s270] %v285
                %v287 = vld [vmem:[%s277 + $0x40] sm:%s270]
                %288 = vst [vmem:[%s278 + $0x20] sm:%s270] %v287
                %v289 = vld [vmem:[%s277 + $0x50] sm:%s270]
                %290 = vst [vmem:[%s278 + $0x28] sm:%s270] %v289
                %v291 = vld [vmem:[%s277 + $0x60] sm:%s270]
                %292 = vst [vmem:[%s278 + $0x30] sm:%s270] %v291
                %v293 = vld [vmem:[%s277 + $0x70] sm:%s270]
                %294 = vst [vmem:[%s278 + $0x38] sm:%s270] %v293
              $region75: #{wan_self_attention_forward.4} parent=69 // loop_footer
                %s276 = sadd.s32 1, %s272
              $region76: #{wan_self_attention_forward.4} parent=69 // loop_footer_branch
                %271 = sbr.rel target = $region72
              $region77: #{wan_self_attention_forward.4} parent=69 // loop_exit
                _
            $region70: #{wan_self_attention_forward.4} parent=61 // pred_fallthru
              _
          $region62: #{wan_self_attention_forward.4} parent=57 // pred_fallthru
            _
          %323 = vnop
        $region58: #{wan_self_attention_forward.4} parent=15 // pred_fallthru
          _
        // Predicated region
        $region93: #{wan_self_attention_forward.4} parent=15 // pred_check
          %p324 = pneg %p119
        $region94: #{wan_self_attention_forward.4} parent=15 // pred_check_branch
          %326 = sbr.rel (%p324) target = $region96
        $region95: #{wan_self_attention_forward.4} parent=15 // pred_region
          %s327 = sand.u32 %s109, 1
          %s328 = sand.u32 %s109, 1
          %s329 = smul.addr %s328, 64
          %s330 = scalar_lea.vmem [#allocation7], %s329
          %s331 = smul.u32 8, %s19
          %s332 = smul.addr %s331, 2
          %s333 = sadd.s32 %s17, %s332
          %s334 = smul.addr %s16, 16
          %s335 = sadd.s32 %s333, %s334
          %s336 = smul.addr %s335, 8
          %s337 = scalar_lea.vmem %s2, %s336
          // Predicated region
          $region97: #{wan_self_attention_forward.4} parent=95 // pred_check
            _
          $region98: #{wan_self_attention_forward.4} parent=95 // pred_check_branch
            %339 = sbr.rel (0) target = $region100
          $region99: #{wan_self_attention_forward.4} parent=95 // pred_region
            // Predicated region
            $region101: #{wan_self_attention_forward.4} parent=99 // pred_check
              _
            $region102: #{wan_self_attention_forward.4} parent=99 // pred_check_branch
              %341 = sbr.rel (0) target = $region104
            $region103: #{wan_self_attention_forward.4} parent=99 // pred_region
              // Predicated region
              $region116: #{wan_self_attention_forward.4} parent=103 // pred_check
                _
              $region117: #{wan_self_attention_forward.4} parent=103 // pred_check_branch
                %371 = sbr.rel (0) target = $region119
              $region118: #{wan_self_attention_forward.4} parent=103 // pred_region
                loop: start=0, step=1, limit=1
                $region120: #{wan_self_attention_forward.4} parent=118 // loop_pre_header
                  _
                $region121: #{wan_self_attention_forward.4} parent=118 // loop_header
                  %s373 = sphi 0, %s377
                  %p374 = scmp.ge.s32.totalorder %s373, 1
                  %s378 = sphi %s337, %s337
                  %s379 = sphi %s330, %s330
                $region122: #{wan_self_attention_forward.4} parent=118 // loop_header_branch
                  %376 = sbr.rel (%p374) target = $region126
                $region123: #{wan_self_attention_forward.4} parent=118 // loop_body
                  %v380 = vld [vmem:[%s378] sm:$0xff]
                  %381 = vst [vmem:[%s379] sm:$0xff] %v380
                  %v382 = vld [vmem:[%s378 + $0x10] sm:$0xff]
                  %383 = vst [vmem:[%s379 + $0x8] sm:$0xff] %v382
                  %v384 = vld [vmem:[%s378 + $0x20] sm:$0xff]
                  %385 = vst [vmem:[%s379 + $0x10] sm:$0xff] %v384
                  %v386 = vld [vmem:[%s378 + $0x30] sm:$0xff]
                  %387 = vst [vmem:[%s379 + $0x18] sm:$0xff] %v386
                  %v388 = vld [vmem:[%s378 + $0x40] sm:$0xff]
                  %389 = vst [vmem:[%s379 + $0x20] sm:$0xff] %v388
                  %v390 = vld [vmem:[%s378 + $0x50] sm:$0xff]
                  %391 = vst [vmem:[%s379 + $0x28] sm:$0xff] %v390
                  %v392 = vld [vmem:[%s378 + $0x60] sm:$0xff]
                  %393 = vst [vmem:[%s379 + $0x30] sm:$0xff] %v392
                  %v394 = vld [vmem:[%s378 + $0x70] sm:$0xff]
                  %395 = vst [vmem:[%s379 + $0x38] sm:$0xff] %v394
                $region124: #{wan_self_attention_forward.4} parent=118 // loop_footer
                  %s377 = sadd.s32 1, %s373
                $region125: #{wan_self_attention_forward.4} parent=118 // loop_footer_branch
                  %372 = sbr.rel target = $region121
                $region126: #{wan_self_attention_forward.4} parent=118 // loop_exit
                  _
              $region119: #{wan_self_attention_forward.4} parent=103 // pred_fallthru
                _
              // Predicated region
              $region127: #{wan_self_attention_forward.4} parent=103 // pred_check
                _
              $region128: #{wan_self_attention_forward.4} parent=103 // pred_check_branch
                %397 = sbr.rel target = $region130
              $region129: #{wan_self_attention_forward.4} parent=103 // pred_region
                _
              $region130: #{wan_self_attention_forward.4} parent=103 // pred_fallthru
                _
            $region104: #{wan_self_attention_forward.4} parent=99 // pred_fallthru
              _
            // Predicated region
            $region105: #{wan_self_attention_forward.4} parent=99 // pred_check
              _
            $region106: #{wan_self_attention_forward.4} parent=99 // pred_check_branch
              %343 = sbr.rel target = $region108
            $region107: #{wan_self_attention_forward.4} parent=99 // pred_region
              %s345 = ssub.s32 256, 1
              loop: start=0, step=1, limit=1
              $region109: #{wan_self_attention_forward.4} parent=107 // loop_pre_header
                _
              $region110: #{wan_self_attention_forward.4} parent=107 // loop_header
                %s347 = sphi 0, %s351
                %p348 = scmp.ge.s32.totalorder %s347, 1
                %s352 = sphi %s337, %s337
                %s353 = sphi %s330, %s330
              $region111: #{wan_self_attention_forward.4} parent=107 // loop_header_branch
                %350 = sbr.rel (%p348) target = $region115
              $region112: #{wan_self_attention_forward.4} parent=107 // loop_body
                %v354 = vld [vmem:[%s352] sm:%s345]
                %355 = vst [vmem:[%s353] sm:%s345] %v354
                %v356 = vld [vmem:[%s352 + $0x10] sm:%s345]
                %357 = vst [vmem:[%s353 + $0x8] sm:%s345] %v356
                %v358 = vld [vmem:[%s352 + $0x20] sm:%s345]
                %359 = vst [vmem:[%s353 + $0x10] sm:%s345] %v358
                %v360 = vld [vmem:[%s352 + $0x30] sm:%s345]
                %361 = vst [vmem:[%s353 + $0x18] sm:%s345] %v360
                %v362 = vld [vmem:[%s352 + $0x40] sm:%s345]
                %363 = vst [vmem:[%s353 + $0x20] sm:%s345] %v362
                %v364 = vld [vmem:[%s352 + $0x50] sm:%s345]
                %365 = vst [vmem:[%s353 + $0x28] sm:%s345] %v364
                %v366 = vld [vmem:[%s352 + $0x60] sm:%s345]
                %367 = vst [vmem:[%s353 + $0x30] sm:%s345] %v366
                %v368 = vld [vmem:[%s352 + $0x70] sm:%s345]
                %369 = vst [vmem:[%s353 + $0x38] sm:%s345] %v368
              $region113: #{wan_self_attention_forward.4} parent=107 // loop_footer
                %s351 = sadd.s32 1, %s347
              $region114: #{wan_self_attention_forward.4} parent=107 // loop_footer_branch
                %346 = sbr.rel target = $region110
              $region115: #{wan_self_attention_forward.4} parent=107 // loop_exit
                _
            $region108: #{wan_self_attention_forward.4} parent=99 // pred_fallthru
              _
          $region100: #{wan_self_attention_forward.4} parent=95 // pred_fallthru
            _
          %398 = vnop
        $region96: #{wan_self_attention_forward.4} parent=15 // pred_fallthru
          _
      $region16: #{wan_self_attention_forward.4} parent=5 // pred_fallthru
        _
      %p399 = scmp.le.s32.totalorder 1, %s9
      %p400 = scmp.lt.s32.totalorder %s9, 5
      %p401 = pnand %p399, %p400
      %p402 = pneg %p401
      // Predicated region
      $region131: #{wan_self_attention_forward.4} parent=5 // pred_check
        _
      $region132: #{wan_self_attention_forward.4} parent=5 // pred_check_branch
        %404 = sbr.rel (%p401) target = $region134
      $region133: #{wan_self_attention_forward.4} parent=5 // pred_region
        %s405 = ssub.s32 %s9, 1
        %s406 = sand.u32 %s52, 1
        %s407 = sand.u32 %s52, 1
        %s408 = smul.addr %s407, 64
        %s409 = scalar_lea.vmem [#allocation5], %s408
        // Predicated region
        $region135: #{wan_self_attention_forward.4} parent=133 // pred_check
          %p410 = pneg %p65
        $region136: #{wan_self_attention_forward.4} parent=133 // pred_check_branch
          %412 = sbr.rel (%p410) target = $region138
        $region137: #{wan_self_attention_forward.4} parent=133 // pred_region
          _
        $region138: #{wan_self_attention_forward.4} parent=133 // pred_fallthru
          _
        %s413 = sand.u32 %s82, 1
        %s414 = sand.u32 %s82, 1
        %s415 = smul.addr %s414, 64
        %s416 = scalar_lea.vmem [#allocation6], %s415
        // Predicated region
        $region139: #{wan_self_attention_forward.4} parent=133 // pred_check
          %p417 = pneg %p95
        $region140: #{wan_self_attention_forward.4} parent=133 // pred_check_branch
          %419 = sbr.rel (%p417) target = $region142
        $region141: #{wan_self_attention_forward.4} parent=133 // pred_region
          _
        $region142: #{wan_self_attention_forward.4} parent=133 // pred_fallthru
          _
        %s420 = sand.u32 %s112, 1
        %s421 = sand.u32 %s112, 1
        %s422 = smul.addr %s421, 64
        %s423 = scalar_lea.vmem [#allocation7], %s422
        // Predicated region
        $region143: #{wan_self_attention_forward.4} parent=133 // pred_check
          %p424 = pneg %p125
        $region144: #{wan_self_attention_forward.4} parent=133 // pred_check_branch
          %426 = sbr.rel (%p424) target = $region146
        $region145: #{wan_self_attention_forward.4} parent=133 // pred_region
          _
        $region146: #{wan_self_attention_forward.4} parent=133 // pred_fallthru
          _
        %s427 = sand.u32 %s52, 1
        %s428 = sand.u32 %s52, 1
        %s429 = smul.addr %s428, 64
        %s430 = scalar_lea.vmem [#allocation5], %s429
        %p431 = pneg %p65
        %p432 = pneg %p62
        %s433 = sand.u32 %s82, 1
        %s434 = sand.u32 %s82, 1
        %s435 = smul.addr %s434, 64
        %s436 = scalar_lea.vmem [#allocation6], %s435
        %p437 = pneg %p95
        %p438 = pneg %p92
        %s439 = sand.u32 %s112, 1
        %s440 = sand.u32 %s112, 1
        %s441 = smul.addr %s440, 64
        %s442 = scalar_lea.vmem [#allocation7], %s441
        %p443 = pneg %p125
        %p444 = pneg %p122
        %p445 = pneg %p155
        %p446 = pneg %p152
        %s447 = sand.u32 %s142, 1
        %s448 = sand.u32 %s142, 1
        %s449 = smul.addr %s448, 64
        %s450 = scalar_lea.vmem [#allocation8], %s449
        %s451 = smul.u32 8, %s22
        %s452 = smul.u32 8, %s23
        %s453 = smul.u32 8, %s23
        %s454 = smul.u32 8, %s22
        %p455 = scmp.eq.s32.totalorder %s23, 0
        // Predicated region
        $region147: #{wan_self_attention_forward.4} parent=133 // pred_check
          %p456 = pneg %p455
        $region148: #{wan_self_attention_forward.4} parent=133 // pred_check_branch
          %458 = sbr.rel (%p456) target = $region150
        $region149: #{wan_self_attention_forward.4} parent=133 // pred_region
          %vm459 = vcmask 7168
          %460 = vst.msk [vmem:[#allocation2] sm:$0xff] %vm459, -inf
          %461 = vst.msk [vmem:[#allocation2 + $0x8] sm:$0xff] %vm459, -inf
          %462 = vst.msk [vmem:[#allocation2 + $0x10] sm:$0xff] %vm459, -inf
          %463 = vst.msk [vmem:[#allocation2 + $0x18] sm:$0xff] %vm459, -inf
          %464 = vst.msk [vmem:[#allocation2 + $0x20] sm:$0xff] %vm459, -inf
          %465 = vst.msk [vmem:[#allocation2 + $0x28] sm:$0xff] %vm459, -inf
          %466 = vst.msk [vmem:[#allocation2 + $0x30] sm:$0xff] %vm459, -inf
          %467 = vst.msk [vmem:[#allocation2 + $0x38] sm:$0xff] %vm459, -inf
          %468 = vst.msk [vmem:[#allocation3] sm:$0xff] %vm459, 0.0
          %469 = vst.msk [vmem:[#allocation3 + $0x8] sm:$0xff] %vm459, 0.0
          %470 = vst.msk [vmem:[#allocation3 + $0x10] sm:$0xff] %vm459, 0.0
          %471 = vst.msk [vmem:[#allocation3 + $0x18] sm:$0xff] %vm459, 0.0
          %472 = vst.msk [vmem:[#allocation3 + $0x20] sm:$0xff] %vm459, 0.0
          %473 = vst.msk [vmem:[#allocation3 + $0x28] sm:$0xff] %vm459, 0.0
          %474 = vst.msk [vmem:[#allocation3 + $0x30] sm:$0xff] %vm459, 0.0
          %475 = vst.msk [vmem:[#allocation3 + $0x38] sm:$0xff] %vm459, 0.0
          %476 = vst [vmem:[#allocation4] sm:$0xff] 0.0
          %477 = vst [vmem:[#allocation4 + $0x8] sm:$0xff] 0.0
          %478 = vst [vmem:[#allocation4 + $0x10] sm:$0xff] 0.0
          %479 = vst [vmem:[#allocation4 + $0x18] sm:$0xff] 0.0
          %480 = vst [vmem:[#allocation4 + $0x20] sm:$0xff] 0.0
          %481 = vst [vmem:[#allocation4 + $0x28] sm:$0xff] 0.0
          %482 = vst [vmem:[#allocation4 + $0x30] sm:$0xff] 0.0
          %483 = vst [vmem:[#allocation4 + $0x38] sm:$0xff] 0.0
        $region150: #{wan_self_attention_forward.4} parent=133 // pred_fallthru
          _
        %v484 = vld [vmem:[%s409] sm:$0xff]
        %v485 = vld [vmem:[%s409 + $0x8] sm:$0xff]
        %v486 = vld [vmem:[%s409 + $0x10] sm:$0xff]
        %v487 = vld [vmem:[%s409 + $0x18] sm:$0xff]
        %v488 = vld [vmem:[%s409 + $0x20] sm:$0xff]
        %v489 = vld [vmem:[%s409 + $0x28] sm:$0xff]
        %v490 = vld [vmem:[%s409 + $0x30] sm:$0xff]
        %v491 = vld [vmem:[%s409 + $0x38] sm:$0xff]
        %v492 = vld [vmem:[%s416] sm:$0xff]
        %v493 = vld [vmem:[%s416 + $0x8] sm:$0xff]
        %v494 = vld [vmem:[%s416 + $0x10] sm:$0xff]
        %v495 = vld [vmem:[%s416 + $0x18] sm:$0xff]
        %v496 = vld [vmem:[%s416 + $0x20] sm:$0xff]
        %v497 = vld [vmem:[%s416 + $0x28] sm:$0xff]
        %v498 = vld [vmem:[%s416 + $0x30] sm:$0xff]
        %v499 = vld [vmem:[%s416 + $0x38] sm:$0xff]
        %500 = vmatpush.xpose.msra.mxu0 0.0
        %501 = vmatpush.xpose.msra.mxu0 0.0
        %502 = vmatpush.xpose.msra.mxu0 0.0
        %503 = vmatpush.xpose.msra.mxu0 0.0
        %504 = vmatpush.xpose.msra.mxu0 0.0
        %505 = vmatpush.xpose.msra.mxu0 0.0
        %506 = vmatpush.xpose.msra.mxu0 0.0
        %507 = vmatpush.xpose.msra.mxu0 0.0
        %508 = vmatpush.xpose.msra.mxu0 %v499
        %509 = vmatpush.xpose.msra.mxu0 %v498
        %510 = vmatpush.xpose.msra.mxu0 %v497
        %511 = vmatpush.xpose.msra.mxu0 %v496
        %512 = vmatpush.xpose.msra.mxu0 %v495
        %513 = vmatpush.xpose.msra.mxu0 %v494
        %514 = vmatpush.xpose.msra.mxu0 %v493
        %515 = vmatpush.xpose.msra.mxu0 %v492
        %516 = vmatmul.f32.gmra.mxu0 %v484
        %v517 = vpop.f32.mrf.mxu0
        %v518 = vadd.f32 0.0, %v517
        %519 = vmatmul.f32.gmra.mxu0 %v485
        %v520 = vpop.f32.mrf.mxu0
        %v521 = vadd.f32 0.0, %v520
        %522 = vmatmul.f32.gmra.mxu0 %v486
        %v523 = vpop.f32.mrf.mxu0
        %v524 = vadd.f32 0.0, %v523
        %525 = vmatmul.f32.gmra.mxu0 %v487
        %v526 = vpop.f32.mrf.mxu0
        %v527 = vadd.f32 0.0, %v526
        %528 = vmatmul.f32.gmra.mxu0 %v488
        %v529 = vpop.f32.mrf.mxu0
        %v530 = vadd.f32 0.0, %v529
        %531 = vmatmul.f32.gmra.mxu0 %v489
        %v532 = vpop.f32.mrf.mxu0
        %v533 = vadd.f32 0.0, %v532
        %534 = vmatmul.f32.gmra.mxu0 %v490
        %v535 = vpop.f32.mrf.mxu0
        %v536 = vadd.f32 0.0, %v535
        %537 = vmatmul.f32.gmra.mxu0 %v491
        %v538 = vpop.f32.mrf.mxu0
        %v539 = vadd.f32 0.0, %v538
        %540 = vdwg.mxu0
        %v541 = vld [vmem:[#allocation2] sm:$0xff]
        %v542 = vld [vmem:[#allocation2 + $0x8] sm:$0xff]
        %v543 = vld [vmem:[#allocation2 + $0x10] sm:$0xff]
        %v544 = vld [vmem:[#allocation2 + $0x18] sm:$0xff]
        %v545 = vld [vmem:[#allocation2 + $0x20] sm:$0xff]
        %v546 = vld [vmem:[#allocation2 + $0x28] sm:$0xff]
        %v547 = vld [vmem:[#allocation2 + $0x30] sm:$0xff]
        %v548 = vld [vmem:[#allocation2 + $0x38] sm:$0xff]
        %vm549 = vcmask 523264
        %v550 = vsel %vm549, %v518, -inf
        %551 = vmax.xlane.f32.xlu0 %v550
        %v552 = vpop.xlane.xlu0 %551
        %v553 = vsel %vm549, %v521, -inf
        %554 = vmax.xlane.f32.xlu0 %v553
        %v555 = vpop.xlane.xlu0 %554
        %v556 = vsel %vm549, %v524, -inf
        %557 = vmax.xlane.f32.xlu0 %v556
        %v558 = vpop.xlane.xlu0 %557
        %v559 = vsel %vm549, %v527, -inf
        %560 = vmax.xlane.f32.xlu0 %v559
        %v561 = vpop.xlane.xlu0 %560
        %v562 = vsel %vm549, %v530, -inf
        %563 = vmax.xlane.f32.xlu0 %v562
        %v564 = vpop.xlane.xlu0 %563
        %v565 = vsel %vm549, %v533, -inf
        %566 = vmax.xlane.f32.xlu0 %v565
        %v567 = vpop.xlane.xlu0 %566
        %v568 = vsel %vm549, %v536, -inf
        %569 = vmax.xlane.f32.xlu0 %v568
        %v570 = vpop.xlane.xlu0 %569
        %v571 = vsel %vm549, %v539, -inf
        %572 = vmax.xlane.f32.xlu0 %v571
        %v573 = vpop.xlane.xlu0 %572
        %v574 = vmax.f32 %v541, %v552
        %v575 = vmax.f32 %v542, %v555
        %v576 = vmax.f32 %v543, %v558
        %v577 = vmax.f32 %v544, %v561
        %v578 = vmax.f32 %v545, %v564
        %v579 = vmax.f32 %v546, %v567
        %v580 = vmax.f32 %v547, %v570
        %v581 = vmax.f32 %v548, %v573
        %v582 = vsub.f32 %v541, %v574
        %v583 = vsub.f32 %v542, %v575
        %v584 = vsub.f32 %v543, %v576
        %v585 = vsub.f32 %v544, %v577
        %v586 = vsub.f32 %v545, %v578
        %v587 = vsub.f32 %v546, %v579
        %v588 = vsub.f32 %v547, %v580
        %v589 = vsub.f32 %v548, %v581
        %v590 = vmul.f32 %v582, 1.442695
        %v591 = vpow.pop %v590
        %v592 = vmul.f32 %v583, 1.442695
        %v593 = vpow.pop %v592
        %v594 = vmul.f32 %v584, 1.442695
        %v595 = vpow.pop %v594
        %v596 = vmul.f32 %v585, 1.442695
        %v597 = vpow.pop %v596
        %v598 = vmul.f32 %v586, 1.442695
        %v599 = vpow.pop %v598
        %v600 = vmul.f32 %v587, 1.442695
        %v601 = vpow.pop %v600
        %v602 = vmul.f32 %v588, 1.442695
        %v603 = vpow.pop %v602
        %v604 = vmul.f32 %v589, 1.442695
        %v605 = vpow.pop %v604
        %607 = vset.pattern.permute.xlu0 0
        %608 = vperm.xlu0 %607, %v574
        %v609 = vpop.permute.xlu0 %608
        %612 = vset.pattern.permute.xlu0 0
        %613 = vperm.xlu0 %612, %v575
        %v614 = vpop.permute.xlu0 %613
        %617 = vset.pattern.permute.xlu0 0
        %618 = vperm.xlu0 %617, %v576
        %v619 = vpop.permute.xlu0 %618
        %622 = vset.pattern.permute.xlu0 0
        %623 = vperm.xlu0 %622, %v577
        %v624 = vpop.permute.xlu0 %623
        %627 = vset.pattern.permute.xlu0 0
        %628 = vperm.xlu0 %627, %v578
        %v629 = vpop.permute.xlu0 %628
        %632 = vset.pattern.permute.xlu0 0
        %633 = vperm.xlu0 %632, %v579
        %v634 = vpop.permute.xlu0 %633
        %637 = vset.pattern.permute.xlu0 0
        %638 = vperm.xlu0 %637, %v580
        %v639 = vpop.permute.xlu0 %638
        %642 = vset.pattern.permute.xlu0 0
        %643 = vperm.xlu0 %642, %v581
        %v644 = vpop.permute.xlu0 %643
        %v646 = vsub.f32 %v518, %v609
        %v647 = vsub.f32 %v521, %v614
        %v648 = vsub.f32 %v524, %v619
        %v649 = vsub.f32 %v527, %v624
        %v650 = vsub.f32 %v530, %v629
        %v651 = vsub.f32 %v533, %v634
        %v652 = vsub.f32 %v536, %v639
        %v653 = vsub.f32 %v539, %v644
        %v654 = vmul.f32 %v646, 1.442695
        %v655 = vpow.pop %v654
        %v656 = vmul.f32 %v647, 1.442695
        %v657 = vpow.pop %v656
        %v658 = vmul.f32 %v648, 1.442695
        %v659 = vpow.pop %v658
        %v660 = vmul.f32 %v649, 1.442695
        %v661 = vpow.pop %v660
        %v662 = vmul.f32 %v650, 1.442695
        %v663 = vpow.pop %v662
        %v664 = vmul.f32 %v651, 1.442695
        %v665 = vpow.pop %v664
        %v666 = vmul.f32 %v652, 1.442695
        %v667 = vpow.pop %v666
        %v668 = vmul.f32 %v653, 1.442695
        %v669 = vpow.pop %v668
        %v670 = vld [vmem:[#allocation3] sm:$0xff]
        %v671 = vld [vmem:[#allocation3 + $0x8] sm:$0xff]
        %v672 = vld [vmem:[#allocation3 + $0x10] sm:$0xff]
        %v673 = vld [vmem:[#allocation3 + $0x18] sm:$0xff]
        %v674 = vld [vmem:[#allocation3 + $0x20] sm:$0xff]
        %v675 = vld [vmem:[#allocation3 + $0x28] sm:$0xff]
        %v676 = vld [vmem:[#allocation3 + $0x30] sm:$0xff]
        %v677 = vld [vmem:[#allocation3 + $0x38] sm:$0xff]
        %v678 = vmul.f32 %v591, %v670
        %v679 = vmul.f32 %v593, %v671
        %v680 = vmul.f32 %v595, %v672
        %v681 = vmul.f32 %v597, %v673
        %v682 = vmul.f32 %v599, %v674
        %v683 = vmul.f32 %v601, %v675
        %v684 = vmul.f32 %v603, %v676
        %v685 = vmul.f32 %v605, %v677
        %v686 = vsel %vm549, %v655, 0.0
        %687 = vadd.xlane.f32.xlu0 %v686
        %v688 = vpop.xlane.xlu0 %687
        %v689 = vsel %vm549, %v657, 0.0
        %690 = vadd.xlane.f32.xlu0 %v689
        %v691 = vpop.xlane.xlu0 %690
        %v692 = vsel %vm549, %v659, 0.0
        %693 = vadd.xlane.f32.xlu0 %v692
        %v694 = vpop.xlane.xlu0 %693
        %v695 = vsel %vm549, %v661, 0.0
        %696 = vadd.xlane.f32.xlu0 %v695
        %v697 = vpop.xlane.xlu0 %696
        %v698 = vsel %vm549, %v663, 0.0
        %699 = vadd.xlane.f32.xlu0 %v698
        %v700 = vpop.xlane.xlu0 %699
        %v701 = vsel %vm549, %v665, 0.0
        %702 = vadd.xlane.f32.xlu0 %v701
        %v703 = vpop.xlane.xlu0 %702
        %v704 = vsel %vm549, %v667, 0.0
        %705 = vadd.xlane.f32.xlu0 %v704
        %v706 = vpop.xlane.xlu0 %705
        %v707 = vsel %vm549, %v669, 0.0
        %708 = vadd.xlane.f32.xlu0 %v707
        %v709 = vpop.xlane.xlu0 %708
        %v710 = vadd.f32 %v678, %v688
        %v711 = vadd.f32 %v679, %v691
        %v712 = vadd.f32 %v680, %v694
        %v713 = vadd.f32 %v681, %v697
        %v714 = vadd.f32 %v682, %v700
        %v715 = vadd.f32 %v683, %v703
        %v716 = vadd.f32 %v684, %v706
        %v717 = vadd.f32 %v685, %v709
        %vm718 = vcmask 7168
        %719 = vst.msk [vmem:[#allocation3] sm:$0xff] %vm718, %v710
        %720 = vst.msk [vmem:[#allocation3 + $0x8] sm:$0xff] %vm718, %v711
        %721 = vst.msk [vmem:[#allocation3 + $0x10] sm:$0xff] %vm718, %v712
        %722 = vst.msk [vmem:[#allocation3 + $0x18] sm:$0xff] %vm718, %v713
        %723 = vst.msk [vmem:[#allocation3 + $0x20] sm:$0xff] %vm718, %v714
        %724 = vst.msk [vmem:[#allocation3 + $0x28] sm:$0xff] %vm718, %v715
        %725 = vst.msk [vmem:[#allocation3 + $0x30] sm:$0xff] %vm718, %v716
        %726 = vst.msk [vmem:[#allocation3 + $0x38] sm:$0xff] %vm718, %v717
        %v727 = vld [vmem:[%s423] sm:$0xff]
        %v728 = vld [vmem:[%s423 + $0x8] sm:$0xff]
        %v729 = vld [vmem:[%s423 + $0x10] sm:$0xff]
        %v730 = vld [vmem:[%s423 + $0x18] sm:$0xff]
        %v731 = vld [vmem:[%s423 + $0x20] sm:$0xff]
        %v732 = vld [vmem:[%s423 + $0x28] sm:$0xff]
        %v733 = vld [vmem:[%s423 + $0x30] sm:$0xff]
        %v734 = vld [vmem:[%s423 + $0x38] sm:$0xff]
        %v736 = vsel %vm549, %v655, 0
        %v739 = vsel %vm549, %v657, 0
        %v742 = vsel %vm549, %v659, 0
        %v745 = vsel %vm549, %v661, 0
        %v748 = vsel %vm549, %v663, 0
        %v751 = vsel %vm549, %v665, 0
        %v754 = vsel %vm549, %v667, 0
        %v757 = vsel %vm549, %v669, 0
        %759 = vmatpush.msra.mxu0 0.0
        %760 = vmatpush.msra.mxu0 0.0
        %761 = vmatpush.msra.mxu0 0.0
        %762 = vmatpush.msra.mxu0 0.0
        %763 = vmatpush.msra.mxu0 0.0
        %764 = vmatpush.msra.mxu0 0.0
        %765 = vmatpush.msra.mxu0 0.0
        %766 = vmatpush.msra.mxu0 0.0
        %767 = vmatpush.msra.mxu0 %v734
        %768 = vmatpush.msra.mxu0 %v733
        %769 = vmatpush.msra.mxu0 %v732
        %770 = vmatpush.msra.mxu0 %v731
        %771 = vmatpush.msra.mxu0 %v730
        %772 = vmatpush.msra.mxu0 %v729
        %773 = vmatpush.msra.mxu0 %v728
        %774 = vmatpush.msra.mxu0 %v727
        %775 = vmatmul.f32.gmra.mxu0 %v736
        %v776 = vpop.f32.mrf.mxu0
        %v777 = vadd.f32 0.0, %v776
        %778 = vmatmul.f32.gmra.mxu0 %v739
        %v779 = vpop.f32.mrf.mxu0
        %v780 = vadd.f32 0.0, %v779
        %781 = vmatmul.f32.gmra.mxu0 %v742
        %v782 = vpop.f32.mrf.mxu0
        %v783 = vadd.f32 0.0, %v782
        %784 = vmatmul.f32.gmra.mxu0 %v745
        %v785 = vpop.f32.mrf.mxu0
        %v786 = vadd.f32 0.0, %v785
        %787 = vmatmul.f32.gmra.mxu0 %v748
        %v788 = vpop.f32.mrf.mxu0
        %v789 = vadd.f32 0.0, %v788
        %790 = vmatmul.f32.gmra.mxu0 %v751
        %v791 = vpop.f32.mrf.mxu0
        %v792 = vadd.f32 0.0, %v791
        %793 = vmatmul.f32.gmra.mxu0 %v754
        %v794 = vpop.f32.mrf.mxu0
        %v795 = vadd.f32 0.0, %v794
        %796 = vmatmul.f32.gmra.mxu0 %v757
        %v797 = vpop.f32.mrf.mxu0
        %v798 = vadd.f32 0.0, %v797
        %799 = vdwg.mxu0
        %v800 = vld [vmem:[#allocation4] sm:$0xff]
        %v801 = vld [vmem:[#allocation4 + $0x8] sm:$0xff]
        %v802 = vld [vmem:[#allocation4 + $0x10] sm:$0xff]
        %v803 = vld [vmem:[#allocation4 + $0x18] sm:$0xff]
        %v804 = vld [vmem:[#allocation4 + $0x20] sm:$0xff]
        %v805 = vld [vmem:[#allocation4 + $0x28] sm:$0xff]
        %v806 = vld [vmem:[#allocation4 + $0x30] sm:$0xff]
        %v807 = vld [vmem:[#allocation4 + $0x38] sm:$0xff]
        %809 = vset.pattern.permute.xlu0 0
        %810 = vperm.xlu0 %809, %v591
        %v811 = vpop.permute.xlu0 %810
        %814 = vset.pattern.permute.xlu0 0
        %815 = vperm.xlu0 %814, %v593
        %v816 = vpop.permute.xlu0 %815
        %819 = vset.pattern.permute.xlu0 0
        %820 = vperm.xlu0 %819, %v595
        %v821 = vpop.permute.xlu0 %820
        %824 = vset.pattern.permute.xlu0 0
        %825 = vperm.xlu0 %824, %v597
        %v826 = vpop.permute.xlu0 %825
        %829 = vset.pattern.permute.xlu0 0
        %830 = vperm.xlu0 %829, %v599
        %v831 = vpop.permute.xlu0 %830
        %834 = vset.pattern.permute.xlu0 0
        %835 = vperm.xlu0 %834, %v601
        %v836 = vpop.permute.xlu0 %835
        %839 = vset.pattern.permute.xlu0 0
        %840 = vperm.xlu0 %839, %v603
        %v841 = vpop.permute.xlu0 %840
        %844 = vset.pattern.permute.xlu0 0
        %845 = vperm.xlu0 %844, %v605
        %v846 = vpop.permute.xlu0 %845
        %v848 = vmul.f32 %v811, %v800
        %v849 = vmul.f32 %v816, %v801
        %v850 = vmul.f32 %v821, %v802
        %v851 = vmul.f32 %v826, %v803
        %v852 = vmul.f32 %v831, %v804
        %v853 = vmul.f32 %v836, %v805
        %v854 = vmul.f32 %v841, %v806
        %v855 = vmul.f32 %v846, %v807
        %v856 = vadd.f32 %v848, %v777
        %v857 = vadd.f32 %v849, %v780
        %v858 = vadd.f32 %v850, %v783
        %v859 = vadd.f32 %v851, %v786
        %v860 = vadd.f32 %v852, %v789
        %v861 = vadd.f32 %v853, %v792
        %v862 = vadd.f32 %v854, %v795
        %v863 = vadd.f32 %v855, %v798
        %864 = vst [vmem:[#allocation4] sm:$0xff] %v856
        %865 = vst [vmem:[#allocation4 + $0x8] sm:$0xff] %v857
        %866 = vst [vmem:[#allocation4 + $0x10] sm:$0xff] %v858
        %867 = vst [vmem:[#allocation4 + $0x18] sm:$0xff] %v859
        %868 = vst [vmem:[#allocation4 + $0x20] sm:$0xff] %v860
        %869 = vst [vmem:[#allocation4 + $0x28] sm:$0xff] %v861
        %870 = vst [vmem:[#allocation4 + $0x30] sm:$0xff] %v862
        %871 = vst [vmem:[#allocation4 + $0x38] sm:$0xff] %v863
        %872 = vst.msk [vmem:[#allocation2] sm:$0xff] %vm718, %v574
        %873 = vst.msk [vmem:[#allocation2 + $0x8] sm:$0xff] %vm718, %v575
        %874 = vst.msk [vmem:[#allocation2 + $0x10] sm:$0xff] %vm718, %v576
        %875 = vst.msk [vmem:[#allocation2 + $0x18] sm:$0xff] %vm718, %v577
        %876 = vst.msk [vmem:[#allocation2 + $0x20] sm:$0xff] %vm718, %v578
        %877 = vst.msk [vmem:[#allocation2 + $0x28] sm:$0xff] %vm718, %v579
        %878 = vst.msk [vmem:[#allocation2 + $0x30] sm:$0xff] %vm718, %v580
        %879 = vst.msk [vmem:[#allocation2 + $0x38] sm:$0xff] %vm718, %v581
        // Predicated region
        $region151: #{wan_self_attention_forward.4} parent=133 // pred_check
          %p880 = pneg %p455
        $region152: #{wan_self_attention_forward.4} parent=133 // pred_check_branch
          %882 = sbr.rel (%p880) target = $region154
        $region153: #{wan_self_attention_forward.4} parent=133 // pred_region
          %v883 = vld [vmem:[#allocation3] sm:$0xff]
          %v884 = vld [vmem:[#allocation3 + $0x8] sm:$0xff]
          %v885 = vld [vmem:[#allocation3 + $0x10] sm:$0xff]
          %v886 = vld [vmem:[#allocation3 + $0x18] sm:$0xff]
          %v887 = vld [vmem:[#allocation3 + $0x20] sm:$0xff]
          %v888 = vld [vmem:[#allocation3 + $0x28] sm:$0xff]
          %v889 = vld [vmem:[#allocation3 + $0x30] sm:$0xff]
          %v890 = vld [vmem:[#allocation3 + $0x38] sm:$0xff]
          %v891 = vrcp.pop %v883
          %v892 = vrcp.pop %v884
          %v893 = vrcp.pop %v885
          %v894 = vrcp.pop %v886
          %v895 = vrcp.pop %v887
          %v896 = vrcp.pop %v888
          %v897 = vrcp.pop %v889
          %v898 = vrcp.pop %v890
          %v899 = vmul.f32 %v883, %v891
          %v900 = vmul.f32 %v884, %v892
          %v901 = vmul.f32 %v885, %v893
          %v902 = vmul.f32 %v886, %v894
          %v903 = vmul.f32 %v887, %v895
          %v904 = vmul.f32 %v888, %v896
          %v905 = vmul.f32 %v889, %v897
          %v906 = vmul.f32 %v890, %v898
          %v907 = vsub.f32 2.0, %v899
          %v908 = vsub.f32 2.0, %v900
          %v909 = vsub.f32 2.0, %v901
          %v910 = vsub.f32 2.0, %v902
          %v911 = vsub.f32 2.0, %v903
          %v912 = vsub.f32 2.0, %v904
          %v913 = vsub.f32 2.0, %v905
          %v914 = vsub.f32 2.0, %v906
          %v915 = vmul.f32 %v891, %v907
          %v916 = vmul.f32 %v892, %v908
          %v917 = vmul.f32 %v893, %v909
          %v918 = vmul.f32 %v894, %v910
          %v919 = vmul.f32 %v895, %v911
          %v920 = vmul.f32 %v896, %v912
          %v921 = vmul.f32 %v897, %v913
          %v922 = vmul.f32 %v898, %v914
          %v923 = vld [vmem:[#allocation4] sm:$0xff]
          %v924 = vld [vmem:[#allocation4 + $0x8] sm:$0xff]
          %v925 = vld [vmem:[#allocation4 + $0x10] sm:$0xff]
          %v926 = vld [vmem:[#allocation4 + $0x18] sm:$0xff]
          %v927 = vld [vmem:[#allocation4 + $0x20] sm:$0xff]
          %v928 = vld [vmem:[#allocation4 + $0x28] sm:$0xff]
          %v929 = vld [vmem:[#allocation4 + $0x30] sm:$0xff]
          %v930 = vld [vmem:[#allocation4 + $0x38] sm:$0xff]
          %932 = vset.pattern.permute.xlu0 0
          %933 = vperm.xlu0 %932, %v915
          %v934 = vpop.permute.xlu0 %933
          %937 = vset.pattern.permute.xlu0 0
          %938 = vperm.xlu0 %937, %v916
          %v939 = vpop.permute.xlu0 %938
          %942 = vset.pattern.permute.xlu0 0
          %943 = vperm.xlu0 %942, %v917
          %v944 = vpop.permute.xlu0 %943
          %947 = vset.pattern.permute.xlu0 0
          %948 = vperm.xlu0 %947, %v918
          %v949 = vpop.permute.xlu0 %948
          %952 = vset.pattern.permute.xlu0 0
          %953 = vperm.xlu0 %952, %v919
          %v954 = vpop.permute.xlu0 %953
          %957 = vset.pattern.permute.xlu0 0
          %958 = vperm.xlu0 %957, %v920
          %v959 = vpop.permute.xlu0 %958
          %962 = vset.pattern.permute.xlu0 0
          %963 = vperm.xlu0 %962, %v921
          %v964 = vpop.permute.xlu0 %963
          %967 = vset.pattern.permute.xlu0 0
          %968 = vperm.xlu0 %967, %v922
          %v969 = vpop.permute.xlu0 %968
          %v971 = vmul.f32 %v923, %v934
          %v972 = vmul.f32 %v924, %v939
          %v973 = vmul.f32 %v925, %v944
          %v974 = vmul.f32 %v926, %v949
          %v975 = vmul.f32 %v927, %v954
          %v976 = vmul.f32 %v928, %v959
          %v977 = vmul.f32 %v929, %v964
          %v978 = vmul.f32 %v930, %v969
          %979 = vst [vmem:[%s450] sm:$0xff] %v971
          %980 = vst [vmem:[%s450 + $0x8] sm:$0xff] %v972
          %981 = vst [vmem:[%s450 + $0x10] sm:$0xff] %v973
          %982 = vst [vmem:[%s450 + $0x18] sm:$0xff] %v974
          %983 = vst [vmem:[%s450 + $0x20] sm:$0xff] %v975
          %984 = vst [vmem:[%s450 + $0x28] sm:$0xff] %v976
          %985 = vst [vmem:[%s450 + $0x30] sm:$0xff] %v977
          %986 = vst [vmem:[%s450 + $0x38] sm:$0xff] %v978
        $region154: #{wan_self_attention_forward.4} parent=133 // pred_fallthru
          _
        %s987 = sand.u32 %s142, 1
        %s988 = sand.u32 %s142, 1
        %s989 = smul.addr %s988, 64
        %s990 = scalar_lea.vmem [#allocation8], %s989
        // Predicated region
        $region155: #{wan_self_attention_forward.4} parent=133 // pred_check
          %p991 = pneg %p152
        $region156: #{wan_self_attention_forward.4} parent=133 // pred_check_branch
          %993 = sbr.rel (%p991) target = $region158
        $region157: #{wan_self_attention_forward.4} parent=133 // pred_region
          %s994 = smul.u32 8, %s22
          %s995 = smul.addr %s994, 2
          %s996 = sadd.s32 %s21, %s995
          %s997 = smul.addr %s20, 16
          %s998 = sadd.s32 %s996, %s997
          %s999 = smul.addr %s998, 8
          %s1000 = scalar_lea.vmem %s3, %s999
          // Predicated region
          $region159: #{wan_self_attention_forward.4} parent=157 // pred_check
            _
          $region160: #{wan_self_attention_forward.4} parent=157 // pred_check_branch
            %1002 = sbr.rel (0) target = $region162
          $region161: #{wan_self_attention_forward.4} parent=157 // pred_region
            // Predicated region
            $region163: #{wan_self_attention_forward.4} parent=161 // pred_check
              _
            $region164: #{wan_self_attention_forward.4} parent=161 // pred_check_branch
              %1004 = sbr.rel (0) target = $region166
            $region165: #{wan_self_attention_forward.4} parent=161 // pred_region
              // Predicated region
              $region178: #{wan_self_attention_forward.4} parent=165 // pred_check
                _
              $region179: #{wan_self_attention_forward.4} parent=165 // pred_check_branch
                %1034 = sbr.rel (0) target = $region181
              $region180: #{wan_self_attention_forward.4} parent=165 // pred_region
                loop: start=0, step=1, limit=1
                $region182: #{wan_self_attention_forward.4} parent=180 // loop_pre_header
                  _
                $region183: #{wan_self_attention_forward.4} parent=180 // loop_header
                  %s1036 = sphi 0, %s1040
                  %p1037 = scmp.ge.s32.totalorder %s1036, 1
                  %s1041 = sphi %s990, %s990
                  %s1042 = sphi %s1000, %s1000
                $region184: #{wan_self_attention_forward.4} parent=180 // loop_header_branch
                  %1039 = sbr.rel (%p1037) target = $region188
                $region185: #{wan_self_attention_forward.4} parent=180 // loop_body
                  %v1043 = vld [vmem:[%s1041] sm:$0xff]
                  %1044 = vst [vmem:[%s1042] sm:$0xff] %v1043
                  %v1045 = vld [vmem:[%s1041 + $0x8] sm:$0xff]
                  %1046 = vst [vmem:[%s1042 + $0x10] sm:$0xff] %v1045
                  %v1047 = vld [vmem:[%s1041 + $0x10] sm:$0xff]
                  %1048 = vst [vmem:[%s1042 + $0x20] sm:$0xff] %v1047
                  %v1049 = vld [vmem:[%s1041 + $0x18] sm:$0xff]
                  %1050 = vst [vmem:[%s1042 + $0x30] sm:$0xff] %v1049
                  %v1051 = vld [vmem:[%s1041 + $0x20] sm:$0xff]
                  %1052 = vst [vmem:[%s1042 + $0x40] sm:$0xff] %v1051
                  %v1053 = vld [vmem:[%s1041 + $0x28] sm:$0xff]
                  %1054 = vst [vmem:[%s1042 + $0x50] sm:$0xff] %v1053
                  %v1055 = vld [vmem:[%s1041 + $0x30] sm:$0xff]
                  %1056 = vst [vmem:[%s1042 + $0x60] sm:$0xff] %v1055
                  %v1057 = vld [vmem:[%s1041 + $0x38] sm:$0xff]
                  %1058 = vst [vmem:[%s1042 + $0x70] sm:$0xff] %v1057
                $region186: #{wan_self_attention_forward.4} parent=180 // loop_footer
                  %s1040 = sadd.s32 1, %s1036
                $region187: #{wan_self_attention_forward.4} parent=180 // loop_footer_branch
                  %1035 = sbr.rel target = $region183
                $region188: #{wan_self_attention_forward.4} parent=180 // loop_exit
                  _
              $region181: #{wan_self_attention_forward.4} parent=165 // pred_fallthru
                _
              // Predicated region
              $region189: #{wan_self_attention_forward.4} parent=165 // pred_check
                _
              $region190: #{wan_self_attention_forward.4} parent=165 // pred_check_branch
                %1060 = sbr.rel target = $region192
              $region191: #{wan_self_attention_forward.4} parent=165 // pred_region
                _
              $region192: #{wan_self_attention_forward.4} parent=165 // pred_fallthru
                _
            $region166: #{wan_self_attention_forward.4} parent=161 // pred_fallthru
              _
            // Predicated region
            $region167: #{wan_self_attention_forward.4} parent=161 // pred_check
              _
            $region168: #{wan_self_attention_forward.4} parent=161 // pred_check_branch
              %1006 = sbr.rel target = $region170
            $region169: #{wan_self_attention_forward.4} parent=161 // pred_region
              %s1008 = ssub.s32 256, 1
              loop: start=0, step=1, limit=1
              $region171: #{wan_self_attention_forward.4} parent=169 // loop_pre_header
                _
              $region172: #{wan_self_attention_forward.4} parent=169 // loop_header
                %s1010 = sphi 0, %s1014
                %p1011 = scmp.ge.s32.totalorder %s1010, 1
                %s1015 = sphi %s990, %s990
                %s1016 = sphi %s1000, %s1000
              $region173: #{wan_self_attention_forward.4} parent=169 // loop_header_branch
                %1013 = sbr.rel (%p1011) target = $region177
              $region174: #{wan_self_attention_forward.4} parent=169 // loop_body
                %v1017 = vld [vmem:[%s1015] sm:%s1008]
                %1018 = vst [vmem:[%s1016] sm:%s1008] %v1017
                %v1019 = vld [vmem:[%s1015 + $0x8] sm:%s1008]
                %1020 = vst [vmem:[%s1016 + $0x10] sm:%s1008] %v1019
                %v1021 = vld [vmem:[%s1015 + $0x10] sm:%s1008]
                %1022 = vst [vmem:[%s1016 + $0x20] sm:%s1008] %v1021
                %v1023 = vld [vmem:[%s1015 + $0x18] sm:%s1008]
                %1024 = vst [vmem:[%s1016 + $0x30] sm:%s1008] %v1023
                %v1025 = vld [vmem:[%s1015 + $0x20] sm:%s1008]
                %1026 = vst [vmem:[%s1016 + $0x40] sm:%s1008] %v1025
                %v1027 = vld [vmem:[%s1015 + $0x28] sm:%s1008]
                %1028 = vst [vmem:[%s1016 + $0x50] sm:%s1008] %v1027
                %v1029 = vld [vmem:[%s1015 + $0x30] sm:%s1008]
                %1030 = vst [vmem:[%s1016 + $0x60] sm:%s1008] %v1029
                %v1031 = vld [vmem:[%s1015 + $0x38] sm:%s1008]
                %1032 = vst [vmem:[%s1016 + $0x70] sm:%s1008] %v1031
              $region175: #{wan_self_attention_forward.4} parent=169 // loop_footer
                %s1014 = sadd.s32 1, %s1010
              $region176: #{wan_self_attention_forward.4} parent=169 // loop_footer_branch
                %1009 = sbr.rel target = $region172
              $region177: #{wan_self_attention_forward.4} parent=169 // loop_exit
                _
            $region170: #{wan_self_attention_forward.4} parent=161 // pred_fallthru
              _
          $region162: #{wan_self_attention_forward.4} parent=157 // pred_fallthru
            _
          %1061 = vnop
        $region158: #{wan_self_attention_forward.4} parent=133 // pred_fallthru
          _
      $region134: #{wan_self_attention_forward.4} parent=5 // pred_fallthru
        _
      %p1062 = scmp.le.s32.totalorder 2, %s9
      // Predicated region
      $region193: #{wan_self_attention_forward.4} parent=5 // pred_check
        %p1063 = pneg %p1062
      $region194: #{wan_self_attention_forward.4} parent=5 // pred_check_branch
        %1065 = sbr.rel (%p1063) target = $region196
      $region195: #{wan_self_attention_forward.4} parent=5 // pred_region
        %s1066 = ssub.s32 %s9, 2
        // Predicated region
        $region197: #{wan_self_attention_forward.4} parent=195 // pred_check
          %p1067 = pneg %p158
        $region198: #{wan_self_attention_forward.4} parent=195 // pred_check_branch
          %1069 = sbr.rel (%p1067) target = $region200
        $region199: #{wan_self_attention_forward.4} parent=195 // pred_region
          %s1070 = sand.u32 %s143, 1
          %s1071 = sand.u32 %s143, 1
          %s1072 = smul.addr %s1071, 64
          %s1073 = scalar_lea.vmem [#allocation8], %s1072
        $region200: #{wan_self_attention_forward.4} parent=195 // pred_fallthru
          _
      $region196: #{wan_self_attention_forward.4} parent=5 // pred_fallthru
        _
    $region6: #{wan_self_attention_forward.4} parent=1 // loop_footer
      %s13 = sadd.s32 1, %s9
    $region7: #{wan_self_attention_forward.4} parent=1 // loop_footer_branch
      %8 = sbr.rel target = $region3
    $region8: #{wan_self_attention_forward.4} parent=1 // loop_exit
      _

// kernel: wan_self_attention_forward.5
$region0: #{wan_self_attention_forward.5}
  #allocation0 [shape = 'u32[]', space=smem, size = 0x4, offset = 0x4, fixed_abs, tag = 'smem constant byte address 0x4 - core index']
  #allocation1 [shape = 'u32[72,128]{1,0:T(1,128)}', space=vmem, size = 0x9000, scoped, tag = 'internal scratch']
  #allocation2 [shape = 'f32[128,256]{1,0:T(8,128)}', space=vmem, size = 0x20000, scoped, tag = 'scratch operand']
  %s0 = inlined_call_operand.vmem [shape: f32[128,256], index: 0, kind: input, shape index: {}]
  %s1 = inlined_call_operand.hbm [shape: f32[256,256], index: 1, kind: input, shape index: {}]
  %s2 = inlined_call_operand.vmem [shape: f32[1,256], index: 2, kind: input, shape index: {}]
  %s3 = inlined_call_operand.hbm [shape: f32[128,256], index: 3, kind: output, shape index: {}]
  %s4 = sld [smem:[#allocation0]]
  $region34: #{wan_self_attention_forward.5} parent=0
    _
  %s6 = ssub.s32 1, %s4
  %s7 = scalar_select 0, %s6, %s4
  $region1: #{wan_self_attention_forward.5} parent=0
    #allocation3 [shape = 'u8[262144]{0}', space=vmem, size = 0x40000, scoped, tag = 'input window, operand 1, single buffered']
    #allocation4 [shape = 's32[1]{0}', space=sflag, size = 0x4, scoped, tag = 'scoped memory for wan_self_attention_forward.5']
    #allocation5 [shape = 's32[1]{0}', space=sflag, size = 0x4, scoped, tag = 'scoped memory for wan_self_attention_forward.5']
    #allocation6 [shape = 'u8[131072]{0}', space=vmem, size = 0x20000, scoped, tag = 'output window, operand 0, single buffered']
    %8 = vsyncpa [#allocation4], 0
    %9 = vsyncpa [#allocation5], 0
    // Predicated region
    $region2: #{wan_self_attention_forward.5} parent=1 // pred_check
      _
    $region3: #{wan_self_attention_forward.5} parent=1 // pred_check_branch
      %11 = sbr.rel (0) target = $region5
    $region4: #{wan_self_attention_forward.5} parent=1 // pred_region
      _
    $region5: #{wan_self_attention_forward.5} parent=1 // pred_fallthru
      _
    // Predicated region
    $region6: #{wan_self_attention_forward.5} parent=1 // pred_check
      _
    $region7: #{wan_self_attention_forward.5} parent=1 // pred_check_branch
      %13 = sbr.rel (0) target = $region9
    $region8: #{wan_self_attention_forward.5} parent=1 // pred_region
      %15 = vsyncadd [#allocation4], 0
      %s16 = sshll.u32 %s1, 4
      %s17 = int_to_ptr.hbm [resolvable:$true] %s16
      %s18 = sshll.u32 [#allocation3], 4
      %s19 = int_to_ptr.vmem [resolvable:$true] %s18
      %24 = dma.hbm_to_vmem [thread:$0]  %s17, 8192, %s19, [#allocation4], 256, 256, 16
    $region9: #{wan_self_attention_forward.5} parent=1 // pred_fallthru
      _
    // Predicated region
    $region10: #{wan_self_attention_forward.5} parent=1 // pred_check
      _
    $region11: #{wan_self_attention_forward.5} parent=1 // pred_check_branch
      %26 = sbr.rel (0) target = $region13
    $region12: #{wan_self_attention_forward.5} parent=1 // pred_region
      _
    $region13: #{wan_self_attention_forward.5} parent=1 // pred_fallthru
      _
    // Predicated region
    $region14: #{wan_self_attention_forward.5} parent=1 // pred_check
      _
    $region15: #{wan_self_attention_forward.5} parent=1 // pred_check_branch
      %28 = sbr.rel (0) target = $region17
    $region16: #{wan_self_attention_forward.5} parent=1 // pred_region
      %30 = dma.done [#allocation4], 8192
    $region17: #{wan_self_attention_forward.5} parent=1 // pred_fallthru
      _
    %p31 = scmp.eq.s32.totalorder 0, 0
    // Predicated region
    $region18: #{wan_self_attention_forward.5} parent=1 // pred_check
      %p32 = pneg %p31
    $region19: #{wan_self_attention_forward.5} parent=1 // pred_check_branch
      %34 = sbr.rel (%p32) target = $region21
    $region20: #{wan_self_attention_forward.5} parent=1 // pred_region
      %35 = vst [vmem:[#allocation2] sm:$0xff] 0.0
      %36 = vst [vmem:[#allocation2 + $0x8] sm:$0xff] 0.0
      %37 = vst [vmem:[#allocation2 + $0x10] sm:$0xff] 0.0
      %38 = vst [vmem:[#allocation2 + $0x18] sm:$0xff] 0.0
      %39 = vst [vmem:[#allocation2 + $0x20] sm:$0xff] 0.0
      %40 = vst [vmem:[#allocation2 + $0x28] sm:$0xff] 0.0
      %41 = vst [vmem:[#allocation2 + $0x30] sm:$0xff] 0.0
      %42 = vst [vmem:[#allocation2 + $0x38] sm:$0xff] 0.0
      %43 = vst [vmem:[#allocation2 + $0x40] sm:$0xff] 0.0
      %44 = vst [vmem:[#allocation2 + $0x48] sm:$0xff] 0.0
      %45 = vst [vmem:[#allocation2 + $0x50] sm:$0xff] 0.0
      %46 = vst [vmem:[#allocation2 + $0x58] sm:$0xff] 0.0
      %47 = vst [vmem:[#allocation2 + $0x60] sm:$0xff] 0.0
      %48 = vst [vmem:[#allocation2 + $0x68] sm:$0xff] 0.0
      %49 = vst [vmem:[#allocation2 + $0x70] sm:$0xff] 0.0
      %50 = vst [vmem:[#allocation2 + $0x78] sm:$0xff] 0.0
      %51 = vst [vmem:[#allocation2 + $0x80] sm:$0xff] 0.0
      %52 = vst [vmem:[#allocation2 + $0x88] sm:$0xff] 0.0
      %53 = vst [vmem:[#allocation2 + $0x90] sm:$0xff] 0.0
      %54 = vst [vmem:[#allocation2 + $0x98] sm:$0xff] 0.0
      %55 = vst [vmem:[#allocation2 + $0xa0] sm:$0xff] 0.0
      %56 = vst [vmem:[#allocation2 + $0xa8] sm:$0xff] 0.0
      %57 = vst [vmem:[#allocation2 + $0xb0] sm:$0xff] 0.0
      %58 = vst [vmem:[#allocation2 + $0xb8] sm:$0xff] 0.0
      %59 = vst [vmem:[#allocation2 + $0xc0] sm:$0xff] 0.0
      %60 = vst [vmem:[#allocation2 + $0xc8] sm:$0xff] 0.0
      %61 = vst [vmem:[#allocation2 + $0xd0] sm:$0xff] 0.0
      %62 = vst [vmem:[#allocation2 + $0xd8] sm:$0xff] 0.0
      %63 = vst [vmem:[#allocation2 + $0xe0] sm:$0xff] 0.0
      %64 = vst [vmem:[#allocation2 + $0xe8] sm:$0xff] 0.0
      %65 = vst [vmem:[#allocation2 + $0xf0] sm:$0xff] 0.0
      %66 = vst [vmem:[#allocation2 + $0xf8] sm:$0xff] 0.0
    $region21: #{wan_self_attention_forward.5} parent=1 // pred_fallthru
      _
    %v67 = vld [vmem:[#allocation2] sm:$0xff]
    %v68 = vld [vmem:[#allocation2 + $0x8] sm:$0xff]
    %v69 = vld [vmem:[#allocation2 + $0x10] sm:$0xff]
    %v70 = vld [vmem:[#allocation2 + $0x18] sm:$0xff]
    %v71 = vld [vmem:[#allocation2 + $0x20] sm:$0xff]
    %v72 = vld [vmem:[#allocation2 + $0x28] sm:$0xff]
    %v73 = vld [vmem:[#allocation2 + $0x30] sm:$0xff]
    %v74 = vld [vmem:[#allocation2 + $0x38] sm:$0xff]
    %v75 = vld [vmem:[#allocation2 + $0x40] sm:$0xff]
    %v76 = vld [vmem:[#allocation2 + $0x48] sm:$0xff]
    %v77 = vld [vmem:[#allocation2 + $0x50] sm:$0xff]
    %v78 = vld [vmem:[#allocation2 + $0x58] sm:$0xff]
    %v79 = vld [vmem:[#allocation2 + $0x60] sm:$0xff]
    %v80 = vld [vmem:[#allocation2 + $0x68] sm:$0xff]
    %v81 = vld [vmem:[#allocation2 + $0x70] sm:$0xff]
    %v82 = vld [vmem:[#allocation2 + $0x78] sm:$0xff]
    %v83 = vld [vmem:[#allocation2 + $0x80] sm:$0xff]
    %v84 = vld [vmem:[#allocation2 + $0x88] sm:$0xff]
    %v85 = vld [vmem:[#allocation2 + $0x90] sm:$0xff]
    %v86 = vld [vmem:[#allocation2 + $0x98] sm:$0xff]
    %v87 = vld [vmem:[#allocation2 + $0xa0] sm:$0xff]
    %v88 = vld [vmem:[#allocation2 + $0xa8] sm:$0xff]
    %v89 = vld [vmem:[#allocation2 + $0xb0] sm:$0xff]
    %v90 = vld [vmem:[#allocation2 + $0xb8] sm:$0xff]
    %v91 = vld [vmem:[#allocation2 + $0xc0] sm:$0xff]
    %v92 = vld [vmem:[#allocation2 + $0xc8] sm:$0xff]
    %v93 = vld [vmem:[#allocation2 + $0xd0] sm:$0xff]
    %v94 = vld [vmem:[#allocation2 + $0xd8] sm:$0xff]
    %v95 = vld [vmem:[#allocation2 + $0xe0] sm:$0xff]
    %v96 = vld [vmem:[#allocation2 + $0xe8] sm:$0xff]
    %v97 = vld [vmem:[#allocation2 + $0xf0] sm:$0xff]
    %v98 = vld [vmem:[#allocation2 + $0xf8] sm:$0xff]
    %v99 = vld [vmem:[%s0] sm:$0xff]
    %v100 = vld [vmem:[%s0 + $0x8] sm:$0xff]
    %v101 = vld [vmem:[%s0 + $0x10] sm:$0xff]
    %v102 = vld [vmem:[%s0 + $0x18] sm:$0xff]
    %v103 = vld [vmem:[%s0 + $0x20] sm:$0xff]
    %v104 = vld [vmem:[%s0 + $0x28] sm:$0xff]
    %v105 = vld [vmem:[%s0 + $0x30] sm:$0xff]
    %v106 = vld [vmem:[%s0 + $0x38] sm:$0xff]
    %v107 = vld [vmem:[%s0 + $0x40] sm:$0xff]
    %v108 = vld [vmem:[%s0 + $0x48] sm:$0xff]
    %v109 = vld [vmem:[%s0 + $0x50] sm:$0xff]
    %v110 = vld [vmem:[%s0 + $0x58] sm:$0xff]
    %v111 = vld [vmem:[%s0 + $0x60] sm:$0xff]
    %v112 = vld [vmem:[%s0 + $0x68] sm:$0xff]
    %v113 = vld [vmem:[%s0 + $0x70] sm:$0xff]
    %v114 = vld [vmem:[%s0 + $0x78] sm:$0xff]
    %v115 = vld [vmem:[%s0 + $0x80] sm:$0xff]
    %v116 = vld [vmem:[%s0 + $0x88] sm:$0xff]
    %v117 = vld [vmem:[%s0 + $0x90] sm:$0xff]
    %v118 = vld [vmem:[%s0 + $0x98] sm:$0xff]
    %v119 = vld [vmem:[%s0 + $0xa0] sm:$0xff]
    %v120 = vld [vmem:[%s0 + $0xa8] sm:$0xff]
    %v121 = vld [vmem:[%s0 + $0xb0] sm:$0xff]
    %v122 = vld [vmem:[%s0 + $0xb8] sm:$0xff]
    %v123 = vld [vmem:[%s0 + $0xc0] sm:$0xff]
    %v124 = vld [vmem:[%s0 + $0xc8] sm:$0xff]
    %v125 = vld [vmem:[%s0 + $0xd0] sm:$0xff]
    %v126 = vld [vmem:[%s0 + $0xd8] sm:$0xff]
    %v127 = vld [vmem:[%s0 + $0xe0] sm:$0xff]
    %v128 = vld [vmem:[%s0 + $0xe8] sm:$0xff]
    %v129 = vld [vmem:[%s0 + $0xf0] sm:$0xff]
    %v130 = vld [vmem:[%s0 + $0xf8] sm:$0xff]
    %v131 = vld [vmem:[#allocation3] sm:$0xff]
    %v132 = vld [vmem:[#allocation3 + $0x8] sm:$0xff]
    %v133 = vld [vmem:[#allocation3 + $0x10] sm:$0xff]
    %v134 = vld [vmem:[#allocation3 + $0x18] sm:$0xff]
    %v135 = vld [vmem:[#allocation3 + $0x20] sm:$0xff]
    %v136 = vld [vmem:[#allocation3 + $0x28] sm:$0xff]
    %v137 = vld [vmem:[#allocation3 + $0x30] sm:$0xff]
    %v138 = vld [vmem:[#allocation3 + $0x38] sm:$0xff]
    %v139 = vld [vmem:[#allocation3 + $0x40] sm:$0xff]
    %v140 = vld [vmem:[#allocation3 + $0x48] sm:$0xff]
    %v141 = vld [vmem:[#allocation3 + $0x50] sm:$0xff]
    %v142 = vld [vmem:[#allocation3 + $0x58] sm:$0xff]
    %v143 = vld [vmem:[#allocation3 + $0x60] sm:$0xff]
    %v144 = vld [vmem:[#allocation3 + $0x68] sm:$0xff]
    %v145 = vld [vmem:[#allocation3 + $0x70] sm:$0xff]
    %v146 = vld [vmem:[#allocation3 + $0x78] sm:$0xff]
    %v147 = vld [vmem:[#allocation3 + $0x80] sm:$0xff]
    %v148 = vld [vmem:[#allocation3 + $0x88] sm:$0xff]
    %v149 = vld [vmem:[#allocation3 + $0x90] sm:$0xff]
    %v150 = vld [vmem:[#allocation3 + $0x98] sm:$0xff]
    %v151 = vld [vmem:[#allocation3 + $0xa0] sm:$0xff]
    %v152 = vld [vmem:[#allocation3 + $0xa8] sm:$0xff]
    %v153 = vld [vmem:[#allocation3 + $0xb0] sm:$0xff]
    %v154 = vld [vmem:[#allocation3 + $0xb8] sm:$0xff]
    %v155 = vld [vmem:[#allocation3 + $0xc0] sm:$0xff]
    %v156 = vld [vmem:[#allocation3 + $0xc8] sm:$0xff]
    %v157 = vld [vmem:[#allocation3 + $0xd0] sm:$0xff]
    %v158 = vld [vmem:[#allocation3 + $0xd8] sm:$0xff]
    %v159 = vld [vmem:[#allocation3 + $0xe0] sm:$0xff]
    %v160 = vld [vmem:[#allocation3 + $0xe8] sm:$0xff]
    %v161 = vld [vmem:[#allocation3 + $0xf0] sm:$0xff]
    %v162 = vld [vmem:[#allocation3 + $0xf8] sm:$0xff]
    %v163 = vld [vmem:[#allocation3 + $0x100] sm:$0xff]
    %v164 = vld [vmem:[#allocation3 + $0x108] sm:$0xff]
    %v165 = vld [vmem:[#allocation3 + $0x110] sm:$0xff]
    %v166 = vld [vmem:[#allocation3 + $0x118] sm:$0xff]
    %v167 = vld [vmem:[#allocation3 + $0x120] sm:$0xff]
    %v168 = vld [vmem:[#allocation3 + $0x128] sm:$0xff]
    %v169 = vld [vmem:[#allocation3 + $0x130] sm:$0xff]
    %v170 = vld [vmem:[#allocation3 + $0x138] sm:$0xff]
    %v171 = vld [vmem:[#allocation3 + $0x140] sm:$0xff]
    %v172 = vld [vmem:[#allocation3 + $0x148] sm:$0xff]
    %v173 = vld [vmem:[#allocation3 + $0x150] sm:$0xff]
    %v174 = vld [vmem:[#allocation3 + $0x158] sm:$0xff]
    %v175 = vld [vmem:[#allocation3 + $0x160] sm:$0xff]
    %v176 = vld [vmem:[#allocation3 + $0x168] sm:$0xff]
    %v177 = vld [vmem:[#allocation3 + $0x170] sm:$0xff]
    %v178 = vld [vmem:[#allocation3 + $0x178] sm:$0xff]
    %v179 = vld [vmem:[#allocation3 + $0x180] sm:$0xff]
    %v180 = vld [vmem:[#allocation3 + $0x188] sm:$0xff]
    %v181 = vld [vmem:[#allocation3 + $0x190] sm:$0xff]
    %v182 = vld [vmem:[#allocation3 + $0x198] sm:$0xff]
    %v183 = vld [vmem:[#allocation3 + $0x1a0] sm:$0xff]
    %v184 = vld [vmem:[#allocation3 + $0x1a8] sm:$0xff]
    %v185 = vld [vmem:[#allocation3 + $0x1b0] sm:$0xff]
    %v186 = vld [vmem:[#allocation3 + $0x1b8] sm:$0xff]
    %v187 = vld [vmem:[#allocation3 + $0x1c0] sm:$0xff]
    %v188 = vld [vmem:[#allocation3 + $0x1c8] sm:$0xff]
    %v189 = vld [vmem:[#allocation3 + $0x1d0] sm:$0xff]
    %v190 = vld [vmem:[#allocation3 + $0x1d8] sm:$0xff]
    %v191 = vld [vmem:[#allocation3 + $0x1e0] sm:$0xff]
    %v192 = vld [vmem:[#allocation3 + $0x1e8] sm:$0xff]
    %v193 = vld [vmem:[#allocation3 + $0x1f0] sm:$0xff]
    %v194 = vld [vmem:[#allocation3 + $0x1f8] sm:$0xff]
    %195 = vmatpush.msra.mxu0 %v161
    %196 = vmatpush.msra.mxu0 %v159
    %197 = vmatpush.msra.mxu0 %v157
    %198 = vmatpush.msra.mxu0 %v155
    %199 = vmatpush.msra.mxu0 %v153
    %200 = vmatpush.msra.mxu0 %v151
    %201 = vmatpush.msra.mxu0 %v149
    %202 = vmatpush.msra.mxu0 %v147
    %203 = vmatpush.msra.mxu0 %v145
    %204 = vmatpush.msra.mxu0 %v143
    %205 = vmatpush.msra.mxu0 %v141
    %206 = vmatpush.msra.mxu0 %v139
    %207 = vmatpush.msra.mxu0 %v137
    %208 = vmatpush.msra.mxu0 %v135
    %209 = vmatpush.msra.mxu0 %v133
    %210 = vmatpush.msra.mxu0 %v131
    %211 = vmatmul.f32.gmra.mxu0 %v99
    %v212 = vpop.f32.mrf.mxu0
    %v213 = vadd.f32 0.0, %v212
    %214 = vmatmul.f32.gmra.mxu0 %v101
    %v215 = vpop.f32.mrf.mxu0
    %v216 = vadd.f32 0.0, %v215
    %217 = vmatmul.f32.gmra.mxu0 %v103
    %v218 = vpop.f32.mrf.mxu0
    %v219 = vadd.f32 0.0, %v218
    %220 = vmatmul.f32.gmra.mxu0 %v105
    %v221 = vpop.f32.mrf.mxu0
    %v222 = vadd.f32 0.0, %v221
    %223 = vmatmul.f32.gmra.mxu0 %v107
    %v224 = vpop.f32.mrf.mxu0
    %v225 = vadd.f32 0.0, %v224
    %226 = vmatmul.f32.gmra.mxu0 %v109
    %v227 = vpop.f32.mrf.mxu0
    %v228 = vadd.f32 0.0, %v227
    %229 = vmatmul.f32.gmra.mxu0 %v111
    %v230 = vpop.f32.mrf.mxu0
    %v231 = vadd.f32 0.0, %v230
    %232 = vmatmul.f32.gmra.mxu0 %v113
    %v233 = vpop.f32.mrf.mxu0
    %v234 = vadd.f32 0.0, %v233
    %235 = vmatmul.f32.gmra.mxu0 %v115
    %v236 = vpop.f32.mrf.mxu0
    %v237 = vadd.f32 0.0, %v236
    %238 = vmatmul.f32.gmra.mxu0 %v117
    %v239 = vpop.f32.mrf.mxu0
    %v240 = vadd.f32 0.0, %v239
    %241 = vmatmul.f32.gmra.mxu0 %v119
    %v242 = vpop.f32.mrf.mxu0
    %v243 = vadd.f32 0.0, %v242
    %244 = vmatmul.f32.gmra.mxu0 %v121
    %v245 = vpop.f32.mrf.mxu0
    %v246 = vadd.f32 0.0, %v245
    %247 = vmatmul.f32.gmra.mxu0 %v123
    %v248 = vpop.f32.mrf.mxu0
    %v249 = vadd.f32 0.0, %v248
    %250 = vmatmul.f32.gmra.mxu0 %v125
    %v251 = vpop.f32.mrf.mxu0
    %v252 = vadd.f32 0.0, %v251
    %253 = vmatmul.f32.gmra.mxu0 %v127
    %v254 = vpop.f32.mrf.mxu0
    %v255 = vadd.f32 0.0, %v254
    %256 = vmatmul.f32.gmra.mxu0 %v129
    %v257 = vpop.f32.mrf.mxu0
    %v258 = vadd.f32 0.0, %v257
    %259 = vdwg.mxu0
    %260 = vmatpush.msra.mxu0 %v193
    %261 = vmatpush.msra.mxu0 %v191
    %262 = vmatpush.msra.mxu0 %v189
    %263 = vmatpush.msra.mxu0 %v187
    %264 = vmatpush.msra.mxu0 %v185
    %265 = vmatpush.msra.mxu0 %v183
    %266 = vmatpush.msra.mxu0 %v181
    %267 = vmatpush.msra.mxu0 %v179
    %268 = vmatpush.msra.mxu0 %v177
    %269 = vmatpush.msra.mxu0 %v175
    %270 = vmatpush.msra.mxu0 %v173
    %271 = vmatpush.msra.mxu0 %v171
    %272 = vmatpush.msra.mxu0 %v169
    %273 = vmatpush.msra.mxu0 %v167
    %274 = vmatpush.msra.mxu0 %v165
    %275 = vmatpush.msra.mxu0 %v163
    %276 = vmatmul.f32.gmra.mxu0 %v100
    %v277 = vpop.f32.mrf.mxu0
    %v278 = vadd.f32 %v213, %v277
    %279 = vmatmul.f32.gmra.mxu0 %v102
    %v280 = vpop.f32.mrf.mxu0
    %v281 = vadd.f32 %v216, %v280
    %282 = vmatmul.f32.gmra.mxu0 %v104
    %v283 = vpop.f32.mrf.mxu0
    %v284 = vadd.f32 %v219, %v283
    %285 = vmatmul.f32.gmra.mxu0 %v106
    %v286 = vpop.f32.mrf.mxu0
    %v287 = vadd.f32 %v222, %v286
    %288 = vmatmul.f32.gmra.mxu0 %v108
    %v289 = vpop.f32.mrf.mxu0
    %v290 = vadd.f32 %v225, %v289
    %291 = vmatmul.f32.gmra.mxu0 %v110
    %v292 = vpop.f32.mrf.mxu0
    %v293 = vadd.f32 %v228, %v292
    %294 = vmatmul.f32.gmra.mxu0 %v112
    %v295 = vpop.f32.mrf.mxu0
    %v296 = vadd.f32 %v231, %v295
    %297 = vmatmul.f32.gmra.mxu0 %v114
    %v298 = vpop.f32.mrf.mxu0
    %v299 = vadd.f32 %v234, %v298
    %300 = vmatmul.f32.gmra.mxu0 %v116
    %v301 = vpop.f32.mrf.mxu0
    %v302 = vadd.f32 %v237, %v301
    %303 = vmatmul.f32.gmra.mxu0 %v118
    %v304 = vpop.f32.mrf.mxu0
    %v305 = vadd.f32 %v240, %v304
    %306 = vmatmul.f32.gmra.mxu0 %v120
    %v307 = vpop.f32.mrf.mxu0
    %v308 = vadd.f32 %v243, %v307
    %309 = vmatmul.f32.gmra.mxu0 %v122
    %v310 = vpop.f32.mrf.mxu0
    %v311 = vadd.f32 %v246, %v310
    %312 = vmatmul.f32.gmra.mxu0 %v124
    %v313 = vpop.f32.mrf.mxu0
    %v314 = vadd.f32 %v249, %v313
    %315 = vmatmul.f32.gmra.mxu0 %v126
    %v316 = vpop.f32.mrf.mxu0
    %v317 = vadd.f32 %v252, %v316
    %318 = vmatmul.f32.gmra.mxu0 %v128
    %v319 = vpop.f32.mrf.mxu0
    %v320 = vadd.f32 %v255, %v319
    %321 = vmatmul.f32.gmra.mxu0 %v130
    %v322 = vpop.f32.mrf.mxu0
    %v323 = vadd.f32 %v258, %v322
    %324 = vdwg.mxu0
    %325 = vmatpush.msra.mxu0 %v162
    %326 = vmatpush.msra.mxu0 %v160
    %327 = vmatpush.msra.mxu0 %v158
    %328 = vmatpush.msra.mxu0 %v156
    %329 = vmatpush.msra.mxu0 %v154
    %330 = vmatpush.msra.mxu0 %v152
    %331 = vmatpush.msra.mxu0 %v150
    %332 = vmatpush.msra.mxu0 %v148
    %333 = vmatpush.msra.mxu0 %v146
    %334 = vmatpush.msra.mxu0 %v144
    %335 = vmatpush.msra.mxu0 %v142
    %336 = vmatpush.msra.mxu0 %v140
    %337 = vmatpush.msra.mxu0 %v138
    %338 = vmatpush.msra.mxu0 %v136
    %339 = vmatpush.msra.mxu0 %v134
    %340 = vmatpush.msra.mxu0 %v132
    %341 = vmatmul.f32.gmra.mxu0 %v99
    %v342 = vpop.f32.mrf.mxu0
    %v343 = vadd.f32 0.0, %v342
    %344 = vmatmul.f32.gmra.mxu0 %v101
    %v345 = vpop.f32.mrf.mxu0
    %v346 = vadd.f32 0.0, %v345
    %347 = vmatmul.f32.gmra.mxu0 %v103
    %v348 = vpop.f32.mrf.mxu0
    %v349 = vadd.f32 0.0, %v348
    %350 = vmatmul.f32.gmra.mxu0 %v105
    %v351 = vpop.f32.mrf.mxu0
    %v352 = vadd.f32 0.0, %v351
    %353 = vmatmul.f32.gmra.mxu0 %v107
    %v354 = vpop.f32.mrf.mxu0
    %v355 = vadd.f32 0.0, %v354
    %356 = vmatmul.f32.gmra.mxu0 %v109
    %v357 = vpop.f32.mrf.mxu0
    %v358 = vadd.f32 0.0, %v357
    %359 = vmatmul.f32.gmra.mxu0 %v111
    %v360 = vpop.f32.mrf.mxu0
    %v361 = vadd.f32 0.0, %v360
    %362 = vmatmul.f32.gmra.mxu0 %v113
    %v363 = vpop.f32.mrf.mxu0
    %v364 = vadd.f32 0.0, %v363
    %365 = vmatmul.f32.gmra.mxu0 %v115
    %v366 = vpop.f32.mrf.mxu0
    %v367 = vadd.f32 0.0, %v366
    %368 = vmatmul.f32.gmra.mxu0 %v117
    %v369 = vpop.f32.mrf.mxu0
    %v370 = vadd.f32 0.0, %v369
    %371 = vmatmul.f32.gmra.mxu0 %v119
    %v372 = vpop.f32.mrf.mxu0
    %v373 = vadd.f32 0.0, %v372
    %374 = vmatmul.f32.gmra.mxu0 %v121
    %v375 = vpop.f32.mrf.mxu0
    %v376 = vadd.f32 0.0, %v375
    %377 = vmatmul.f32.gmra.mxu0 %v123
    %v378 = vpop.f32.mrf.mxu0
    %v379 = vadd.f32 0.0, %v378
    %380 = vmatmul.f32.gmra.mxu0 %v125
    %v381 = vpop.f32.mrf.mxu0
    %v382 = vadd.f32 0.0, %v381
    %383 = vmatmul.f32.gmra.mxu0 %v127
    %v384 = vpop.f32.mrf.mxu0
    %v385 = vadd.f32 0.0, %v384
    %386 = vmatmul.f32.gmra.mxu0 %v129
    %v387 = vpop.f32.mrf.mxu0
    %v388 = vadd.f32 0.0, %v387
    %389 = vdwg.mxu0
    %390 = vmatpush.msra.mxu0 %v194
    %391 = vmatpush.msra.mxu0 %v192
    %392 = vmatpush.msra.mxu0 %v190
    %393 = vmatpush.msra.mxu0 %v188
    %394 = vmatpush.msra.mxu0 %v186
    %395 = vmatpush.msra.mxu0 %v184
    %396 = vmatpush.msra.mxu0 %v182
    %397 = vmatpush.msra.mxu0 %v180
    %398 = vmatpush.msra.mxu0 %v178
    %399 = vmatpush.msra.mxu0 %v176
    %400 = vmatpush.msra.mxu0 %v174
    %401 = vmatpush.msra.mxu0 %v172
    %402 = vmatpush.msra.mxu0 %v170
    %403 = vmatpush.msra.mxu0 %v168
    %404 = vmatpush.msra.mxu0 %v166
    %405 = vmatpush.msra.mxu0 %v164
    %406 = vmatmul.f32.gmra.mxu0 %v100
    %v407 = vpop.f32.mrf.mxu0
    %v408 = vadd.f32 %v343, %v407
    %409 = vmatmul.f32.gmra.mxu0 %v102
    %v410 = vpop.f32.mrf.mxu0
    %v411 = vadd.f32 %v346, %v410
    %412 = vmatmul.f32.gmra.mxu0 %v104
    %v413 = vpop.f32.mrf.mxu0
    %v414 = vadd.f32 %v349, %v413
    %415 = vmatmul.f32.gmra.mxu0 %v106
    %v416 = vpop.f32.mrf.mxu0
    %v417 = vadd.f32 %v352, %v416
    %418 = vmatmul.f32.gmra.mxu0 %v108
    %v419 = vpop.f32.mrf.mxu0
    %v420 = vadd.f32 %v355, %v419
    %421 = vmatmul.f32.gmra.mxu0 %v110
    %v422 = vpop.f32.mrf.mxu0
    %v423 = vadd.f32 %v358, %v422
    %424 = vmatmul.f32.gmra.mxu0 %v112
    %v425 = vpop.f32.mrf.mxu0
    %v426 = vadd.f32 %v361, %v425
    %427 = vmatmul.f32.gmra.mxu0 %v114
    %v428 = vpop.f32.mrf.mxu0
    %v429 = vadd.f32 %v364, %v428
    %430 = vmatmul.f32.gmra.mxu0 %v116
    %v431 = vpop.f32.mrf.mxu0
    %v432 = vadd.f32 %v367, %v431
    %433 = vmatmul.f32.gmra.mxu0 %v118
    %v434 = vpop.f32.mrf.mxu0
    %v435 = vadd.f32 %v370, %v434
    %436 = vmatmul.f32.gmra.mxu0 %v120
    %v437 = vpop.f32.mrf.mxu0
    %v438 = vadd.f32 %v373, %v437
    %439 = vmatmul.f32.gmra.mxu0 %v122
    %v440 = vpop.f32.mrf.mxu0
    %v441 = vadd.f32 %v376, %v440
    %442 = vmatmul.f32.gmra.mxu0 %v124
    %v443 = vpop.f32.mrf.mxu0
    %v444 = vadd.f32 %v379, %v443
    %445 = vmatmul.f32.gmra.mxu0 %v126
    %v446 = vpop.f32.mrf.mxu0
    %v447 = vadd.f32 %v382, %v446
    %448 = vmatmul.f32.gmra.mxu0 %v128
    %v449 = vpop.f32.mrf.mxu0
    %v450 = vadd.f32 %v385, %v449
    %451 = vmatmul.f32.gmra.mxu0 %v130
    %v452 = vpop.f32.mrf.mxu0
    %v453 = vadd.f32 %v388, %v452
    %454 = vdwg.mxu0
    %v455 = vadd.f32 %v67, %v278
    %v456 = vadd.f32 %v68, %v408
    %v457 = vadd.f32 %v69, %v281
    %v458 = vadd.f32 %v70, %v411
    %v459 = vadd.f32 %v71, %v284
    %v460 = vadd.f32 %v72, %v414
    %v461 = vadd.f32 %v73, %v287
    %v462 = vadd.f32 %v74, %v417
    %v463 = vadd.f32 %v75, %v290
    %v464 = vadd.f32 %v76, %v420
    %v465 = vadd.f32 %v77, %v293
    %v466 = vadd.f32 %v78, %v423
    %v467 = vadd.f32 %v79, %v296
    %v468 = vadd.f32 %v80, %v426
    %v469 = vadd.f32 %v81, %v299
    %v470 = vadd.f32 %v82, %v429
    %v471 = vadd.f32 %v83, %v302
    %v472 = vadd.f32 %v84, %v432
    %v473 = vadd.f32 %v85, %v305
    %v474 = vadd.f32 %v86, %v435
    %v475 = vadd.f32 %v87, %v308
    %v476 = vadd.f32 %v88, %v438
    %v477 = vadd.f32 %v89, %v311
    %v478 = vadd.f32 %v90, %v441
    %v479 = vadd.f32 %v91, %v314
    %v480 = vadd.f32 %v92, %v444
    %v481 = vadd.f32 %v93, %v317
    %v482 = vadd.f32 %v94, %v447
    %v483 = vadd.f32 %v95, %v320
    %v484 = vadd.f32 %v96, %v450
    %v485 = vadd.f32 %v97, %v323
    %v486 = vadd.f32 %v98, %v453
    %487 = vst [vmem:[#allocation2] sm:$0xff] %v455
    %488 = vst [vmem:[#allocation2 + $0x8] sm:$0xff] %v456
    %489 = vst [vmem:[#allocation2 + $0x10] sm:$0xff] %v457
    %490 = vst [vmem:[#allocation2 + $0x18] sm:$0xff] %v458
    %491 = vst [vmem:[#allocation2 + $0x20] sm:$0xff] %v459
    %492 = vst [vmem:[#allocation2 + $0x28] sm:$0xff] %v460
    %493 = vst [vmem:[#allocation2 + $0x30] sm:$0xff] %v461
    %494 = vst [vmem:[#allocation2 + $0x38] sm:$0xff] %v462
    %495 = vst [vmem:[#allocation2 + $0x40] sm:$0xff] %v463
    %496 = vst [vmem:[#allocation2 + $0x48] sm:$0xff] %v464
    %497 = vst [vmem:[#allocation2 + $0x50] sm:$0xff] %v465
    %498 = vst [vmem:[#allocation2 + $0x58] sm:$0xff] %v466
    %499 = vst [vmem:[#allocation2 + $0x60] sm:$0xff] %v467
    %500 = vst [vmem:[#allocation2 + $0x68] sm:$0xff] %v468
    %501 = vst [vmem:[#allocation2 + $0x70] sm:$0xff] %v469
    %502 = vst [vmem:[#allocation2 + $0x78] sm:$0xff] %v470
    %503 = vst [vmem:[#allocation2 + $0x80] sm:$0xff] %v471
    %504 = vst [vmem:[#allocation2 + $0x88] sm:$0xff] %v472
    %505 = vst [vmem:[#allocation2 + $0x90] sm:$0xff] %v473
    %506 = vst [vmem:[#allocation2 + $0x98] sm:$0xff] %v474
    %507 = vst [vmem:[#allocation2 + $0xa0] sm:$0xff] %v475
    %508 = vst [vmem:[#allocation2 + $0xa8] sm:$0xff] %v476
    %509 = vst [vmem:[#allocation2 + $0xb0] sm:$0xff] %v477
    %510 = vst [vmem:[#allocation2 + $0xb8] sm:$0xff] %v478
    %511 = vst [vmem:[#allocation2 + $0xc0] sm:$0xff] %v479
    %512 = vst [vmem:[#allocation2 + $0xc8] sm:$0xff] %v480
    %513 = vst [vmem:[#allocation2 + $0xd0] sm:$0xff] %v481
    %514 = vst [vmem:[#allocation2 + $0xd8] sm:$0xff] %v482
    %515 = vst [vmem:[#allocation2 + $0xe0] sm:$0xff] %v483
    %516 = vst [vmem:[#allocation2 + $0xe8] sm:$0xff] %v484
    %517 = vst [vmem:[#allocation2 + $0xf0] sm:$0xff] %v485
    %518 = vst [vmem:[#allocation2 + $0xf8] sm:$0xff] %v486
    // Predicated region
    $region22: #{wan_self_attention_forward.5} parent=1 // pred_check
      %p519 = pneg %p31
    $region23: #{wan_self_attention_forward.5} parent=1 // pred_check_branch
      %521 = sbr.rel (%p519) target = $region25
    $region24: #{wan_self_attention_forward.5} parent=1 // pred_region
      %v522 = vld [vmem:[#allocation2] sm:$0xff]
      %v523 = vld [vmem:[#allocation2 + $0x8] sm:$0xff]
      %v524 = vld [vmem:[#allocation2 + $0x10] sm:$0xff]
      %v525 = vld [vmem:[#allocation2 + $0x18] sm:$0xff]
      %v526 = vld [vmem:[#allocation2 + $0x20] sm:$0xff]
      %v527 = vld [vmem:[#allocation2 + $0x28] sm:$0xff]
      %v528 = vld [vmem:[#allocation2 + $0x30] sm:$0xff]
      %v529 = vld [vmem:[#allocation2 + $0x38] sm:$0xff]
      %v530 = vld [vmem:[#allocation2 + $0x40] sm:$0xff]
      %v531 = vld [vmem:[#allocation2 + $0x48] sm:$0xff]
      %v532 = vld [vmem:[#allocation2 + $0x50] sm:$0xff]
      %v533 = vld [vmem:[#allocation2 + $0x58] sm:$0xff]
      %v534 = vld [vmem:[#allocation2 + $0x60] sm:$0xff]
      %v535 = vld [vmem:[#allocation2 + $0x68] sm:$0xff]
      %v536 = vld [vmem:[#allocation2 + $0x70] sm:$0xff]
      %v537 = vld [vmem:[#allocation2 + $0x78] sm:$0xff]
      %v538 = vld [vmem:[#allocation2 + $0x80] sm:$0xff]
      %v539 = vld [vmem:[#allocation2 + $0x88] sm:$0xff]
      %v540 = vld [vmem:[#allocation2 + $0x90] sm:$0xff]
      %v541 = vld [vmem:[#allocation2 + $0x98] sm:$0xff]
      %v542 = vld [vmem:[#allocation2 + $0xa0] sm:$0xff]
      %v543 = vld [vmem:[#allocation2 + $0xa8] sm:$0xff]
      %v544 = vld [vmem:[#allocation2 + $0xb0] sm:$0xff]
      %v545 = vld [vmem:[#allocation2 + $0xb8] sm:$0xff]
      %v546 = vld [vmem:[#allocation2 + $0xc0] sm:$0xff]
      %v547 = vld [vmem:[#allocation2 + $0xc8] sm:$0xff]
      %v548 = vld [vmem:[#allocation2 + $0xd0] sm:$0xff]
      %v549 = vld [vmem:[#allocation2 + $0xd8] sm:$0xff]
      %v550 = vld [vmem:[#allocation2 + $0xe0] sm:$0xff]
      %v551 = vld [vmem:[#allocation2 + $0xe8] sm:$0xff]
      %v552 = vld [vmem:[#allocation2 + $0xf0] sm:$0xff]
      %v553 = vld [vmem:[#allocation2 + $0xf8] sm:$0xff]
      %v554 = vld [vmem:[%s2] sm:$0x3]
      %v556 = vperm.slane %v554, 0
      %v557 = vperm.slane %v554, 1
      %v560 = vadd.f32 %v522, %v556
      %v561 = vadd.f32 %v523, %v557
      %v562 = vadd.f32 %v524, %v556
      %v563 = vadd.f32 %v525, %v557
      %v564 = vadd.f32 %v526, %v556
      %v565 = vadd.f32 %v527, %v557
      %v566 = vadd.f32 %v528, %v556
      %v567 = vadd.f32 %v529, %v557
      %v568 = vadd.f32 %v530, %v556
      %v569 = vadd.f32 %v531, %v557
      %v570 = vadd.f32 %v532, %v556
      %v571 = vadd.f32 %v533, %v557
      %v572 = vadd.f32 %v534, %v556
      %v573 = vadd.f32 %v535, %v557
      %v574 = vadd.f32 %v536, %v556
      %v575 = vadd.f32 %v537, %v557
      %v576 = vadd.f32 %v538, %v556
      %v577 = vadd.f32 %v539, %v557
      %v578 = vadd.f32 %v540, %v556
      %v579 = vadd.f32 %v541, %v557
      %v580 = vadd.f32 %v542, %v556
      %v581 = vadd.f32 %v543, %v557
      %v582 = vadd.f32 %v544, %v556
      %v583 = vadd.f32 %v545, %v557
      %v584 = vadd.f32 %v546, %v556
      %v585 = vadd.f32 %v547, %v557
      %v586 = vadd.f32 %v548, %v556
      %v587 = vadd.f32 %v549, %v557
      %v588 = vadd.f32 %v550, %v556
      %v589 = vadd.f32 %v551, %v557
      %v590 = vadd.f32 %v552, %v556
      %v591 = vadd.f32 %v553, %v557
      %592 = vst [vmem:[#allocation6] sm:$0xff] %v560
      %593 = vst [vmem:[#allocation6 + $0x8] sm:$0xff] %v561
      %594 = vst [vmem:[#allocation6 + $0x10] sm:$0xff] %v562
      %595 = vst [vmem:[#allocation6 + $0x18] sm:$0xff] %v563
      %596 = vst [vmem:[#allocation6 + $0x20] sm:$0xff] %v564
      %597 = vst [vmem:[#allocation6 + $0x28] sm:$0xff] %v565
      %598 = vst [vmem:[#allocation6 + $0x30] sm:$0xff] %v566
      %599 = vst [vmem:[#allocation6 + $0x38] sm:$0xff] %v567
      %600 = vst [vmem:[#allocation6 + $0x40] sm:$0xff] %v568
      %601 = vst [vmem:[#allocation6 + $0x48] sm:$0xff] %v569
      %602 = vst [vmem:[#allocation6 + $0x50] sm:$0xff] %v570
      %603 = vst [vmem:[#allocation6 + $0x58] sm:$0xff] %v571
      %604 = vst [vmem:[#allocation6 + $0x60] sm:$0xff] %v572
      %605 = vst [vmem:[#allocation6 + $0x68] sm:$0xff] %v573
      %606 = vst [vmem:[#allocation6 + $0x70] sm:$0xff] %v574
      %607 = vst [vmem:[#allocation6 + $0x78] sm:$0xff] %v575
      %608 = vst [vmem:[#allocation6 + $0x80] sm:$0xff] %v576
      %609 = vst [vmem:[#allocation6 + $0x88] sm:$0xff] %v577
      %610 = vst [vmem:[#allocation6 + $0x90] sm:$0xff] %v578
      %611 = vst [vmem:[#allocation6 + $0x98] sm:$0xff] %v579
      %612 = vst [vmem:[#allocation6 + $0xa0] sm:$0xff] %v580
      %613 = vst [vmem:[#allocation6 + $0xa8] sm:$0xff] %v581
      %614 = vst [vmem:[#allocation6 + $0xb0] sm:$0xff] %v582
      %615 = vst [vmem:[#allocation6 + $0xb8] sm:$0xff] %v583
      %616 = vst [vmem:[#allocation6 + $0xc0] sm:$0xff] %v584
      %617 = vst [vmem:[#allocation6 + $0xc8] sm:$0xff] %v585
      %618 = vst [vmem:[#allocation6 + $0xd0] sm:$0xff] %v586
      %619 = vst [vmem:[#allocation6 + $0xd8] sm:$0xff] %v587
      %620 = vst [vmem:[#allocation6 + $0xe0] sm:$0xff] %v588
      %621 = vst [vmem:[#allocation6 + $0xe8] sm:$0xff] %v589
      %622 = vst [vmem:[#allocation6 + $0xf0] sm:$0xff] %v590
      %623 = vst [vmem:[#allocation6 + $0xf8] sm:$0xff] %v591
    $region25: #{wan_self_attention_forward.5} parent=1 // pred_fallthru
      _
    // Predicated region
    $region26: #{wan_self_attention_forward.5} parent=1 // pred_check
      _
    $region27: #{wan_self_attention_forward.5} parent=1 // pred_check_branch
      %625 = sbr.rel (0) target = $region29
    $region28: #{wan_self_attention_forward.5} parent=1 // pred_region
      %627 = vsyncadd [#allocation5], 0
      %s628 = sshll.u32 [#allocation6], 4
      %s629 = int_to_ptr.vmem [resolvable:$true] %s628
      %s630 = sshll.u32 %s3, 4
      %s631 = int_to_ptr.hbm [resolvable:$true] %s630
      %636 = dma.vmem_to_hbm [thread:$0]  %s629, 4096, %s631, [#allocation5], 256, 256, 16
    $region29: #{wan_self_attention_forward.5} parent=1 // pred_fallthru
      _
    // Predicated region
    $region30: #{wan_self_attention_forward.5} parent=1 // pred_check
      _
    $region31: #{wan_self_attention_forward.5} parent=1 // pred_check_branch
      %638 = sbr.rel (0) target = $region33
    $region32: #{wan_self_attention_forward.5} parent=1 // pred_region
      %640 = dma.done [#allocation5], 4096
    $region33: #{wan_self_attention_forward.5} parent=1 // pred_fallthru
      _
    %641 = vsyncpa [#allocation4], 1
    %642 = vsyncpa [#allocation5], 1

// kernel: wan_self_attention_forward.3
$region0: #{wan_self_attention_forward.3}
  #allocation0 [shape = 'u32[]', space=smem, size = 0x4, offset = 0x4, fixed_abs, tag = 'smem constant byte address 0x4 - core index']
  #allocation1 [shape = 'u32[72,128]{1,0:T(1,128)}', space=vmem, size = 0x9000, scoped, tag = 'internal scratch']
  #allocation2 [shape = 'f32[64,768]{1,0:T(8,128)}', space=vmem, size = 0x30000, scoped, tag = 'scratch operand']
  %s0 = inlined_call_operand.hbm [shape: f32[2,64,256], index: 0, kind: input, shape index: {}]
  %s1 = inlined_call_operand.hbm [shape: f32[256,768], index: 1, kind: input, shape index: {}]
  %s2 = inlined_call_operand.hbm [shape: f32[1,768], index: 2, kind: input, shape index: {}]
  %s3 = inlined_call_operand.vmem [shape: f32[1,256], index: 3, kind: input, shape index: {}]
  %s4 = inlined_call_operand.vmem [shape: f32[1,256], index: 4, kind: input, shape index: {}]
  %s5 = inlined_call_operand.hbm [shape: f32[64,128], index: 5, kind: input, shape index: {}]
  %s6 = inlined_call_operand.hbm [shape: f32[64,128], index: 6, kind: input, shape index: {}]
  %s7 = inlined_call_operand.hbm [shape: f32[64,128], index: 7, kind: input, shape index: {}]
  %s8 = inlined_call_operand.vmem [shape: f32[2,64,256], index: 8, kind: output, shape index: {0}]
  %s9 = inlined_call_operand.vmem [shape: f32[2,64,256], index: 9, kind: output, shape index: {1}]
  %s10 = inlined_call_operand.vmem [shape: f32[2,64,256], index: 10, kind: output, shape index: {2}]
  %11 = xla_tuple %s8, %s9, %s10
  %s12 = sld [smem:[#allocation0]]
  $region113: #{wan_self_attention_forward.3} parent=0
    _
  %s14 = ssub.s32 1, %s12
  %s15 = scalar_select 0, %s14, %s12
  $region1: #{wan_self_attention_forward.3} parent=0
    #allocation3 [shape = 'u8[131072]{0}', space=vmem, size = 0x20000, scoped, tag = 'input window, operand 0']
    #allocation4 [shape = 's32[2]{0}', space=sflag, size = 0x8, scoped, tag = 'scoped memory for wan_self_attention_forward.3']
    #allocation5 [shape = 'u8[786432]{0}', space=vmem, size = 0xc0000, scoped, tag = 'input window, operand 1, single buffered']
    #allocation6 [shape = 's32[1]{0}', space=sflag, size = 0x4, scoped, tag = 'scoped memory for wan_self_attention_forward.3']
    #allocation7 [shape = 'u8[3072]{0}', space=vmem, size = 0xc00, scoped, tag = 'input window, operand 2, single buffered']
    #allocation8 [shape = 'u8[32768]{0}', space=vmem, size = 0x8000, scoped, tag = 'input window, operand 5, single buffered']
    #allocation9 [shape = 's32[1]{0}', space=sflag, size = 0x4, scoped, tag = 'scoped memory for wan_self_attention_forward.3']
    #allocation10 [shape = 'u8[32768]{0}', space=vmem, size = 0x8000, scoped, tag = 'input window, operand 6, single buffered']
    #allocation11 [shape = 'u8[32768]{0}', space=vmem, size = 0x8000, scoped, tag = 'input window, operand 7, single buffered']
    #allocation12 [shape = 's32[1]{0}', space=sflag, size = 0x4, scoped, tag = 'scoped memory for wan_self_attention_forward.3']
    %16 = vsyncpa [#allocation4], 0
    %s17 = scalar_lea.sflag [#allocation4], 1
    %18 = vsyncpa %s17, 0
    %19 = vsyncpa [#allocation6], 0
    %20 = vsyncpa [#allocation9], 0
    %21 = vsyncpa [#allocation12], 0
    loop: start=0, step=1, limit=4
    $region2: #{wan_self_attention_forward.3} parent=1 // loop_pre_header
      _
    $region3: #{wan_self_attention_forward.3} parent=1 // loop_header
      %s23 = sphi 0, %s27
      %p24 = scmp.ge.s32.totalorder %s23, 4
      %s30 = sphi 0, %s49
      %s31 = sphi 0, %s45
      %s32 = sphi 0, %s41
      %s33 = sphi 0, %s30
      %s34 = sphi 0, %s31
      %s35 = sphi 0, %s32
      %s36 = sphi 0, %s33
      %s37 = sphi 0, %s34
      %s38 = sphi 0, %s35
      %s56 = sphi 0, %s58
      %s59 = sphi 0, %s56
      %s60 = sphi 0, %s59
      %s76 = sphi 0, %s60
      %s82 = sphi 0, %s84
      %s85 = sphi 0, %s82
      %s86 = sphi 0, %s85
      %s102 = sphi 0, %s86
      %s106 = sphi 0, %s106
      %s108 = sphi 0, %s106
      %s109 = sphi 0, %s108
      %s123 = sphi 0, %s109
      %s127 = sphi 0, %s127
      %s129 = sphi 0, %s127
      %s130 = sphi 0, %s129
      %s144 = sphi 0, %s130
      %s148 = sphi 0, %s148
      %s150 = sphi 0, %s148
      %s151 = sphi 0, %s150
      %s165 = sphi 0, %s151
      %s171 = sphi 0, %s173
      %s174 = sphi 0, %s171
      %s175 = sphi 0, %s174
      %s191 = sphi 0, %s175
      %s197 = sphi 0, %s199
      %s200 = sphi 0, %s197
      %s201 = sphi 0, %s200
      %s217 = sphi 0, %s201
      %s223 = sphi 0, %s225
      %s226 = sphi 0, %s223
      %s227 = sphi 0, %s226
      %s243 = sphi 0, %s227
      %s251 = sphi 0, %s253
      %s254 = sphi 0, %s251
      %s255 = sphi 0, %s254
      %s271 = sphi 0, %s255
      %s279 = sphi 0, %s281
      %s282 = sphi 0, %s279
      %s283 = sphi 0, %s282
      %s299 = sphi 0, %s283
      %s307 = sphi 0, %s309
      %s310 = sphi 0, %s307
      %s311 = sphi 0, %s310
      %s327 = sphi 0, %s311
    $region4: #{wan_self_attention_forward.3} parent=1 // loop_header_branch
      %26 = sbr.rel (%p24) target = $region8
    $region5: #{wan_self_attention_forward.3} parent=1 // loop_body
      %s28 = ssub.s32 %s23, 1
      %s29 = ssub.s32 %s23, 2
      %s39 = sadd.s32 1, %s32
      %p40 = scmp.ge.s32.totalorder %s39, 1
      %s41 = scalar_select %p40, 0, %s39
      %s42 = sadd.s32 1, %s31
      %s43 = scalar_select %p40, %s42, %s31
      %p44 = scmp.ge.s32.totalorder %s43, 1
      %s45 = scalar_select %p44, 0, %s43
      %s46 = sadd.s32 1, %s30
      %s47 = scalar_select %p44, %s46, %s30
      %p48 = scmp.ge.s32.totalorder %s47, 2
      %s49 = scalar_select %p48, 0, %s47
      %s50 = ssub.s32 %s30, %s49
      %s51 = ssub.s32 %s31, %s45
      %s52 = sor.u32 %s50, %s51
      %s53 = ssub.s32 %s32, %s41
      %s54 = sor.u32 %s52, %s53
      %p55 = scmp.eq.s32.totalorder %s54, 0
      %s57 = sadd.s32 %s56, 1
      %s58 = scalar_select %p55, %s56, %s57
      %p61 = pneg %p55
      %p62 = scmp.eq.s32.totalorder %s23, 1
      %p63 = por %p61, %p62
      %p64 = scmp.ne.s32.totalorder %s56, %s59
      %p65 = scmp.eq.s32.totalorder %s23, 0
      %p66 = por %p64, %p65
      %p67 = scmp.ne.s32.totalorder %s56, %s59
      %p68 = scmp.eq.s32.totalorder %s28, 1
      %p69 = por %p67, %p68
      %p70 = scmp.ne.s32.totalorder %s59, %s60
      %p71 = scmp.eq.s32.totalorder %s28, 0
      %p72 = por %p70, %p71
      %p73 = scmp.ne.s32.totalorder %s59, %s60
      %p74 = scmp.eq.s32.totalorder %s29, 1
      %p75 = por %p73, %p74
      %p77 = scmp.ne.s32.totalorder %s60, %s76
      %p78 = scmp.eq.s32.totalorder %s29, 0
      %p79 = por %p77, %p78
      %s80 = ssub.s32 %s32, %s41
      %p81 = scmp.eq.s32.totalorder %s80, 0
      %s83 = sadd.s32 %s82, 1
      %s84 = scalar_select %p81, %s82, %s83
      %p87 = pneg %p81
      %p88 = scmp.eq.s32.totalorder %s23, 1
      %p89 = por %p87, %p88
      %p90 = scmp.ne.s32.totalorder %s82, %s85
      %p91 = scmp.eq.s32.totalorder %s23, 0
      %p92 = por %p90, %p91
      %p93 = scmp.ne.s32.totalorder %s82, %s85
      %p94 = scmp.eq.s32.totalorder %s28, 1
      %p95 = por %p93, %p94
      %p96 = scmp.ne.s32.totalorder %s85, %s86
      %p97 = scmp.eq.s32.totalorder %s28, 0
      %p98 = por %p96, %p97
      %p99 = scmp.ne.s32.totalorder %s85, %s86
      %p100 = scmp.eq.s32.totalorder %s29, 1
      %p101 = por %p99, %p100
      %p103 = scmp.ne.s32.totalorder %s86, %s102
      %p104 = scmp.eq.s32.totalorder %s29, 0
      %p105 = por %p103, %p104
      %s107 = sadd.s32 %s106, 1
      %p110 = scmp.eq.s32.totalorder %s23, 1
      %p111 = scmp.ne.s32.totalorder %s106, %s108
      %p112 = scmp.eq.s32.totalorder %s23, 0
      %p113 = por %p111, %p112
      %p114 = scmp.ne.s32.totalorder %s106, %s108
      %p115 = scmp.eq.s32.totalorder %s28, 1
      %p116 = por %p114, %p115
      %p117 = scmp.ne.s32.totalorder %s108, %s109
      %p118 = scmp.eq.s32.totalorder %s28, 0
      %p119 = por %p117, %p118
      %p120 = scmp.ne.s32.totalorder %s108, %s109
      %p121 = scmp.eq.s32.totalorder %s29, 1
      %p122 = por %p120, %p121
      %p124 = scmp.ne.s32.totalorder %s109, %s123
      %p125 = scmp.eq.s32.totalorder %s29, 0
      %p126 = por %p124, %p125
      %s128 = sadd.s32 %s127, 1
      %p131 = scmp.eq.s32.totalorder %s23, 1
      %p132 = scmp.ne.s32.totalorder %s127, %s129
      %p133 = scmp.eq.s32.totalorder %s23, 0
      %p134 = por %p132, %p133
      %p135 = scmp.ne.s32.totalorder %s127, %s129
      %p136 = scmp.eq.s32.totalorder %s28, 1
      %p137 = por %p135, %p136
      %p138 = scmp.ne.s32.totalorder %s129, %s130
      %p139 = scmp.eq.s32.totalorder %s28, 0
      %p140 = por %p138, %p139
      %p141 = scmp.ne.s32.totalorder %s129, %s130
      %p142 = scmp.eq.s32.totalorder %s29, 1
      %p143 = por %p141, %p142
      %p145 = scmp.ne.s32.totalorder %s130, %s144
      %p146 = scmp.eq.s32.totalorder %s29, 0
      %p147 = por %p145, %p146
      %s149 = sadd.s32 %s148, 1
      %p152 = scmp.eq.s32.totalorder %s23, 1
      %p153 = scmp.ne.s32.totalorder %s148, %s150
      %p154 = scmp.eq.s32.totalorder %s23, 0
      %p155 = por %p153, %p154
      %p156 = scmp.ne.s32.totalorder %s148, %s150
      %p157 = scmp.eq.s32.totalorder %s28, 1
      %p158 = por %p156, %p157
      %p159 = scmp.ne.s32.totalorder %s150, %s151
      %p160 = scmp.eq.s32.totalorder %s28, 0
      %p161 = por %p159, %p160
      %p162 = scmp.ne.s32.totalorder %s150, %s151
      %p163 = scmp.eq.s32.totalorder %s29, 1
      %p164 = por %p162, %p163
      %p166 = scmp.ne.s32.totalorder %s151, %s165
      %p167 = scmp.eq.s32.totalorder %s29, 0
      %p168 = por %p166, %p167
      %s169 = ssub.s32 %s31, %s45
      %p170 = scmp.eq.s32.totalorder %s169, 0
      %s172 = sadd.s32 %s171, 1
      %s173 = scalar_select %p170, %s171, %s172
      %p176 = pneg %p170
      %p177 = scmp.eq.s32.totalorder %s23, 1
      %p178 = por %p176, %p177
      %p179 = scmp.ne.s32.totalorder %s171, %s174
      %p180 = scmp.eq.s32.totalorder %s23, 0
      %p181 = por %p179, %p180
      %p182 = scmp.ne.s32.totalorder %s171, %s174
      %p183 = scmp.eq.s32.totalorder %s28, 1
      %p184 = por %p182, %p183
      %p185 = scmp.ne.s32.totalorder %s174, %s175
      %p186 = scmp.eq.s32.totalorder %s28, 0
      %p187 = por %p185, %p186
      %p188 = scmp.ne.s32.totalorder %s174, %s175
      %p189 = scmp.eq.s32.totalorder %s29, 1
      %p190 = por %p188, %p189
      %p192 = scmp.ne.s32.totalorder %s175, %s191
      %p193 = scmp.eq.s32.totalorder %s29, 0
      %p194 = por %p192, %p193
      %s195 = ssub.s32 %s31, %s45
      %p196 = scmp.eq.s32.totalorder %s195, 0
      %s198 = sadd.s32 %s197, 1
      %s199 = scalar_select %p196, %s197, %s198
      %p202 = pneg %p196
      %p203 = scmp.eq.s32.totalorder %s23, 1
      %p204 = por %p202, %p203
      %p205 = scmp.ne.s32.totalorder %s197, %s200
      %p206 = scmp.eq.s32.totalorder %s23, 0
      %p207 = por %p205, %p206
      %p208 = scmp.ne.s32.totalorder %s197, %s200
      %p209 = scmp.eq.s32.totalorder %s28, 1
      %p210 = por %p208, %p209
      %p211 = scmp.ne.s32.totalorder %s200, %s201
      %p212 = scmp.eq.s32.totalorder %s28, 0
      %p213 = por %p211, %p212
      %p214 = scmp.ne.s32.totalorder %s200, %s201
      %p215 = scmp.eq.s32.totalorder %s29, 1
      %p216 = por %p214, %p215
      %p218 = scmp.ne.s32.totalorder %s201, %s217
      %p219 = scmp.eq.s32.totalorder %s29, 0
      %p220 = por %p218, %p219
      %s221 = ssub.s32 %s31, %s45
      %p222 = scmp.eq.s32.totalorder %s221, 0
      %s224 = sadd.s32 %s223, 1
      %s225 = scalar_select %p222, %s223, %s224
      %p228 = pneg %p222
      %p229 = scmp.eq.s32.totalorder %s23, 1
      %p230 = por %p228, %p229
      %p231 = scmp.ne.s32.totalorder %s223, %s226
      %p232 = scmp.eq.s32.totalorder %s23, 0
      %p233 = por %p231, %p232
      %p234 = scmp.ne.s32.totalorder %s223, %s226
      %p235 = scmp.eq.s32.totalorder %s28, 1
      %p236 = por %p234, %p235
      %p237 = scmp.ne.s32.totalorder %s226, %s227
      %p238 = scmp.eq.s32.totalorder %s28, 0
      %p239 = por %p237, %p238
      %p240 = scmp.ne.s32.totalorder %s226, %s227
      %p241 = scmp.eq.s32.totalorder %s29, 1
      %p242 = por %p240, %p241
      %p244 = scmp.ne.s32.totalorder %s227, %s243
      %p245 = scmp.eq.s32.totalorder %s29, 0
      %p246 = por %p244, %p245
      %s247 = ssub.s32 %s30, %s49
      %s248 = ssub.s32 %s31, %s45
      %s249 = sor.u32 %s247, %s248
      %p250 = scmp.eq.s32.totalorder %s249, 0
      %s252 = sadd.s32 %s251, 1
      %s253 = scalar_select %p250, %s251, %s252
      %p256 = pneg %p250
      %p257 = scmp.eq.s32.totalorder %s23, 1
      %p258 = por %p256, %p257
      %p259 = scmp.ne.s32.totalorder %s251, %s254
      %p260 = scmp.eq.s32.totalorder %s23, 0
      %p261 = por %p259, %p260
      %p262 = scmp.ne.s32.totalorder %s251, %s254
      %p263 = scmp.eq.s32.totalorder %s28, 1
      %p264 = por %p262, %p263
      %p265 = scmp.ne.s32.totalorder %s254, %s255
      %p266 = scmp.eq.s32.totalorder %s28, 0
      %p267 = por %p265, %p266
      %p268 = scmp.ne.s32.totalorder %s254, %s255
      %p269 = scmp.eq.s32.totalorder %s29, 1
      %p270 = por %p268, %p269
      %p272 = scmp.ne.s32.totalorder %s255, %s271
      %p273 = scmp.eq.s32.totalorder %s29, 0
      %p274 = por %p272, %p273
      %s275 = ssub.s32 %s30, %s49
      %s276 = ssub.s32 %s31, %s45
      %s277 = sor.u32 %s275, %s276
      %p278 = scmp.eq.s32.totalorder %s277, 0
      %s280 = sadd.s32 %s279, 1
      %s281 = scalar_select %p278, %s279, %s280
      %p284 = pneg %p278
      %p285 = scmp.eq.s32.totalorder %s23, 1
      %p286 = por %p284, %p285
      %p287 = scmp.ne.s32.totalorder %s279, %s282
      %p288 = scmp.eq.s32.totalorder %s23, 0
      %p289 = por %p287, %p288
      %p290 = scmp.ne.s32.totalorder %s279, %s282
      %p291 = scmp.eq.s32.totalorder %s28, 1
      %p292 = por %p290, %p291
      %p293 = scmp.ne.s32.totalorder %s282, %s283
      %p294 = scmp.eq.s32.totalorder %s28, 0
      %p295 = por %p293, %p294
      %p296 = scmp.ne.s32.totalorder %s282, %s283
      %p297 = scmp.eq.s32.totalorder %s29, 1
      %p298 = por %p296, %p297
      %p300 = scmp.ne.s32.totalorder %s283, %s299
      %p301 = scmp.eq.s32.totalorder %s29, 0
      %p302 = por %p300, %p301
      %s303 = ssub.s32 %s30, %s49
      %s304 = ssub.s32 %s31, %s45
      %s305 = sor.u32 %s303, %s304
      %p306 = scmp.eq.s32.totalorder %s305, 0
      %s308 = sadd.s32 %s307, 1
      %s309 = scalar_select %p306, %s307, %s308
      %p312 = pneg %p306
      %p313 = scmp.eq.s32.totalorder %s23, 1
      %p314 = por %p312, %p313
      %p315 = scmp.ne.s32.totalorder %s307, %s310
      %p316 = scmp.eq.s32.totalorder %s23, 0
      %p317 = por %p315, %p316
      %p318 = scmp.ne.s32.totalorder %s307, %s310
      %p319 = scmp.eq.s32.totalorder %s28, 1
      %p320 = por %p318, %p319
      %p321 = scmp.ne.s32.totalorder %s310, %s311
      %p322 = scmp.eq.s32.totalorder %s28, 0
      %p323 = por %p321, %p322
      %p324 = scmp.ne.s32.totalorder %s310, %s311
      %p325 = scmp.eq.s32.totalorder %s29, 1
      %p326 = por %p324, %p325
      %p328 = scmp.ne.s32.totalorder %s311, %s327
      %p329 = scmp.eq.s32.totalorder %s29, 0
      %p330 = por %p328, %p329
      %p331 = scmp.le.s32.totalorder 1, %s23
      %p332 = scmp.lt.s32.totalorder %s23, 3
      %p333 = pnand %p331, %p332
      %p334 = pneg %p333
      // Predicated region
      $region9: #{wan_self_attention_forward.3} parent=5 // pred_check
        _
      $region10: #{wan_self_attention_forward.3} parent=5 // pred_check_branch
        %336 = sbr.rel (%p333) target = $region12
      $region11: #{wan_self_attention_forward.3} parent=5 // pred_region
        %s337 = ssub.s32 %s23, 1
        // Predicated region
        $region13: #{wan_self_attention_forward.3} parent=11 // pred_check
          %p338 = pneg %p98
        $region14: #{wan_self_attention_forward.3} parent=11 // pred_check_branch
          %340 = sbr.rel (%p338) target = $region16
        $region15: #{wan_self_attention_forward.3} parent=11 // pred_region
          %s341 = smul.u32 32, %s35
          %343 = vsyncadd [#allocation6], 0
          %s344 = smul.addr %s341, 6
          %s345 = smul.addr %s344, 8
          %s346 = scalar_lea.hbm %s1, %s345
          %s347 = sshll.u32 %s346, 4
          %s348 = int_to_ptr.hbm [resolvable:$true] %s347
          %s349 = sshll.u32 [#allocation5], 4
          %s350 = int_to_ptr.vmem [resolvable:$true] %s349
          %355 = dma.hbm_to_vmem [thread:$0]  %s348, 24576, %s350, [#allocation6], 768, 768, 48
        $region16: #{wan_self_attention_forward.3} parent=11 // pred_fallthru
          _
        // Predicated region
        $region17: #{wan_self_attention_forward.3} parent=11 // pred_check
          %p356 = pneg %p119
        $region18: #{wan_self_attention_forward.3} parent=11 // pred_check_branch
          %358 = sbr.rel (%p356) target = $region20
        $region19: #{wan_self_attention_forward.3} parent=11 // pred_region
          %360 = vsyncadd [#allocation6], 0
          %s362 = sshll.u32 %s2, 4
          %s363 = int_to_ptr.hbm [resolvable:$true] %s362
          %s364 = sshll.u32 [#allocation7], 4
          %s365 = int_to_ptr.vmem [resolvable:$true] %s364
          %367 = dma.hbm_to_vmem [thread:$0]  %s363, 96, %s365, [#allocation6]
        $region20: #{wan_self_attention_forward.3} parent=11 // pred_fallthru
          _
        // Predicated region
        $region21: #{wan_self_attention_forward.3} parent=11 // pred_check
          %p368 = pneg %p140
        $region22: #{wan_self_attention_forward.3} parent=11 // pred_check_branch
          %370 = sbr.rel (%p368) target = $region24
        $region23: #{wan_self_attention_forward.3} parent=11 // pred_region
          _
        $region24: #{wan_self_attention_forward.3} parent=11 // pred_fallthru
          _
        // Predicated region
        $region25: #{wan_self_attention_forward.3} parent=11 // pred_check
          %p371 = pneg %p161
        $region26: #{wan_self_attention_forward.3} parent=11 // pred_check_branch
          %373 = sbr.rel (%p371) target = $region28
        $region27: #{wan_self_attention_forward.3} parent=11 // pred_region
          _
        $region28: #{wan_self_attention_forward.3} parent=11 // pred_fallthru
          _
        // Predicated region
        $region29: #{wan_self_attention_forward.3} parent=11 // pred_check
          %p374 = pneg %p187
        $region30: #{wan_self_attention_forward.3} parent=11 // pred_check_branch
          %376 = sbr.rel (%p374) target = $region32
        $region31: #{wan_self_attention_forward.3} parent=11 // pred_region
          %s377 = smul.u32 8, %s34
          %379 = vsyncadd [#allocation9], 0
          %s380 = smul.addr %s377, 8
          %s381 = scalar_lea.hbm %s5, %s380
          %s382 = sshll.u32 %s381, 4
          %s383 = int_to_ptr.hbm [resolvable:$true] %s382
          %s384 = sshll.u32 [#allocation8], 4
          %s385 = int_to_ptr.vmem [resolvable:$true] %s384
          %390 = dma.hbm_to_vmem [thread:$0]  %s383, 1024, %s385, [#allocation9], 128, 128, 8
        $region32: #{wan_self_attention_forward.3} parent=11 // pred_fallthru
          _
        // Predicated region
        $region33: #{wan_self_attention_forward.3} parent=11 // pred_check
          %p391 = pneg %p213
        $region34: #{wan_self_attention_forward.3} parent=11 // pred_check_branch
          %393 = sbr.rel (%p391) target = $region36
        $region35: #{wan_self_attention_forward.3} parent=11 // pred_region
          %s394 = smul.u32 8, %s34
          %396 = vsyncadd [#allocation9], 0
          %s397 = smul.addr %s394, 8
          %s398 = scalar_lea.hbm %s6, %s397
          %s399 = sshll.u32 %s398, 4
          %s400 = int_to_ptr.hbm [resolvable:$true] %s399
          %s401 = sshll.u32 [#allocation10], 4
          %s402 = int_to_ptr.vmem [resolvable:$true] %s401
          %407 = dma.hbm_to_vmem [thread:$0]  %s400, 1024, %s402, [#allocation9], 128, 128, 8
        $region36: #{wan_self_attention_forward.3} parent=11 // pred_fallthru
          _
        // Predicated region
        $region37: #{wan_self_attention_forward.3} parent=11 // pred_check
          %p408 = pneg %p239
        $region38: #{wan_self_attention_forward.3} parent=11 // pred_check_branch
          %410 = sbr.rel (%p408) target = $region40
        $region39: #{wan_self_attention_forward.3} parent=11 // pred_region
          %s411 = smul.u32 8, %s34
          %413 = vsyncadd [#allocation12], 0
          %s414 = smul.addr %s411, 8
          %s415 = scalar_lea.hbm %s7, %s414
          %s416 = sshll.u32 %s415, 4
          %s417 = int_to_ptr.hbm [resolvable:$true] %s416
          %s418 = sshll.u32 [#allocation11], 4
          %s419 = int_to_ptr.vmem [resolvable:$true] %s418
          %424 = dma.hbm_to_vmem [thread:$0]  %s417, 1024, %s419, [#allocation12], 128, 128, 8
        $region40: #{wan_self_attention_forward.3} parent=11 // pred_fallthru
          _
      $region12: #{wan_self_attention_forward.3} parent=5 // pred_fallthru
        _
      %p425 = scmp.lt.s32.totalorder %s23, 2
      // Predicated region
      $region41: #{wan_self_attention_forward.3} parent=5 // pred_check
        %p426 = pneg %p425
      $region42: #{wan_self_attention_forward.3} parent=5 // pred_check_branch
        %428 = sbr.rel (%p426) target = $region44
      $region43: #{wan_self_attention_forward.3} parent=5 // pred_region
        // Predicated region
        $region45: #{wan_self_attention_forward.3} parent=43 // pred_check
          %p429 = pneg %p66
        $region46: #{wan_self_attention_forward.3} parent=43 // pred_check_branch
          %431 = sbr.rel (%p429) target = $region48
        $region47: #{wan_self_attention_forward.3} parent=43 // pred_region
          %s432 = sand.u32 %s56, 1
          %s433 = scalar_lea.sflag [#allocation4], %s432
          %s434 = sand.u32 %s56, 1
          %s435 = smul.addr %s434, 128
          %s436 = scalar_lea.vmem [#allocation3], %s435
          %s437 = smul.u32 8, %s31
          %s438 = smul.u32 2, %s32
          %440 = vsyncadd %s433, 0
          %s441 = smul.addr %s437, 2
          %s442 = sadd.s32 %s438, %s441
          %s443 = smul.addr %s30, 16
          %s444 = sadd.s32 %s442, %s443
          %s445 = smul.addr %s444, 8
          %s446 = scalar_lea.hbm %s0, %s445
          %s447 = sshll.u32 %s446, 4
          %s448 = int_to_ptr.hbm [resolvable:$true] %s447
          %s449 = sshll.u32 %s436, 4
          %s450 = int_to_ptr.vmem [resolvable:$true] %s449
          %455 = dma.hbm_to_vmem [thread:$0]  %s448, 2048, %s450, %s433, 256, 256, 16
        $region48: #{wan_self_attention_forward.3} parent=43 // pred_fallthru
          _
      $region44: #{wan_self_attention_forward.3} parent=5 // pred_fallthru
        _
      %p456 = scmp.le.s32.totalorder 1, %s23
      %p457 = scmp.lt.s32.totalorder %s23, 3
      %p458 = pnand %p456, %p457
      %p459 = pneg %p458
      // Predicated region
      $region49: #{wan_self_attention_forward.3} parent=5 // pred_check
        _
      $region50: #{wan_self_attention_forward.3} parent=5 // pred_check_branch
        %461 = sbr.rel (%p458) target = $region52
      $region51: #{wan_self_attention_forward.3} parent=5 // pred_region
        %s462 = ssub.s32 %s23, 1
        %s463 = sand.u32 %s59, 1
        %s464 = scalar_lea.sflag [#allocation4], %s463
        %s465 = sand.u32 %s59, 1
        %s466 = smul.addr %s465, 128
        %s467 = scalar_lea.vmem [#allocation3], %s466
        // Predicated region
        $region53: #{wan_self_attention_forward.3} parent=51 // pred_check
          %p468 = pneg %p72
        $region54: #{wan_self_attention_forward.3} parent=51 // pred_check_branch
          %470 = sbr.rel (%p468) target = $region56
        $region55: #{wan_self_attention_forward.3} parent=51 // pred_region
          %472 = dma.done %s464, 2048
        $region56: #{wan_self_attention_forward.3} parent=51 // pred_fallthru
          _
        // Predicated region
        $region57: #{wan_self_attention_forward.3} parent=51 // pred_check
          %p473 = pneg %p98
        $region58: #{wan_self_attention_forward.3} parent=51 // pred_check_branch
          %475 = sbr.rel (%p473) target = $region60
        $region59: #{wan_self_attention_forward.3} parent=51 // pred_region
          %477 = dma.done [#allocation6], 24576
        $region60: #{wan_self_attention_forward.3} parent=51 // pred_fallthru
          _
        // Predicated region
        $region61: #{wan_self_attention_forward.3} parent=51 // pred_check
          %p478 = pneg %p119
        $region62: #{wan_self_attention_forward.3} parent=51 // pred_check_branch
          %480 = sbr.rel (%p478) target = $region64
        $region63: #{wan_self_attention_forward.3} parent=51 // pred_region
          %482 = dma.done [#allocation6], 96
        $region64: #{wan_self_attention_forward.3} parent=51 // pred_fallthru
          _
        // Predicated region
        $region65: #{wan_self_attention_forward.3} parent=51 // pred_check
          %p483 = pneg %p187
        $region66: #{wan_self_attention_forward.3} parent=51 // pred_check_branch
          %485 = sbr.rel (%p483) target = $region68
        $region67: #{wan_self_attention_forward.3} parent=51 // pred_region
          %487 = dma.done [#allocation9], 1024
        $region68: #{wan_self_attention_forward.3} parent=51 // pred_fallthru
          _
        // Predicated region
        $region69: #{wan_self_attention_forward.3} parent=51 // pred_check
          %p488 = pneg %p213
        $region70: #{wan_self_attention_forward.3} parent=51 // pred_check_branch
          %490 = sbr.rel (%p488) target = $region72
        $region71: #{wan_self_attention_forward.3} parent=51 // pred_region
          %492 = dma.done [#allocation9], 1024
        $region72: #{wan_self_attention_forward.3} parent=51 // pred_fallthru
          _
        // Predicated region
        $region73: #{wan_self_attention_forward.3} parent=51 // pred_check
          %p493 = pneg %p239
        $region74: #{wan_self_attention_forward.3} parent=51 // pred_check_branch
          %495 = sbr.rel (%p493) target = $region76
        $region75: #{wan_self_attention_forward.3} parent=51 // pred_region
          %497 = dma.done [#allocation12], 1024
        $region76: #{wan_self_attention_forward.3} parent=51 // pred_fallthru
          _
        %s498 = sand.u32 %s59, 1
        %s499 = scalar_lea.sflag [#allocation4], %s498
        %s500 = sand.u32 %s59, 1
        %s501 = smul.addr %s500, 128
        %s502 = scalar_lea.vmem [#allocation3], %s501
        %p503 = pneg %p72
        %p504 = pneg %p69
        %p505 = pneg %p98
        %p506 = pneg %p95
        %p507 = pneg %p119
        %p508 = pneg %p116
        %p509 = pneg %p140
        %p510 = pneg %p137
        %p511 = pneg %p161
        %p512 = pneg %p158
        %p513 = pneg %p187
        %p514 = pneg %p184
        %p515 = pneg %p213
        %p516 = pneg %p210
        %p517 = pneg %p239
        %p518 = pneg %p236
        %p519 = pneg %p267
        %p520 = pneg %p264
        %s521 = smul.u32 8, %s34
        %p522 = scmp.lt.s32.totalorder %s33, 1
        %s523 = scalar_select %p522, %s33, 1
        %p524 = scmp.lt.s32.totalorder %s521, 7
        %s525 = scalar_select %p524, %s521, 7
        %s526 = smul.addr %s525, 2
        %s527 = smul.addr %s523, 16
        %s528 = sadd.s32 %s526, %s527
        %s529 = smul.addr %s528, 8
        %s530 = scalar_lea.vmem %s8, %s529
        %p531 = pneg %p295
        %p532 = pneg %p292
        %s533 = smul.u32 8, %s34
        %p534 = scmp.lt.s32.totalorder %s33, 1
        %s535 = scalar_select %p534, %s33, 1
        %p536 = scmp.lt.s32.totalorder %s533, 7
        %s537 = scalar_select %p536, %s533, 7
        %s538 = smul.addr %s537, 2
        %s539 = smul.addr %s535, 16
        %s540 = sadd.s32 %s538, %s539
        %s541 = smul.addr %s540, 8
        %s542 = scalar_lea.vmem %s9, %s541
        %p543 = pneg %p323
        %p544 = pneg %p320
        %s545 = smul.u32 8, %s34
        %p546 = scmp.lt.s32.totalorder %s33, 1
        %s547 = scalar_select %p546, %s33, 1
        %p548 = scmp.lt.s32.totalorder %s545, 7
        %s549 = scalar_select %p548, %s545, 7
        %s550 = smul.addr %s549, 2
        %s551 = smul.addr %s547, 16
        %s552 = sadd.s32 %s550, %s551
        %s553 = smul.addr %s552, 8
        %s554 = scalar_lea.vmem %s10, %s553
        %s555 = smul.u32 8, %s34
        %s556 = smul.u32 2, %s35
        %s557 = smul.u32 32, %s35
        %s558 = smul.u32 8, %s34
        %s559 = smul.u32 8, %s34
        %s560 = smul.u32 8, %s34
        %s561 = smul.u32 8, %s34
        %p562 = scmp.lt.s32.totalorder %s33, 1
        %s563 = scalar_select %p562, %s33, 1
        %p564 = scmp.lt.s32.totalorder %s561, 7
        %s565 = scalar_select %p564, %s561, 7
        %s566 = smul.addr %s565, 2
        %s567 = smul.addr %s563, 16
        %s568 = sadd.s32 %s566, %s567
        %s569 = smul.addr %s568, 8
        %s570 = scalar_lea.vmem %s8, %s569
        %s571 = smul.u32 8, %s34
        %s572 = smul.u32 8, %s34
        %p573 = scmp.lt.s32.totalorder %s33, 1
        %s574 = scalar_select %p573, %s33, 1
        %p575 = scmp.lt.s32.totalorder %s572, 7
        %s576 = scalar_select %p575, %s572, 7
        %s577 = smul.addr %s576, 2
        %s578 = smul.addr %s574, 16
        %s579 = sadd.s32 %s577, %s578
        %s580 = smul.addr %s579, 8
        %s581 = scalar_lea.vmem %s9, %s580
        %s582 = smul.u32 8, %s34
        %s583 = smul.u32 8, %s34
        %p584 = scmp.lt.s32.totalorder %s33, 1
        %s585 = scalar_select %p584, %s33, 1
        %p586 = scmp.lt.s32.totalorder %s583, 7
        %s587 = scalar_select %p586, %s583, 7
        %s588 = smul.addr %s587, 2
        %s589 = smul.addr %s585, 16
        %s590 = sadd.s32 %s588, %s589
        %s591 = smul.addr %s590, 8
        %s592 = scalar_lea.vmem %s10, %s591
        %s593 = smul.u32 8, %s34
        %p594 = scmp.eq.s32.totalorder %s35, 0
        // Predicated region
        $region77: #{wan_self_attention_forward.3} parent=51 // pred_check
          %p595 = pneg %p594
        $region78: #{wan_self_attention_forward.3} parent=51 // pred_check_branch
          %597 = sbr.rel (%p595) target = $region80
        $region79: #{wan_self_attention_forward.3} parent=51 // pred_region
          %598 = vst [vmem:[#allocation2] sm:$0xff] 0.0
          %599 = vst [vmem:[#allocation2 + $0x8] sm:$0xff] 0.0
          %600 = vst [vmem:[#allocation2 + $0x10] sm:$0xff] 0.0
          %601 = vst [vmem:[#allocation2 + $0x18] sm:$0xff] 0.0
          %602 = vst [vmem:[#allocation2 + $0x20] sm:$0xff] 0.0
          %603 = vst [vmem:[#allocation2 + $0x28] sm:$0xff] 0.0
          %604 = vst [vmem:[#allocation2 + $0x30] sm:$0xff] 0.0
          %605 = vst [vmem:[#allocation2 + $0x38] sm:$0xff] 0.0
          %606 = vst [vmem:[#allocation2 + $0x40] sm:$0xff] 0.0
          %607 = vst [vmem:[#allocation2 + $0x48] sm:$0xff] 0.0
          %608 = vst [vmem:[#allocation2 + $0x50] sm:$0xff] 0.0
          %609 = vst [vmem:[#allocation2 + $0x58] sm:$0xff] 0.0
          %610 = vst [vmem:[#allocation2 + $0x60] sm:$0xff] 0.0
          %611 = vst [vmem:[#allocation2 + $0x68] sm:$0xff] 0.0
          %612 = vst [vmem:[#allocation2 + $0x70] sm:$0xff] 0.0
          %613 = vst [vmem:[#allocation2 + $0x78] sm:$0xff] 0.0
          %614 = vst [vmem:[#allocation2 + $0x80] sm:$0xff] 0.0
          %615 = vst [vmem:[#allocation2 + $0x88] sm:$0xff] 0.0
          %616 = vst [vmem:[#allocation2 + $0x90] sm:$0xff] 0.0
          %617 = vst [vmem:[#allocation2 + $0x98] sm:$0xff] 0.0
          %618 = vst [vmem:[#allocation2 + $0xa0] sm:$0xff] 0.0
          %619 = vst [vmem:[#allocation2 + $0xa8] sm:$0xff] 0.0
          %620 = vst [vmem:[#allocation2 + $0xb0] sm:$0xff] 0.0
          %621 = vst [vmem:[#allocation2 + $0xb8] sm:$0xff] 0.0
          %622 = vst [vmem:[#allocation2 + $0xc0] sm:$0xff] 0.0
          %623 = vst [vmem:[#allocation2 + $0xc8] sm:$0xff] 0.0
          %624 = vst [vmem:[#allocation2 + $0xd0] sm:$0xff] 0.0
          %625 = vst [vmem:[#allocation2 + $0xd8] sm:$0xff] 0.0
          %626 = vst [vmem:[#allocation2 + $0xe0] sm:$0xff] 0.0
          %627 = vst [vmem:[#allocation2 + $0xe8] sm:$0xff] 0.0
          %628 = vst [vmem:[#allocation2 + $0xf0] sm:$0xff] 0.0
          %629 = vst [vmem:[#allocation2 + $0xf8] sm:$0xff] 0.0
          %630 = vst [vmem:[#allocation2 + $0x100] sm:$0xff] 0.0
          %631 = vst [vmem:[#allocation2 + $0x108] sm:$0xff] 0.0
          %632 = vst [vmem:[#allocation2 + $0x110] sm:$0xff] 0.0
          %633 = vst [vmem:[#allocation2 + $0x118] sm:$0xff] 0.0
          %634 = vst [vmem:[#allocation2 + $0x120] sm:$0xff] 0.0
          %635 = vst [vmem:[#allocation2 + $0x128] sm:$0xff] 0.0
          %636 = vst [vmem:[#allocation2 + $0x130] sm:$0xff] 0.0
          %637 = vst [vmem:[#allocation2 + $0x138] sm:$0xff] 0.0
          %638 = vst [vmem:[#allocation2 + $0x140] sm:$0xff] 0.0
          %639 = vst [vmem:[#allocation2 + $0x148] sm:$0xff] 0.0
          %640 = vst [vmem:[#allocation2 + $0x150] sm:$0xff] 0.0
          %641 = vst [vmem:[#allocation2 + $0x158] sm:$0xff] 0.0
          %642 = vst [vmem:[#allocation2 + $0x160] sm:$0xff] 0.0
          %643 = vst [vmem:[#allocation2 + $0x168] sm:$0xff] 0.0
          %644 = vst [vmem:[#allocation2 + $0x170] sm:$0xff] 0.0
          %645 = vst [vmem:[#allocation2 + $0x178] sm:$0xff] 0.0
        $region80: #{wan_self_attention_forward.3} parent=51 // pred_fallthru
          _
        %v646 = vld [vmem:[#allocation2] sm:$0xff]
        %v647 = vld [vmem:[#allocation2 + $0x8] sm:$0xff]
        %v648 = vld [vmem:[#allocation2 + $0x10] sm:$0xff]
        %v649 = vld [vmem:[#allocation2 + $0x18] sm:$0xff]
        %v650 = vld [vmem:[#allocation2 + $0x20] sm:$0xff]
        %v651 = vld [vmem:[#allocation2 + $0x28] sm:$0xff]
        %v652 = vld [vmem:[#allocation2 + $0x30] sm:$0xff]
        %v653 = vld [vmem:[#allocation2 + $0x38] sm:$0xff]
        %v654 = vld [vmem:[#allocation2 + $0x40] sm:$0xff]
        %v655 = vld [vmem:[#allocation2 + $0x48] sm:$0xff]
        %v656 = vld [vmem:[#allocation2 + $0x50] sm:$0xff]
        %v657 = vld [vmem:[#allocation2 + $0x58] sm:$0xff]
        %v658 = vld [vmem:[#allocation2 + $0x60] sm:$0xff]
        %v659 = vld [vmem:[#allocation2 + $0x68] sm:$0xff]
        %v660 = vld [vmem:[#allocation2 + $0x70] sm:$0xff]
        %v661 = vld [vmem:[#allocation2 + $0x78] sm:$0xff]
        %v662 = vld [vmem:[#allocation2 + $0x80] sm:$0xff]
        %v663 = vld [vmem:[#allocation2 + $0x88] sm:$0xff]
        %v664 = vld [vmem:[#allocation2 + $0x90] sm:$0xff]
        %v665 = vld [vmem:[#allocation2 + $0x98] sm:$0xff]
        %v666 = vld [vmem:[#allocation2 + $0xa0] sm:$0xff]
        %v667 = vld [vmem:[#allocation2 + $0xa8] sm:$0xff]
        %v668 = vld [vmem:[#allocation2 + $0xb0] sm:$0xff]
        %v669 = vld [vmem:[#allocation2 + $0xb8] sm:$0xff]
        %v670 = vld [vmem:[#allocation2 + $0xc0] sm:$0xff]
        %v671 = vld [vmem:[#allocation2 + $0xc8] sm:$0xff]
        %v672 = vld [vmem:[#allocation2 + $0xd0] sm:$0xff]
        %v673 = vld [vmem:[#allocation2 + $0xd8] sm:$0xff]
        %v674 = vld [vmem:[#allocation2 + $0xe0] sm:$0xff]
        %v675 = vld [vmem:[#allocation2 + $0xe8] sm:$0xff]
        %v676 = vld [vmem:[#allocation2 + $0xf0] sm:$0xff]
        %v677 = vld [vmem:[#allocation2 + $0xf8] sm:$0xff]
        %v678 = vld [vmem:[#allocation2 + $0x100] sm:$0xff]
        %v679 = vld [vmem:[#allocation2 + $0x108] sm:$0xff]
        %v680 = vld [vmem:[#allocation2 + $0x110] sm:$0xff]
        %v681 = vld [vmem:[#allocation2 + $0x118] sm:$0xff]
        %v682 = vld [vmem:[#allocation2 + $0x120] sm:$0xff]
        %v683 = vld [vmem:[#allocation2 + $0x128] sm:$0xff]
        %v684 = vld [vmem:[#allocation2 + $0x130] sm:$0xff]
        %v685 = vld [vmem:[#allocation2 + $0x138] sm:$0xff]
        %v686 = vld [vmem:[#allocation2 + $0x140] sm:$0xff]
        %v687 = vld [vmem:[#allocation2 + $0x148] sm:$0xff]
        %v688 = vld [vmem:[#allocation2 + $0x150] sm:$0xff]
        %v689 = vld [vmem:[#allocation2 + $0x158] sm:$0xff]
        %v690 = vld [vmem:[#allocation2 + $0x160] sm:$0xff]
        %v691 = vld [vmem:[#allocation2 + $0x168] sm:$0xff]
        %v692 = vld [vmem:[#allocation2 + $0x170] sm:$0xff]
        %v693 = vld [vmem:[#allocation2 + $0x178] sm:$0xff]
        %v694 = vld [vmem:[%s467] sm:$0xff]
        %v695 = vld [vmem:[%s467 + $0x8] sm:$0xff]
        %v696 = vld [vmem:[%s467 + $0x10] sm:$0xff]
        %v697 = vld [vmem:[%s467 + $0x18] sm:$0xff]
        %v698 = vld [vmem:[%s467 + $0x20] sm:$0xff]
        %v699 = vld [vmem:[%s467 + $0x28] sm:$0xff]
        %v700 = vld [vmem:[%s467 + $0x30] sm:$0xff]
        %v701 = vld [vmem:[%s467 + $0x38] sm:$0xff]
        %v702 = vld [vmem:[%s467 + $0x40] sm:$0xff]
        %v703 = vld [vmem:[%s467 + $0x48] sm:$0xff]
        %v704 = vld [vmem:[%s467 + $0x50] sm:$0xff]
        %v705 = vld [vmem:[%s467 + $0x58] sm:$0xff]
        %v706 = vld [vmem:[%s467 + $0x60] sm:$0xff]
        %v707 = vld [vmem:[%s467 + $0x68] sm:$0xff]
        %v708 = vld [vmem:[%s467 + $0x70] sm:$0xff]
        %v709 = vld [vmem:[%s467 + $0x78] sm:$0xff]
        %v710 = vld [vmem:[#allocation5] sm:$0xff]
        %v711 = vld [vmem:[#allocation5 + $0x8] sm:$0xff]
        %v712 = vld [vmem:[#allocation5 + $0x10] sm:$0xff]
        %v713 = vld [vmem:[#allocation5 + $0x18] sm:$0xff]
        %v714 = vld [vmem:[#allocation5 + $0x20] sm:$0xff]
        %v715 = vld [vmem:[#allocation5 + $0x28] sm:$0xff]
        %v716 = vld [vmem:[#allocation5 + $0x30] sm:$0xff]
        %v717 = vld [vmem:[#allocation5 + $0x38] sm:$0xff]
        %v718 = vld [vmem:[#allocation5 + $0x40] sm:$0xff]
        %v719 = vld [vmem:[#allocation5 + $0x48] sm:$0xff]
        %v720 = vld [vmem:[#allocation5 + $0x50] sm:$0xff]
        %v721 = vld [vmem:[#allocation5 + $0x58] sm:$0xff]
        %v722 = vld [vmem:[#allocation5 + $0x60] sm:$0xff]
        %v723 = vld [vmem:[#allocation5 + $0x68] sm:$0xff]
        %v724 = vld [vmem:[#allocation5 + $0x70] sm:$0xff]
        %v725 = vld [vmem:[#allocation5 + $0x78] sm:$0xff]
        %v726 = vld [vmem:[#allocation5 + $0x80] sm:$0xff]
        %v727 = vld [vmem:[#allocation5 + $0x88] sm:$0xff]
        %v728 = vld [vmem:[#allocation5 + $0x90] sm:$0xff]
        %v729 = vld [vmem:[#allocation5 + $0x98] sm:$0xff]
        %v730 = vld [vmem:[#allocation5 + $0xa0] sm:$0xff]
        %v731 = vld [vmem:[#allocation5 + $0xa8] sm:$0xff]
        %v732 = vld [vmem:[#allocation5 + $0xb0] sm:$0xff]
        %v733 = vld [vmem:[#allocation5 + $0xb8] sm:$0xff]
        %v734 = vld [vmem:[#allocation5 + $0xc0] sm:$0xff]
        %v735 = vld [vmem:[#allocation5 + $0xc8] sm:$0xff]
        %v736 = vld [vmem:[#allocation5 + $0xd0] sm:$0xff]
        %v737 = vld [vmem:[#allocation5 + $0xd8] sm:$0xff]
        %v738 = vld [vmem:[#allocation5 + $0xe0] sm:$0xff]
        %v739 = vld [vmem:[#allocation5 + $0xe8] sm:$0xff]
        %v740 = vld [vmem:[#allocation5 + $0xf0] sm:$0xff]
        %v741 = vld [vmem:[#allocation5 + $0xf8] sm:$0xff]
        %v742 = vld [vmem:[#allocation5 + $0x100] sm:$0xff]
        %v743 = vld [vmem:[#allocation5 + $0x108] sm:$0xff]
        %v744 = vld [vmem:[#allocation5 + $0x110] sm:$0xff]
        %v745 = vld [vmem:[#allocation5 + $0x118] sm:$0xff]
        %v746 = vld [vmem:[#allocation5 + $0x120] sm:$0xff]
        %v747 = vld [vmem:[#allocation5 + $0x128] sm:$0xff]
        %v748 = vld [vmem:[#allocation5 + $0x130] sm:$0xff]
        %v749 = vld [vmem:[#allocation5 + $0x138] sm:$0xff]
        %v750 = vld [vmem:[#allocation5 + $0x140] sm:$0xff]
        %v751 = vld [vmem:[#allocation5 + $0x148] sm:$0xff]
        %v752 = vld [vmem:[#allocation5 + $0x150] sm:$0xff]
        %v753 = vld [vmem:[#allocation5 + $0x158] sm:$0xff]
        %v754 = vld [vmem:[#allocation5 + $0x160] sm:$0xff]
        %v755 = vld [vmem:[#allocation5 + $0x168] sm:$0xff]
        %v756 = vld [vmem:[#allocation5 + $0x170] sm:$0xff]
        %v757 = vld [vmem:[#allocation5 + $0x178] sm:$0xff]
        %v758 = vld [vmem:[#allocation5 + $0x180] sm:$0xff]
        %v759 = vld [vmem:[#allocation5 + $0x188] sm:$0xff]
        %v760 = vld [vmem:[#allocation5 + $0x190] sm:$0xff]
        %v761 = vld [vmem:[#allocation5 + $0x198] sm:$0xff]
        %v762 = vld [vmem:[#allocation5 + $0x1a0] sm:$0xff]
        %v763 = vld [vmem:[#allocation5 + $0x1a8] sm:$0xff]
        %v764 = vld [vmem:[#allocation5 + $0x1b0] sm:$0xff]
        %v765 = vld [vmem:[#allocation5 + $0x1b8] sm:$0xff]
        %v766 = vld [vmem:[#allocation5 + $0x1c0] sm:$0xff]
        %v767 = vld [vmem:[#allocation5 + $0x1c8] sm:$0xff]
        %v768 = vld [vmem:[#allocation5 + $0x1d0] sm:$0xff]
        %v769 = vld [vmem:[#allocation5 + $0x1d8] sm:$0xff]
        %v770 = vld [vmem:[#allocation5 + $0x1e0] sm:$0xff]
        %v771 = vld [vmem:[#allocation5 + $0x1e8] sm:$0xff]
        %v772 = vld [vmem:[#allocation5 + $0x1f0] sm:$0xff]
        %v773 = vld [vmem:[#allocation5 + $0x1f8] sm:$0xff]
        %v774 = vld [vmem:[#allocation5 + $0x200] sm:$0xff]
        %v775 = vld [vmem:[#allocation5 + $0x208] sm:$0xff]
        %v776 = vld [vmem:[#allocation5 + $0x210] sm:$0xff]
        %v777 = vld [vmem:[#allocation5 + $0x218] sm:$0xff]
        %v778 = vld [vmem:[#allocation5 + $0x220] sm:$0xff]
        %v779 = vld [vmem:[#allocation5 + $0x228] sm:$0xff]
        %v780 = vld [vmem:[#allocation5 + $0x230] sm:$0xff]
        %v781 = vld [vmem:[#allocation5 + $0x238] sm:$0xff]
        %v782 = vld [vmem:[#allocation5 + $0x240] sm:$0xff]
        %v783 = vld [vmem:[#allocation5 + $0x248] sm:$0xff]
        %v784 = vld [vmem:[#allocation5 + $0x250] sm:$0xff]
        %v785 = vld [vmem:[#allocation5 + $0x258] sm:$0xff]
        %v786 = vld [vmem:[#allocation5 + $0x260] sm:$0xff]
        %v787 = vld [vmem:[#allocation5 + $0x268] sm:$0xff]
        %v788 = vld [vmem:[#allocation5 + $0x270] sm:$0xff]
        %v789 = vld [vmem:[#allocation5 + $0x278] sm:$0xff]
        %v790 = vld [vmem:[#allocation5 + $0x280] sm:$0xff]
        %v791 = vld [vmem:[#allocation5 + $0x288] sm:$0xff]
        %v792 = vld [vmem:[#allocation5 + $0x290] sm:$0xff]
        %v793 = vld [vmem:[#allocation5 + $0x298] sm:$0xff]
        %v794 = vld [vmem:[#allocation5 + $0x2a0] sm:$0xff]
        %v795 = vld [vmem:[#allocation5 + $0x2a8] sm:$0xff]
        %v796 = vld [vmem:[#allocation5 + $0x2b0] sm:$0xff]
        %v797 = vld [vmem:[#allocation5 + $0x2b8] sm:$0xff]
        %v798 = vld [vmem:[#allocation5 + $0x2c0] sm:$0xff]
        %v799 = vld [vmem:[#allocation5 + $0x2c8] sm:$0xff]
        %v800 = vld [vmem:[#allocation5 + $0x2d0] sm:$0xff]
        %v801 = vld [vmem:[#allocation5 + $0x2d8] sm:$0xff]
        %v802 = vld [vmem:[#allocation5 + $0x2e0] sm:$0xff]
        %v803 = vld [vmem:[#allocation5 + $0x2e8] sm:$0xff]
        %v804 = vld [vmem:[#allocation5 + $0x2f0] sm:$0xff]
        %v805 = vld [vmem:[#allocation5 + $0x2f8] sm:$0xff]
        %v806 = vld [vmem:[#allocation5 + $0x300] sm:$0xff]
        %v807 = vld [vmem:[#allocation5 + $0x308] sm:$0xff]
        %v808 = vld [vmem:[#allocation5 + $0x310] sm:$0xff]
        %v809 = vld [vmem:[#allocation5 + $0x318] sm:$0xff]
        %v810 = vld [vmem:[#allocation5 + $0x320] sm:$0xff]
        %v811 = vld [vmem:[#allocation5 + $0x328] sm:$0xff]
        %v812 = vld [vmem:[#allocation5 + $0x330] sm:$0xff]
        %v813 = vld [vmem:[#allocation5 + $0x338] sm:$0xff]
        %v814 = vld [vmem:[#allocation5 + $0x340] sm:$0xff]
        %v815 = vld [vmem:[#allocation5 + $0x348] sm:$0xff]
        %v816 = vld [vmem:[#allocation5 + $0x350] sm:$0xff]
        %v817 = vld [vmem:[#allocation5 + $0x358] sm:$0xff]
        %v818 = vld [vmem:[#allocation5 + $0x360] sm:$0xff]
        %v819 = vld [vmem:[#allocation5 + $0x368] sm:$0xff]
        %v820 = vld [vmem:[#allocation5 + $0x370] sm:$0xff]
        %v821 = vld [vmem:[#allocation5 + $0x378] sm:$0xff]
        %v822 = vld [vmem:[#allocation5 + $0x380] sm:$0xff]
        %v823 = vld [vmem:[#allocation5 + $0x388] sm:$0xff]
        %v824 = vld [vmem:[#allocation5 + $0x390] sm:$0xff]
        %v825 = vld [vmem:[#allocation5 + $0x398] sm:$0xff]
        %v826 = vld [vmem:[#allocation5 + $0x3a0] sm:$0xff]
        %v827 = vld [vmem:[#allocation5 + $0x3a8] sm:$0xff]
        %v828 = vld [vmem:[#allocation5 + $0x3b0] sm:$0xff]
        %v829 = vld [vmem:[#allocation5 + $0x3b8] sm:$0xff]
        %v830 = vld [vmem:[#allocation5 + $0x3c0] sm:$0xff]
        %v831 = vld [vmem:[#allocation5 + $0x3c8] sm:$0xff]
        %v832 = vld [vmem:[#allocation5 + $0x3d0] sm:$0xff]
        %v833 = vld [vmem:[#allocation5 + $0x3d8] sm:$0xff]
        %v834 = vld [vmem:[#allocation5 + $0x3e0] sm:$0xff]
        %v835 = vld [vmem:[#allocation5 + $0x3e8] sm:$0xff]
        %v836 = vld [vmem:[#allocation5 + $0x3f0] sm:$0xff]
        %v837 = vld [vmem:[#allocation5 + $0x3f8] sm:$0xff]
        %v838 = vld [vmem:[#allocation5 + $0x400] sm:$0xff]
        %v839 = vld [vmem:[#allocation5 + $0x408] sm:$0xff]
        %v840 = vld [vmem:[#allocation5 + $0x410] sm:$0xff]
        %v841 = vld [vmem:[#allocation5 + $0x418] sm:$0xff]
        %v842 = vld [vmem:[#allocation5 + $0x420] sm:$0xff]
        %v843 = vld [vmem:[#allocation5 + $0x428] sm:$0xff]
        %v844 = vld [vmem:[#allocation5 + $0x430] sm:$0xff]
        %v845 = vld [vmem:[#allocation5 + $0x438] sm:$0xff]
        %v846 = vld [vmem:[#allocation5 + $0x440] sm:$0xff]
        %v847 = vld [vmem:[#allocation5 + $0x448] sm:$0xff]
        %v848 = vld [vmem:[#allocation5 + $0x450] sm:$0xff]
        %v849 = vld [vmem:[#allocation5 + $0x458] sm:$0xff]
        %v850 = vld [vmem:[#allocation5 + $0x460] sm:$0xff]
        %v851 = vld [vmem:[#allocation5 + $0x468] sm:$0xff]
        %v852 = vld [vmem:[#allocation5 + $0x470] sm:$0xff]
        %v853 = vld [vmem:[#allocation5 + $0x478] sm:$0xff]
        %v854 = vld [vmem:[#allocation5 + $0x480] sm:$0xff]
        %v855 = vld [vmem:[#allocation5 + $0x488] sm:$0xff]
        %v856 = vld [vmem:[#allocation5 + $0x490] sm:$0xff]
        %v857 = vld [vmem:[#allocation5 + $0x498] sm:$0xff]
        %v858 = vld [vmem:[#allocation5 + $0x4a0] sm:$0xff]
        %v859 = vld [vmem:[#allocation5 + $0x4a8] sm:$0xff]
        %v860 = vld [vmem:[#allocation5 + $0x4b0] sm:$0xff]
        %v861 = vld [vmem:[#allocation5 + $0x4b8] sm:$0xff]
        %v862 = vld [vmem:[#allocation5 + $0x4c0] sm:$0xff]
        %v863 = vld [vmem:[#allocation5 + $0x4c8] sm:$0xff]
        %v864 = vld [vmem:[#allocation5 + $0x4d0] sm:$0xff]
        %v865 = vld [vmem:[#allocation5 + $0x4d8] sm:$0xff]
        %v866 = vld [vmem:[#allocation5 + $0x4e0] sm:$0xff]
        %v867 = vld [vmem:[#allocation5 + $0x4e8] sm:$0xff]
        %v868 = vld [vmem:[#allocation5 + $0x4f0] sm:$0xff]
        %v869 = vld [vmem:[#allocation5 + $0x4f8] sm:$0xff]
        %v870 = vld [vmem:[#allocation5 + $0x500] sm:$0xff]
        %v871 = vld [vmem:[#allocation5 + $0x508] sm:$0xff]
        %v872 = vld [vmem:[#allocation5 + $0x510] sm:$0xff]
        %v873 = vld [vmem:[#allocation5 + $0x518] sm:$0xff]
        %v874 = vld [vmem:[#allocation5 + $0x520] sm:$0xff]
        %v875 = vld [vmem:[#allocation5 + $0x528] sm:$0xff]
        %v876 = vld [vmem:[#allocation5 + $0x530] sm:$0xff]
        %v877 = vld [vmem:[#allocation5 + $0x538] sm:$0xff]
        %v878 = vld [vmem:[#allocation5 + $0x540] sm:$0xff]
        %v879 = vld [vmem:[#allocation5 + $0x548] sm:$0xff]
        %v880 = vld [vmem:[#allocation5 + $0x550] sm:$0xff]
        %v881 = vld [vmem:[#allocation5 + $0x558] sm:$0xff]
        %v882 = vld [vmem:[#allocation5 + $0x560] sm:$0xff]
        %v883 = vld [vmem:[#allocation5 + $0x568] sm:$0xff]
        %v884 = vld [vmem:[#allocation5 + $0x570] sm:$0xff]
        %v885 = vld [vmem:[#allocation5 + $0x578] sm:$0xff]
        %v886 = vld [vmem:[#allocation5 + $0x580] sm:$0xff]
        %v887 = vld [vmem:[#allocation5 + $0x588] sm:$0xff]
        %v888 = vld [vmem:[#allocation5 + $0x590] sm:$0xff]
        %v889 = vld [vmem:[#allocation5 + $0x598] sm:$0xff]
        %v890 = vld [vmem:[#allocation5 + $0x5a0] sm:$0xff]
        %v891 = vld [vmem:[#allocation5 + $0x5a8] sm:$0xff]
        %v892 = vld [vmem:[#allocation5 + $0x5b0] sm:$0xff]
        %v893 = vld [vmem:[#allocation5 + $0x5b8] sm:$0xff]
        %v894 = vld [vmem:[#allocation5 + $0x5c0] sm:$0xff]
        %v895 = vld [vmem:[#allocation5 + $0x5c8] sm:$0xff]
        %v896 = vld [vmem:[#allocation5 + $0x5d0] sm:$0xff]
        %v897 = vld [vmem:[#allocation5 + $0x5d8] sm:$0xff]
        %v898 = vld [vmem:[#allocation5 + $0x5e0] sm:$0xff]
        %v899 = vld [vmem:[#allocation5 + $0x5e8] sm:$0xff]
        %v900 = vld [vmem:[#allocation5 + $0x5f0] sm:$0xff]
        %v901 = vld [vmem:[#allocation5 + $0x5f8] sm:$0xff]
        %902 = vmatpush.msra.mxu0 %v800
        %903 = vmatpush.msra.mxu0 %v794
        %904 = vmatpush.msra.mxu0 %v788
        %905 = vmatpush.msra.mxu0 %v782
        %906 = vmatpush.msra.mxu0 %v776
        %907 = vmatpush.msra.mxu0 %v770
        %908 = vmatpush.msra.mxu0 %v764
        %909 = vmatpush.msra.mxu0 %v758
        %910 = vmatpush.msra.mxu0 %v752
        %911 = vmatpush.msra.mxu0 %v746
        %912 = vmatpush.msra.mxu0 %v740
        %913 = vmatpush.msra.mxu0 %v734
        %914 = vmatpush.msra.mxu0 %v728
        %915 = vmatpush.msra.mxu0 %v722
        %916 = vmatpush.msra.mxu0 %v716
        %917 = vmatpush.msra.mxu0 %v710
        %918 = vmatmul.f32.gmra.mxu0 %v694
        %v919 = vpop.f32.mrf.mxu0
        %v920 = vadd.f32 0.0, %v919
        %921 = vmatmul.f32.gmra.mxu0 %v696
        %v922 = vpop.f32.mrf.mxu0
        %v923 = vadd.f32 0.0, %v922
        %924 = vmatmul.f32.gmra.mxu0 %v698
        %v925 = vpop.f32.mrf.mxu0
        %v926 = vadd.f32 0.0, %v925
        %927 = vmatmul.f32.gmra.mxu0 %v700
        %v928 = vpop.f32.mrf.mxu0
        %v929 = vadd.f32 0.0, %v928
        %930 = vmatmul.f32.gmra.mxu0 %v702
        %v931 = vpop.f32.mrf.mxu0
        %v932 = vadd.f32 0.0, %v931
        %933 = vmatmul.f32.gmra.mxu0 %v704
        %v934 = vpop.f32.mrf.mxu0
        %v935 = vadd.f32 0.0, %v934
        %936 = vmatmul.f32.gmra.mxu0 %v706
        %v937 = vpop.f32.mrf.mxu0
        %v938 = vadd.f32 0.0, %v937
        %939 = vmatmul.f32.gmra.mxu0 %v708
        %v940 = vpop.f32.mrf.mxu0
        %v941 = vadd.f32 0.0, %v940
        %942 = vdwg.mxu0
        %943 = vmatpush.msra.mxu0 %v896
        %944 = vmatpush.msra.mxu0 %v890
        %945 = vmatpush.msra.mxu0 %v884
        %946 = vmatpush.msra.mxu0 %v878
        %947 = vmatpush.msra.mxu0 %v872
        %948 = vmatpush.msra.mxu0 %v866
        %949 = vmatpush.msra.mxu0 %v860
        %950 = vmatpush.msra.mxu0 %v854
        %951 = vmatpush.msra.mxu0 %v848
        %952 = vmatpush.msra.mxu0 %v842
        %953 = vmatpush.msra.mxu0 %v836
        %954 = vmatpush.msra.mxu0 %v830
        %955 = vmatpush.msra.mxu0 %v824
        %956 = vmatpush.msra.mxu0 %v818
        %957 = vmatpush.msra.mxu0 %v812
        %958 = vmatpush.msra.mxu0 %v806
        %959 = vmatmul.f32.gmra.mxu0 %v695
        %v960 = vpop.f32.mrf.mxu0
        %v961 = vadd.f32 %v920, %v960
        %962 = vmatmul.f32.gmra.mxu0 %v697
        %v963 = vpop.f32.mrf.mxu0
        %v964 = vadd.f32 %v923, %v963
        %965 = vmatmul.f32.gmra.mxu0 %v699
        %v966 = vpop.f32.mrf.mxu0
        %v967 = vadd.f32 %v926, %v966
        %968 = vmatmul.f32.gmra.mxu0 %v701
        %v969 = vpop.f32.mrf.mxu0
        %v970 = vadd.f32 %v929, %v969
        %971 = vmatmul.f32.gmra.mxu0 %v703
        %v972 = vpop.f32.mrf.mxu0
        %v973 = vadd.f32 %v932, %v972
        %974 = vmatmul.f32.gmra.mxu0 %v705
        %v975 = vpop.f32.mrf.mxu0
        %v976 = vadd.f32 %v935, %v975
        %977 = vmatmul.f32.gmra.mxu0 %v707
        %v978 = vpop.f32.mrf.mxu0
        %v979 = vadd.f32 %v938, %v978
        %980 = vmatmul.f32.gmra.mxu0 %v709
        %v981 = vpop.f32.mrf.mxu0
        %v982 = vadd.f32 %v941, %v981
        %983 = vdwg.mxu0
        %984 = vmatpush.msra.mxu0 %v801
        %985 = vmatpush.msra.mxu0 %v795
        %986 = vmatpush.msra.mxu0 %v789
        %987 = vmatpush.msra.mxu0 %v783
        %988 = vmatpush.msra.mxu0 %v777
        %989 = vmatpush.msra.mxu0 %v771
        %990 = vmatpush.msra.mxu0 %v765
        %991 = vmatpush.msra.mxu0 %v759
        %992 = vmatpush.msra.mxu0 %v753
        %993 = vmatpush.msra.mxu0 %v747
        %994 = vmatpush.msra.mxu0 %v741
        %995 = vmatpush.msra.mxu0 %v735
        %996 = vmatpush.msra.mxu0 %v729
        %997 = vmatpush.msra.mxu0 %v723
        %998 = vmatpush.msra.mxu0 %v717
        %999 = vmatpush.msra.mxu0 %v711
        %1000 = vmatmul.f32.gmra.mxu0 %v694
        %v1001 = vpop.f32.mrf.mxu0
        %v1002 = vadd.f32 0.0, %v1001
        %1003 = vmatmul.f32.gmra.mxu0 %v696
        %v1004 = vpop.f32.mrf.mxu0
        %v1005 = vadd.f32 0.0, %v1004
        %1006 = vmatmul.f32.gmra.mxu0 %v698
        %v1007 = vpop.f32.mrf.mxu0
        %v1008 = vadd.f32 0.0, %v1007
        %1009 = vmatmul.f32.gmra.mxu0 %v700
        %v1010 = vpop.f32.mrf.mxu0
        %v1011 = vadd.f32 0.0, %v1010
        %1012 = vmatmul.f32.gmra.mxu0 %v702
        %v1013 = vpop.f32.mrf.mxu0
        %v1014 = vadd.f32 0.0, %v1013
        %1015 = vmatmul.f32.gmra.mxu0 %v704
        %v1016 = vpop.f32.mrf.mxu0
        %v1017 = vadd.f32 0.0, %v1016
        %1018 = vmatmul.f32.gmra.mxu0 %v706
        %v1019 = vpop.f32.mrf.mxu0
        %v1020 = vadd.f32 0.0, %v1019
        %1021 = vmatmul.f32.gmra.mxu0 %v708
        %v1022 = vpop.f32.mrf.mxu0
        %v1023 = vadd.f32 0.0, %v1022
        %1024 = vdwg.mxu0
        %1025 = vmatpush.msra.mxu0 %v897
        %1026 = vmatpush.msra.mxu0 %v891
        %1027 = vmatpush.msra.mxu0 %v885
        %1028 = vmatpush.msra.mxu0 %v879
        %1029 = vmatpush.msra.mxu0 %v873
        %1030 = vmatpush.msra.mxu0 %v867
        %1031 = vmatpush.msra.mxu0 %v861
        %1032 = vmatpush.msra.mxu0 %v855
        %1033 = vmatpush.msra.mxu0 %v849
        %1034 = vmatpush.msra.mxu0 %v843
        %1035 = vmatpush.msra.mxu0 %v837
        %1036 = vmatpush.msra.mxu0 %v831
        %1037 = vmatpush.msra.mxu0 %v825
        %1038 = vmatpush.msra.mxu0 %v819
        %1039 = vmatpush.msra.mxu0 %v813
        %1040 = vmatpush.msra.mxu0 %v807
        %1041 = vmatmul.f32.gmra.mxu0 %v695
        %v1042 = vpop.f32.mrf.mxu0
        %v1043 = vadd.f32 %v1002, %v1042
        %1044 = vmatmul.f32.gmra.mxu0 %v697
        %v1045 = vpop.f32.mrf.mxu0
        %v1046 = vadd.f32 %v1005, %v1045
        %1047 = vmatmul.f32.gmra.mxu0 %v699
        %v1048 = vpop.f32.mrf.mxu0
        %v1049 = vadd.f32 %v1008, %v1048
        %1050 = vmatmul.f32.gmra.mxu0 %v701
        %v1051 = vpop.f32.mrf.mxu0
        %v1052 = vadd.f32 %v1011, %v1051
        %1053 = vmatmul.f32.gmra.mxu0 %v703
        %v1054 = vpop.f32.mrf.mxu0
        %v1055 = vadd.f32 %v1014, %v1054
        %1056 = vmatmul.f32.gmra.mxu0 %v705
        %v1057 = vpop.f32.mrf.mxu0
        %v1058 = vadd.f32 %v1017, %v1057
        %1059 = vmatmul.f32.gmra.mxu0 %v707
        %v1060 = vpop.f32.mrf.mxu0
        %v1061 = vadd.f32 %v1020, %v1060
        %1062 = vmatmul.f32.gmra.mxu0 %v709
        %v1063 = vpop.f32.mrf.mxu0
        %v1064 = vadd.f32 %v1023, %v1063
        %1065 = vdwg.mxu0
        %1066 = vmatpush.msra.mxu0 %v802
        %1067 = vmatpush.msra.mxu0 %v796
        %1068 = vmatpush.msra.mxu0 %v790
        %1069 = vmatpush.msra.mxu0 %v784
        %1070 = vmatpush.msra.mxu0 %v778
        %1071 = vmatpush.msra.mxu0 %v772
        %1072 = vmatpush.msra.mxu0 %v766
        %1073 = vmatpush.msra.mxu0 %v760
        %1074 = vmatpush.msra.mxu0 %v754
        %1075 = vmatpush.msra.mxu0 %v748
        %1076 = vmatpush.msra.mxu0 %v742
        %1077 = vmatpush.msra.mxu0 %v736
        %1078 = vmatpush.msra.mxu0 %v730
        %1079 = vmatpush.msra.mxu0 %v724
        %1080 = vmatpush.msra.mxu0 %v718
        %1081 = vmatpush.msra.mxu0 %v712
        %1082 = vmatmul.f32.gmra.mxu0 %v694
        %v1083 = vpop.f32.mrf.mxu0
        %v1084 = vadd.f32 0.0, %v1083
        %1085 = vmatmul.f32.gmra.mxu0 %v696
        %v1086 = vpop.f32.mrf.mxu0
        %v1087 = vadd.f32 0.0, %v1086
        %1088 = vmatmul.f32.gmra.mxu0 %v698
        %v1089 = vpop.f32.mrf.mxu0
        %v1090 = vadd.f32 0.0, %v1089
        %1091 = vmatmul.f32.gmra.mxu0 %v700
        %v1092 = vpop.f32.mrf.mxu0
        %v1093 = vadd.f32 0.0, %v1092
        %1094 = vmatmul.f32.gmra.mxu0 %v702
        %v1095 = vpop.f32.mrf.mxu0
        %v1096 = vadd.f32 0.0, %v1095
        %1097 = vmatmul.f32.gmra.mxu0 %v704
        %v1098 = vpop.f32.mrf.mxu0
        %v1099 = vadd.f32 0.0, %v1098
        %1100 = vmatmul.f32.gmra.mxu0 %v706
        %v1101 = vpop.f32.mrf.mxu0
        %v1102 = vadd.f32 0.0, %v1101
        %1103 = vmatmul.f32.gmra.mxu0 %v708
        %v1104 = vpop.f32.mrf.mxu0
        %v1105 = vadd.f32 0.0, %v1104
        %1106 = vdwg.mxu0
        %1107 = vmatpush.msra.mxu0 %v898
        %1108 = vmatpush.msra.mxu0 %v892
        %1109 = vmatpush.msra.mxu0 %v886
        %1110 = vmatpush.msra.mxu0 %v880
        %1111 = vmatpush.msra.mxu0 %v874
        %1112 = vmatpush.msra.mxu0 %v868
        %1113 = vmatpush.msra.mxu0 %v862
        %1114 = vmatpush.msra.mxu0 %v856
        %1115 = vmatpush.msra.mxu0 %v850
        %1116 = vmatpush.msra.mxu0 %v844
        %1117 = vmatpush.msra.mxu0 %v838
        %1118 = vmatpush.msra.mxu0 %v832
        %1119 = vmatpush.msra.mxu0 %v826
        %1120 = vmatpush.msra.mxu0 %v820
        %1121 = vmatpush.msra.mxu0 %v814
        %1122 = vmatpush.msra.mxu0 %v808
        %1123 = vmatmul.f32.gmra.mxu0 %v695
        %v1124 = vpop.f32.mrf.mxu0
        %v1125 = vadd.f32 %v1084, %v1124
        %1126 = vmatmul.f32.gmra.mxu0 %v697
        %v1127 = vpop.f32.mrf.mxu0
        %v1128 = vadd.f32 %v1087, %v1127
        %1129 = vmatmul.f32.gmra.mxu0 %v699
        %v1130 = vpop.f32.mrf.mxu0
        %v1131 = vadd.f32 %v1090, %v1130
        %1132 = vmatmul.f32.gmra.mxu0 %v701
        %v1133 = vpop.f32.mrf.mxu0
        %v1134 = vadd.f32 %v1093, %v1133
        %1135 = vmatmul.f32.gmra.mxu0 %v703
        %v1136 = vpop.f32.mrf.mxu0
        %v1137 = vadd.f32 %v1096, %v1136
        %1138 = vmatmul.f32.gmra.mxu0 %v705
        %v1139 = vpop.f32.mrf.mxu0
        %v1140 = vadd.f32 %v1099, %v1139
        %1141 = vmatmul.f32.gmra.mxu0 %v707
        %v1142 = vpop.f32.mrf.mxu0
        %v1143 = vadd.f32 %v1102, %v1142
        %1144 = vmatmul.f32.gmra.mxu0 %v709
        %v1145 = vpop.f32.mrf.mxu0
        %v1146 = vadd.f32 %v1105, %v1145
        %1147 = vdwg.mxu0
        %1148 = vmatpush.msra.mxu0 %v803
        %1149 = vmatpush.msra.mxu0 %v797
        %1150 = vmatpush.msra.mxu0 %v791
        %1151 = vmatpush.msra.mxu0 %v785
        %1152 = vmatpush.msra.mxu0 %v779
        %1153 = vmatpush.msra.mxu0 %v773
        %1154 = vmatpush.msra.mxu0 %v767
        %1155 = vmatpush.msra.mxu0 %v761
        %1156 = vmatpush.msra.mxu0 %v755
        %1157 = vmatpush.msra.mxu0 %v749
        %1158 = vmatpush.msra.mxu0 %v743
        %1159 = vmatpush.msra.mxu0 %v737
        %1160 = vmatpush.msra.mxu0 %v731
        %1161 = vmatpush.msra.mxu0 %v725
        %1162 = vmatpush.msra.mxu0 %v719
        %1163 = vmatpush.msra.mxu0 %v713
        %1164 = vmatmul.f32.gmra.mxu0 %v694
        %v1165 = vpop.f32.mrf.mxu0
        %v1166 = vadd.f32 0.0, %v1165
        %1167 = vmatmul.f32.gmra.mxu0 %v696
        %v1168 = vpop.f32.mrf.mxu0
        %v1169 = vadd.f32 0.0, %v1168
        %1170 = vmatmul.f32.gmra.mxu0 %v698
        %v1171 = vpop.f32.mrf.mxu0
        %v1172 = vadd.f32 0.0, %v1171
        %1173 = vmatmul.f32.gmra.mxu0 %v700
        %v1174 = vpop.f32.mrf.mxu0
        %v1175 = vadd.f32 0.0, %v1174
        %1176 = vmatmul.f32.gmra.mxu0 %v702
        %v1177 = vpop.f32.mrf.mxu0
        %v1178 = vadd.f32 0.0, %v1177
        %1179 = vmatmul.f32.gmra.mxu0 %v704
        %v1180 = vpop.f32.mrf.mxu0
        %v1181 = vadd.f32 0.0, %v1180
        %1182 = vmatmul.f32.gmra.mxu0 %v706
        %v1183 = vpop.f32.mrf.mxu0
        %v1184 = vadd.f32 0.0, %v1183
        %1185 = vmatmul.f32.gmra.mxu0 %v708
        %v1186 = vpop.f32.mrf.mxu0
        %v1187 = vadd.f32 0.0, %v1186
        %1188 = vdwg.mxu0
        %1189 = vmatpush.msra.mxu0 %v899
        %1190 = vmatpush.msra.mxu0 %v893
        %1191 = vmatpush.msra.mxu0 %v887
        %1192 = vmatpush.msra.mxu0 %v881
        %1193 = vmatpush.msra.mxu0 %v875
        %1194 = vmatpush.msra.mxu0 %v869
        %1195 = vmatpush.msra.mxu0 %v863
        %1196 = vmatpush.msra.mxu0 %v857
        %1197 = vmatpush.msra.mxu0 %v851
        %1198 = vmatpush.msra.mxu0 %v845
        %1199 = vmatpush.msra.mxu0 %v839
        %1200 = vmatpush.msra.mxu0 %v833
        %1201 = vmatpush.msra.mxu0 %v827
        %1202 = vmatpush.msra.mxu0 %v821
        %1203 = vmatpush.msra.mxu0 %v815
        %1204 = vmatpush.msra.mxu0 %v809
        %1205 = vmatmul.f32.gmra.mxu0 %v695
        %v1206 = vpop.f32.mrf.mxu0
        %v1207 = vadd.f32 %v1166, %v1206
        %1208 = vmatmul.f32.gmra.mxu0 %v697
        %v1209 = vpop.f32.mrf.mxu0
        %v1210 = vadd.f32 %v1169, %v1209
        %1211 = vmatmul.f32.gmra.mxu0 %v699
        %v1212 = vpop.f32.mrf.mxu0
        %v1213 = vadd.f32 %v1172, %v1212
        %1214 = vmatmul.f32.gmra.mxu0 %v701
        %v1215 = vpop.f32.mrf.mxu0
        %v1216 = vadd.f32 %v1175, %v1215
        %1217 = vmatmul.f32.gmra.mxu0 %v703
        %v1218 = vpop.f32.mrf.mxu0
        %v1219 = vadd.f32 %v1178, %v1218
        %1220 = vmatmul.f32.gmra.mxu0 %v705
        %v1221 = vpop.f32.mrf.mxu0
        %v1222 = vadd.f32 %v1181, %v1221
        %1223 = vmatmul.f32.gmra.mxu0 %v707
        %v1224 = vpop.f32.mrf.mxu0
        %v1225 = vadd.f32 %v1184, %v1224
        %1226 = vmatmul.f32.gmra.mxu0 %v709
        %v1227 = vpop.f32.mrf.mxu0
        %v1228 = vadd.f32 %v1187, %v1227
        %1229 = vdwg.mxu0
        %1230 = vmatpush.msra.mxu0 %v804
        %1231 = vmatpush.msra.mxu0 %v798
        %1232 = vmatpush.msra.mxu0 %v792
        %1233 = vmatpush.msra.mxu0 %v786
        %1234 = vmatpush.msra.mxu0 %v780
        %1235 = vmatpush.msra.mxu0 %v774
        %1236 = vmatpush.msra.mxu0 %v768
        %1237 = vmatpush.msra.mxu0 %v762
        %1238 = vmatpush.msra.mxu0 %v756
        %1239 = vmatpush.msra.mxu0 %v750
        %1240 = vmatpush.msra.mxu0 %v744
        %1241 = vmatpush.msra.mxu0 %v738
        %1242 = vmatpush.msra.mxu0 %v732
        %1243 = vmatpush.msra.mxu0 %v726
        %1244 = vmatpush.msra.mxu0 %v720
        %1245 = vmatpush.msra.mxu0 %v714
        %1246 = vmatmul.f32.gmra.mxu0 %v694
        %v1247 = vpop.f32.mrf.mxu0
        %v1248 = vadd.f32 0.0, %v1247
        %1249 = vmatmul.f32.gmra.mxu0 %v696
        %v1250 = vpop.f32.mrf.mxu0
        %v1251 = vadd.f32 0.0, %v1250
        %1252 = vmatmul.f32.gmra.mxu0 %v698
        %v1253 = vpop.f32.mrf.mxu0
        %v1254 = vadd.f32 0.0, %v1253
        %1255 = vmatmul.f32.gmra.mxu0 %v700
        %v1256 = vpop.f32.mrf.mxu0
        %v1257 = vadd.f32 0.0, %v1256
        %1258 = vmatmul.f32.gmra.mxu0 %v702
        %v1259 = vpop.f32.mrf.mxu0
        %v1260 = vadd.f32 0.0, %v1259
        %1261 = vmatmul.f32.gmra.mxu0 %v704
        %v1262 = vpop.f32.mrf.mxu0
        %v1263 = vadd.f32 0.0, %v1262
        %1264 = vmatmul.f32.gmra.mxu0 %v706
        %v1265 = vpop.f32.mrf.mxu0
        %v1266 = vadd.f32 0.0, %v1265
        %1267 = vmatmul.f32.gmra.mxu0 %v708
        %v1268 = vpop.f32.mrf.mxu0
        %v1269 = vadd.f32 0.0, %v1268
        %1270 = vdwg.mxu0
        %1271 = vmatpush.msra.mxu0 %v900
        %1272 = vmatpush.msra.mxu0 %v894
        %1273 = vmatpush.msra.mxu0 %v888
        %1274 = vmatpush.msra.mxu0 %v882
        %1275 = vmatpush.msra.mxu0 %v876
        %1276 = vmatpush.msra.mxu0 %v870
        %1277 = vmatpush.msra.mxu0 %v864
        %1278 = vmatpush.msra.mxu0 %v858
        %1279 = vmatpush.msra.mxu0 %v852
        %1280 = vmatpush.msra.mxu0 %v846
        %1281 = vmatpush.msra.mxu0 %v840
        %1282 = vmatpush.msra.mxu0 %v834
        %1283 = vmatpush.msra.mxu0 %v828
        %1284 = vmatpush.msra.mxu0 %v822
        %1285 = vmatpush.msra.mxu0 %v816
        %1286 = vmatpush.msra.mxu0 %v810
        %1287 = vmatmul.f32.gmra.mxu0 %v695
        %v1288 = vpop.f32.mrf.mxu0
        %v1289 = vadd.f32 %v1248, %v1288
        %1290 = vmatmul.f32.gmra.mxu0 %v697
        %v1291 = vpop.f32.mrf.mxu0
        %v1292 = vadd.f32 %v1251, %v1291
        %1293 = vmatmul.f32.gmra.mxu0 %v699
        %v1294 = vpop.f32.mrf.mxu0
        %v1295 = vadd.f32 %v1254, %v1294
        %1296 = vmatmul.f32.gmra.mxu0 %v701
        %v1297 = vpop.f32.mrf.mxu0
        %v1298 = vadd.f32 %v1257, %v1297
        %1299 = vmatmul.f32.gmra.mxu0 %v703
        %v1300 = vpop.f32.mrf.mxu0
        %v1301 = vadd.f32 %v1260, %v1300
        %1302 = vmatmul.f32.gmra.mxu0 %v705
        %v1303 = vpop.f32.mrf.mxu0
        %v1304 = vadd.f32 %v1263, %v1303
        %1305 = vmatmul.f32.gmra.mxu0 %v707
        %v1306 = vpop.f32.mrf.mxu0
        %v1307 = vadd.f32 %v1266, %v1306
        %1308 = vmatmul.f32.gmra.mxu0 %v709
        %v1309 = vpop.f32.mrf.mxu0
        %v1310 = vadd.f32 %v1269, %v1309
        %1311 = vdwg.mxu0
        %1312 = vmatpush.msra.mxu0 %v805
        %1313 = vmatpush.msra.mxu0 %v799
        %1314 = vmatpush.msra.mxu0 %v793
        %1315 = vmatpush.msra.mxu0 %v787
        %1316 = vmatpush.msra.mxu0 %v781
        %1317 = vmatpush.msra.mxu0 %v775
        %1318 = vmatpush.msra.mxu0 %v769
        %1319 = vmatpush.msra.mxu0 %v763
        %1320 = vmatpush.msra.mxu0 %v757
        %1321 = vmatpush.msra.mxu0 %v751
        %1322 = vmatpush.msra.mxu0 %v745
        %1323 = vmatpush.msra.mxu0 %v739
        %1324 = vmatpush.msra.mxu0 %v733
        %1325 = vmatpush.msra.mxu0 %v727
        %1326 = vmatpush.msra.mxu0 %v721
        %1327 = vmatpush.msra.mxu0 %v715
        %1328 = vmatmul.f32.gmra.mxu0 %v694
        %v1329 = vpop.f32.mrf.mxu0
        %v1330 = vadd.f32 0.0, %v1329
        %1331 = vmatmul.f32.gmra.mxu0 %v696
        %v1332 = vpop.f32.mrf.mxu0
        %v1333 = vadd.f32 0.0, %v1332
        %1334 = vmatmul.f32.gmra.mxu0 %v698
        %v1335 = vpop.f32.mrf.mxu0
        %v1336 = vadd.f32 0.0, %v1335
        %1337 = vmatmul.f32.gmra.mxu0 %v700
        %v1338 = vpop.f32.mrf.mxu0
        %v1339 = vadd.f32 0.0, %v1338
        %1340 = vmatmul.f32.gmra.mxu0 %v702
        %v1341 = vpop.f32.mrf.mxu0
        %v1342 = vadd.f32 0.0, %v1341
        %1343 = vmatmul.f32.gmra.mxu0 %v704
        %v1344 = vpop.f32.mrf.mxu0
        %v1345 = vadd.f32 0.0, %v1344
        %1346 = vmatmul.f32.gmra.mxu0 %v706
        %v1347 = vpop.f32.mrf.mxu0
        %v1348 = vadd.f32 0.0, %v1347
        %1349 = vmatmul.f32.gmra.mxu0 %v708
        %v1350 = vpop.f32.mrf.mxu0
        %v1351 = vadd.f32 0.0, %v1350
        %1352 = vdwg.mxu0
        %1353 = vmatpush.msra.mxu0 %v901
        %1354 = vmatpush.msra.mxu0 %v895
        %1355 = vmatpush.msra.mxu0 %v889
        %1356 = vmatpush.msra.mxu0 %v883
        %1357 = vmatpush.msra.mxu0 %v877
        %1358 = vmatpush.msra.mxu0 %v871
        %1359 = vmatpush.msra.mxu0 %v865
        %1360 = vmatpush.msra.mxu0 %v859
        %1361 = vmatpush.msra.mxu0 %v853
        %1362 = vmatpush.msra.mxu0 %v847
        %1363 = vmatpush.msra.mxu0 %v841
        %1364 = vmatpush.msra.mxu0 %v835
        %1365 = vmatpush.msra.mxu0 %v829
        %1366 = vmatpush.msra.mxu0 %v823
        %1367 = vmatpush.msra.mxu0 %v817
        %1368 = vmatpush.msra.mxu0 %v811
        %1369 = vmatmul.f32.gmra.mxu0 %v695
        %v1370 = vpop.f32.mrf.mxu0
        %v1371 = vadd.f32 %v1330, %v1370
        %1372 = vmatmul.f32.gmra.mxu0 %v697
        %v1373 = vpop.f32.mrf.mxu0
        %v1374 = vadd.f32 %v1333, %v1373
        %1375 = vmatmul.f32.gmra.mxu0 %v699
        %v1376 = vpop.f32.mrf.mxu0
        %v1377 = vadd.f32 %v1336, %v1376
        %1378 = vmatmul.f32.gmra.mxu0 %v701
        %v1379 = vpop.f32.mrf.mxu0
        %v1380 = vadd.f32 %v1339, %v1379
        %1381 = vmatmul.f32.gmra.mxu0 %v703
        %v1382 = vpop.f32.mrf.mxu0
        %v1383 = vadd.f32 %v1342, %v1382
        %1384 = vmatmul.f32.gmra.mxu0 %v705
        %v1385 = vpop.f32.mrf.mxu0
        %v1386 = vadd.f32 %v1345, %v1385
        %1387 = vmatmul.f32.gmra.mxu0 %v707
        %v1388 = vpop.f32.mrf.mxu0
        %v1389 = vadd.f32 %v1348, %v1388
        %1390 = vmatmul.f32.gmra.mxu0 %v709
        %v1391 = vpop.f32.mrf.mxu0
        %v1392 = vadd.f32 %v1351, %v1391
        %1393 = vdwg.mxu0
        %v1394 = vadd.f32 %v646, %v961
        %v1395 = vadd.f32 %v647, %v1043
        %v1396 = vadd.f32 %v648, %v1125
        %v1397 = vadd.f32 %v649, %v1207
        %v1398 = vadd.f32 %v650, %v1289
        %v1399 = vadd.f32 %v651, %v1371
        %v1400 = vadd.f32 %v652, %v964
        %v1401 = vadd.f32 %v653, %v1046
        %v1402 = vadd.f32 %v654, %v1128
        %v1403 = vadd.f32 %v655, %v1210
        %v1404 = vadd.f32 %v656, %v1292
        %v1405 = vadd.f32 %v657, %v1374
        %v1406 = vadd.f32 %v658, %v967
        %v1407 = vadd.f32 %v659, %v1049
        %v1408 = vadd.f32 %v660, %v1131
        %v1409 = vadd.f32 %v661, %v1213
        %v1410 = vadd.f32 %v662, %v1295
        %v1411 = vadd.f32 %v663, %v1377
        %v1412 = vadd.f32 %v664, %v970
        %v1413 = vadd.f32 %v665, %v1052
        %v1414 = vadd.f32 %v666, %v1134
        %v1415 = vadd.f32 %v667, %v1216
        %v1416 = vadd.f32 %v668, %v1298
        %v1417 = vadd.f32 %v669, %v1380
        %v1418 = vadd.f32 %v670, %v973
        %v1419 = vadd.f32 %v671, %v1055
        %v1420 = vadd.f32 %v672, %v1137
        %v1421 = vadd.f32 %v673, %v1219
        %v1422 = vadd.f32 %v674, %v1301
        %v1423 = vadd.f32 %v675, %v1383
        %v1424 = vadd.f32 %v676, %v976
        %v1425 = vadd.f32 %v677, %v1058
        %v1426 = vadd.f32 %v678, %v1140
        %v1427 = vadd.f32 %v679, %v1222
        %v1428 = vadd.f32 %v680, %v1304
        %v1429 = vadd.f32 %v681, %v1386
        %v1430 = vadd.f32 %v682, %v979
        %v1431 = vadd.f32 %v683, %v1061
        %v1432 = vadd.f32 %v684, %v1143
        %v1433 = vadd.f32 %v685, %v1225
        %v1434 = vadd.f32 %v686, %v1307
        %v1435 = vadd.f32 %v687, %v1389
        %v1436 = vadd.f32 %v688, %v982
        %v1437 = vadd.f32 %v689, %v1064
        %v1438 = vadd.f32 %v690, %v1146
        %v1439 = vadd.f32 %v691, %v1228
        %v1440 = vadd.f32 %v692, %v1310
        %v1441 = vadd.f32 %v693, %v1392
        %1442 = vst [vmem:[#allocation2] sm:$0xff] %v1394
        %1443 = vst [vmem:[#allocation2 + $0x8] sm:$0xff] %v1395
        %1444 = vst [vmem:[#allocation2 + $0x10] sm:$0xff] %v1396
        %1445 = vst [vmem:[#allocation2 + $0x18] sm:$0xff] %v1397
        %1446 = vst [vmem:[#allocation2 + $0x20] sm:$0xff] %v1398
        %1447 = vst [vmem:[#allocation2 + $0x28] sm:$0xff] %v1399
        %1448 = vst [vmem:[#allocation2 + $0x30] sm:$0xff] %v1400
        %1449 = vst [vmem:[#allocation2 + $0x38] sm:$0xff] %v1401
        %1450 = vst [vmem:[#allocation2 + $0x40] sm:$0xff] %v1402
        %1451 = vst [vmem:[#allocation2 + $0x48] sm:$0xff] %v1403
        %1452 = vst [vmem:[#allocation2 + $0x50] sm:$0xff] %v1404
        %1453 = vst [vmem:[#allocation2 + $0x58] sm:$0xff] %v1405
        %1454 = vst [vmem:[#allocation2 + $0x60] sm:$0xff] %v1406
        %1455 = vst [vmem:[#allocation2 + $0x68] sm:$0xff] %v1407
        %1456 = vst [vmem:[#allocation2 + $0x70] sm:$0xff] %v1408
        %1457 = vst [vmem:[#allocation2 + $0x78] sm:$0xff] %v1409
        %1458 = vst [vmem:[#allocation2 + $0x80] sm:$0xff] %v1410
        %1459 = vst [vmem:[#allocation2 + $0x88] sm:$0xff] %v1411
        %1460 = vst [vmem:[#allocation2 + $0x90] sm:$0xff] %v1412
        %1461 = vst [vmem:[#allocation2 + $0x98] sm:$0xff] %v1413
        %1462 = vst [vmem:[#allocation2 + $0xa0] sm:$0xff] %v1414
        %1463 = vst [vmem:[#allocation2 + $0xa8] sm:$0xff] %v1415
        %1464 = vst [vmem:[#allocation2 + $0xb0] sm:$0xff] %v1416
        %1465 = vst [vmem:[#allocation2 + $0xb8] sm:$0xff] %v1417
        %1466 = vst [vmem:[#allocation2 + $0xc0] sm:$0xff] %v1418
        %1467 = vst [vmem:[#allocation2 + $0xc8] sm:$0xff] %v1419
        %1468 = vst [vmem:[#allocation2 + $0xd0] sm:$0xff] %v1420
        %1469 = vst [vmem:[#allocation2 + $0xd8] sm:$0xff] %v1421
        %1470 = vst [vmem:[#allocation2 + $0xe0] sm:$0xff] %v1422
        %1471 = vst [vmem:[#allocation2 + $0xe8] sm:$0xff] %v1423
        %1472 = vst [vmem:[#allocation2 + $0xf0] sm:$0xff] %v1424
        %1473 = vst [vmem:[#allocation2 + $0xf8] sm:$0xff] %v1425
        %1474 = vst [vmem:[#allocation2 + $0x100] sm:$0xff] %v1426
        %1475 = vst [vmem:[#allocation2 + $0x108] sm:$0xff] %v1427
        %1476 = vst [vmem:[#allocation2 + $0x110] sm:$0xff] %v1428
        %1477 = vst [vmem:[#allocation2 + $0x118] sm:$0xff] %v1429
        %1478 = vst [vmem:[#allocation2 + $0x120] sm:$0xff] %v1430
        %1479 = vst [vmem:[#allocation2 + $0x128] sm:$0xff] %v1431
        %1480 = vst [vmem:[#allocation2 + $0x130] sm:$0xff] %v1432
        %1481 = vst [vmem:[#allocation2 + $0x138] sm:$0xff] %v1433
        %1482 = vst [vmem:[#allocation2 + $0x140] sm:$0xff] %v1434
        %1483 = vst [vmem:[#allocation2 + $0x148] sm:$0xff] %v1435
        %1484 = vst [vmem:[#allocation2 + $0x150] sm:$0xff] %v1436
        %1485 = vst [vmem:[#allocation2 + $0x158] sm:$0xff] %v1437
        %1486 = vst [vmem:[#allocation2 + $0x160] sm:$0xff] %v1438
        %1487 = vst [vmem:[#allocation2 + $0x168] sm:$0xff] %v1439
        %1488 = vst [vmem:[#allocation2 + $0x170] sm:$0xff] %v1440
        %1489 = vst [vmem:[#allocation2 + $0x178] sm:$0xff] %v1441
        // Predicated region
        $region81: #{wan_self_attention_forward.3} parent=51 // pred_check
          %p1490 = pneg %p594
        $region82: #{wan_self_attention_forward.3} parent=51 // pred_check_branch
          %1492 = sbr.rel (%p1490) target = $region84
        $region83: #{wan_self_attention_forward.3} parent=51 // pred_region
          %v1493 = vld [vmem:[#allocation2] sm:$0xff]
          %v1494 = vld [vmem:[#allocation2 + $0x8] sm:$0xff]
          %v1495 = vld [vmem:[#allocation2 + $0x30] sm:$0xff]
          %v1496 = vld [vmem:[#allocation2 + $0x38] sm:$0xff]
          %v1497 = vld [vmem:[#allocation2 + $0x60] sm:$0xff]
          %v1498 = vld [vmem:[#allocation2 + $0x68] sm:$0xff]
          %v1499 = vld [vmem:[#allocation2 + $0x90] sm:$0xff]
          %v1500 = vld [vmem:[#allocation2 + $0x98] sm:$0xff]
          %v1501 = vld [vmem:[#allocation2 + $0xc0] sm:$0xff]
          %v1502 = vld [vmem:[#allocation2 + $0xc8] sm:$0xff]
          %v1503 = vld [vmem:[#allocation2 + $0xf0] sm:$0xff]
          %v1504 = vld [vmem:[#allocation2 + $0xf8] sm:$0xff]
          %v1505 = vld [vmem:[#allocation2 + $0x120] sm:$0xff]
          %v1506 = vld [vmem:[#allocation2 + $0x128] sm:$0xff]
          %v1507 = vld [vmem:[#allocation2 + $0x150] sm:$0xff]
          %v1508 = vld [vmem:[#allocation2 + $0x158] sm:$0xff]
          %v1509 = vld [vmem:[#allocation7] sm:$0x3]
          %v1511 = vperm.slane %v1509, 0
          %v1512 = vperm.slane %v1509, 1
          %v1515 = vadd.f32 %v1493, %v1511
          %v1516 = vadd.f32 %v1494, %v1512
          %v1517 = vadd.f32 %v1495, %v1511
          %v1518 = vadd.f32 %v1496, %v1512
          %v1519 = vadd.f32 %v1497, %v1511
          %v1520 = vadd.f32 %v1498, %v1512
          %v1521 = vadd.f32 %v1499, %v1511
          %v1522 = vadd.f32 %v1500, %v1512
          %v1523 = vadd.f32 %v1501, %v1511
          %v1524 = vadd.f32 %v1502, %v1512
          %v1525 = vadd.f32 %v1503, %v1511
          %v1526 = vadd.f32 %v1504, %v1512
          %v1527 = vadd.f32 %v1505, %v1511
          %v1528 = vadd.f32 %v1506, %v1512
          %v1529 = vadd.f32 %v1507, %v1511
          %v1530 = vadd.f32 %v1508, %v1512
          %v1531 = vld [vmem:[#allocation2 + $0x10] sm:$0xff]
          %v1532 = vld [vmem:[#allocation2 + $0x18] sm:$0xff]
          %v1533 = vld [vmem:[#allocation2 + $0x40] sm:$0xff]
          %v1534 = vld [vmem:[#allocation2 + $0x48] sm:$0xff]
          %v1535 = vld [vmem:[#allocation2 + $0x70] sm:$0xff]
          %v1536 = vld [vmem:[#allocation2 + $0x78] sm:$0xff]
          %v1537 = vld [vmem:[#allocation2 + $0xa0] sm:$0xff]
          %v1538 = vld [vmem:[#allocation2 + $0xa8] sm:$0xff]
          %v1539 = vld [vmem:[#allocation2 + $0xd0] sm:$0xff]
          %v1540 = vld [vmem:[#allocation2 + $0xd8] sm:$0xff]
          %v1541 = vld [vmem:[#allocation2 + $0x100] sm:$0xff]
          %v1542 = vld [vmem:[#allocation2 + $0x108] sm:$0xff]
          %v1543 = vld [vmem:[#allocation2 + $0x130] sm:$0xff]
          %v1544 = vld [vmem:[#allocation2 + $0x138] sm:$0xff]
          %v1545 = vld [vmem:[#allocation2 + $0x160] sm:$0xff]
          %v1546 = vld [vmem:[#allocation2 + $0x168] sm:$0xff]
          %v1547 = vld [vmem:[#allocation7 + $0x2] sm:$0x3]
          %v1549 = vperm.slane %v1547, 0
          %v1550 = vperm.slane %v1547, 1
          %v1553 = vadd.f32 %v1531, %v1549
          %v1554 = vadd.f32 %v1532, %v1550
          %v1555 = vadd.f32 %v1533, %v1549
          %v1556 = vadd.f32 %v1534, %v1550
          %v1557 = vadd.f32 %v1535, %v1549
          %v1558 = vadd.f32 %v1536, %v1550
          %v1559 = vadd.f32 %v1537, %v1549
          %v1560 = vadd.f32 %v1538, %v1550
          %v1561 = vadd.f32 %v1539, %v1549
          %v1562 = vadd.f32 %v1540, %v1550
          %v1563 = vadd.f32 %v1541, %v1549
          %v1564 = vadd.f32 %v1542, %v1550
          %v1565 = vadd.f32 %v1543, %v1549
          %v1566 = vadd.f32 %v1544, %v1550
          %v1567 = vadd.f32 %v1545, %v1549
          %v1568 = vadd.f32 %v1546, %v1550
          %v1569 = vld [vmem:[#allocation2 + $0x20] sm:$0xff]
          %v1570 = vld [vmem:[#allocation2 + $0x28] sm:$0xff]
          %v1571 = vld [vmem:[#allocation2 + $0x50] sm:$0xff]
          %v1572 = vld [vmem:[#allocation2 + $0x58] sm:$0xff]
          %v1573 = vld [vmem:[#allocation2 + $0x80] sm:$0xff]
          %v1574 = vld [vmem:[#allocation2 + $0x88] sm:$0xff]
          %v1575 = vld [vmem:[#allocation2 + $0xb0] sm:$0xff]
          %v1576 = vld [vmem:[#allocation2 + $0xb8] sm:$0xff]
          %v1577 = vld [vmem:[#allocation2 + $0xe0] sm:$0xff]
          %v1578 = vld [vmem:[#allocation2 + $0xe8] sm:$0xff]
          %v1579 = vld [vmem:[#allocation2 + $0x110] sm:$0xff]
          %v1580 = vld [vmem:[#allocation2 + $0x118] sm:$0xff]
          %v1581 = vld [vmem:[#allocation2 + $0x140] sm:$0xff]
          %v1582 = vld [vmem:[#allocation2 + $0x148] sm:$0xff]
          %v1583 = vld [vmem:[#allocation2 + $0x170] sm:$0xff]
          %v1584 = vld [vmem:[#allocation2 + $0x178] sm:$0xff]
          %v1585 = vld [vmem:[#allocation7 + $0x4] sm:$0x3]
          %v1587 = vperm.slane %v1585, 0
          %v1588 = vperm.slane %v1585, 1
          %v1591 = vadd.f32 %v1569, %v1587
          %v1592 = vadd.f32 %v1570, %v1588
          %v1593 = vadd.f32 %v1571, %v1587
          %v1594 = vadd.f32 %v1572, %v1588
          %v1595 = vadd.f32 %v1573, %v1587
          %v1596 = vadd.f32 %v1574, %v1588
          %v1597 = vadd.f32 %v1575, %v1587
          %v1598 = vadd.f32 %v1576, %v1588
          %v1599 = vadd.f32 %v1577, %v1587
          %v1600 = vadd.f32 %v1578, %v1588
          %v1601 = vadd.f32 %v1579, %v1587
          %v1602 = vadd.f32 %v1580, %v1588
          %v1603 = vadd.f32 %v1581, %v1587
          %v1604 = vadd.f32 %v1582, %v1588
          %v1605 = vadd.f32 %v1583, %v1587
          %v1606 = vadd.f32 %v1584, %v1588
          %v1607 = vld [vmem:[%s3] sm:$0x3]
          %v1608 = vmul.f32 %v1515, %v1515
          %v1609 = vmul.f32 %v1516, %v1516
          %v1610 = vmul.f32 %v1517, %v1517
          %v1611 = vmul.f32 %v1518, %v1518
          %v1612 = vmul.f32 %v1519, %v1519
          %v1613 = vmul.f32 %v1520, %v1520
          %v1614 = vmul.f32 %v1521, %v1521
          %v1615 = vmul.f32 %v1522, %v1522
          %v1616 = vmul.f32 %v1523, %v1523
          %v1617 = vmul.f32 %v1524, %v1524
          %v1618 = vmul.f32 %v1525, %v1525
          %v1619 = vmul.f32 %v1526, %v1526
          %v1620 = vmul.f32 %v1527, %v1527
          %v1621 = vmul.f32 %v1528, %v1528
          %v1622 = vmul.f32 %v1529, %v1529
          %v1623 = vmul.f32 %v1530, %v1530
          %v1624 = vadd.f32 %v1608, %v1609
          %1625 = vadd.xlane.f32.xlu0 %v1624
          %v1626 = vpop.xlane.xlu0 %1625
          %v1627 = vadd.f32 %v1610, %v1611
          %1628 = vadd.xlane.f32.xlu0 %v1627
          %v1629 = vpop.xlane.xlu0 %1628
          %v1630 = vadd.f32 %v1612, %v1613
          %1631 = vadd.xlane.f32.xlu0 %v1630
          %v1632 = vpop.xlane.xlu0 %1631
          %v1633 = vadd.f32 %v1614, %v1615
          %1634 = vadd.xlane.f32.xlu0 %v1633
          %v1635 = vpop.xlane.xlu0 %1634
          %v1636 = vadd.f32 %v1616, %v1617
          %1637 = vadd.xlane.f32.xlu0 %v1636
          %v1638 = vpop.xlane.xlu0 %1637
          %v1639 = vadd.f32 %v1618, %v1619
          %1640 = vadd.xlane.f32.xlu0 %v1639
          %v1641 = vpop.xlane.xlu0 %1640
          %v1642 = vadd.f32 %v1620, %v1621
          %1643 = vadd.xlane.f32.xlu0 %v1642
          %v1644 = vpop.xlane.xlu0 %1643
          %v1645 = vadd.f32 %v1622, %v1623
          %1646 = vadd.xlane.f32.xlu0 %v1645
          %v1647 = vpop.xlane.xlu0 %1646
          %v1648 = vrcp.pop 256.0
          %v1649 = vmul.f32 256.0, %v1648
          %v1650 = vsub.f32 1.0, %v1649
          %v1651 = vmul.f32 %v1648, %v1650
          %v1652 = vadd.f32 %v1648, %v1651
          %vm1653 = vweird.f32 %v1648
          %v1654 = vsel %vm1653, %v1648, %v1652
          %v1655 = vmul.f32 %v1626, %v1654
          %v1656 = vmul.f32 %v1629, %v1654
          %v1657 = vmul.f32 %v1632, %v1654
          %v1658 = vmul.f32 %v1635, %v1654
          %v1659 = vmul.f32 %v1638, %v1654
          %v1660 = vmul.f32 %v1641, %v1654
          %v1661 = vmul.f32 %v1644, %v1654
          %v1662 = vmul.f32 %v1647, %v1654
          %v1663 = vadd.f32 %v1655, 1e-06
          %v1664 = vadd.f32 %v1656, 1e-06
          %v1665 = vadd.f32 %v1657, 1e-06
          %v1666 = vadd.f32 %v1658, 1e-06
          %v1667 = vadd.f32 %v1659, 1e-06
          %v1668 = vadd.f32 %v1660, 1e-06
          %v1669 = vadd.f32 %v1661, 1e-06
          %v1670 = vadd.f32 %v1662, 1e-06
          %v1671 = vrsqrt.pop %v1663
          %v1672 = vmul.f32 %v1671, %v1663
          %v1673 = vmul.f32 %v1672, %v1671
          %v1674 = vmul.f32 0.5, %v1673
          %v1675 = vsub.f32 1.5, %v1674
          %v1676 = vmul.f32 %v1671, %v1675
          %vm1677 = vweird.f32 %v1663
          %vm1678 = vweird.f32 %v1671
          %vm1679 = vmor %vm1677, %vm1678
          %v1680 = vsel %vm1679, %v1671, %v1676
          %v1681 = vrsqrt.pop %v1664
          %v1682 = vmul.f32 %v1681, %v1664
          %v1683 = vmul.f32 %v1682, %v1681
          %v1684 = vmul.f32 0.5, %v1683
          %v1685 = vsub.f32 1.5, %v1684
          %v1686 = vmul.f32 %v1681, %v1685
          %vm1687 = vweird.f32 %v1664
          %vm1688 = vweird.f32 %v1681
          %vm1689 = vmor %vm1687, %vm1688
          %v1690 = vsel %vm1689, %v1681, %v1686
          %v1691 = vrsqrt.pop %v1665
          %v1692 = vmul.f32 %v1691, %v1665
          %v1693 = vmul.f32 %v1692, %v1691
          %v1694 = vmul.f32 0.5, %v1693
          %v1695 = vsub.f32 1.5, %v1694
          %v1696 = vmul.f32 %v1691, %v1695
          %vm1697 = vweird.f32 %v1665
          %vm1698 = vweird.f32 %v1691
          %vm1699 = vmor %vm1697, %vm1698
          %v1700 = vsel %vm1699, %v1691, %v1696
          %v1701 = vrsqrt.pop %v1666
          %v1702 = vmul.f32 %v1701, %v1666
          %v1703 = vmul.f32 %v1702, %v1701
          %v1704 = vmul.f32 0.5, %v1703
          %v1705 = vsub.f32 1.5, %v1704
          %v1706 = vmul.f32 %v1701, %v1705
          %vm1707 = vweird.f32 %v1666
          %vm1708 = vweird.f32 %v1701
          %vm1709 = vmor %vm1707, %vm1708
          %v1710 = vsel %vm1709, %v1701, %v1706
          %v1711 = vrsqrt.pop %v1667
          %v1712 = vmul.f32 %v1711, %v1667
          %v1713 = vmul.f32 %v1712, %v1711
          %v1714 = vmul.f32 0.5, %v1713
          %v1715 = vsub.f32 1.5, %v1714
          %v1716 = vmul.f32 %v1711, %v1715
          %vm1717 = vweird.f32 %v1667
          %vm1718 = vweird.f32 %v1711
          %vm1719 = vmor %vm1717, %vm1718
          %v1720 = vsel %vm1719, %v1711, %v1716
          %v1721 = vrsqrt.pop %v1668
          %v1722 = vmul.f32 %v1721, %v1668
          %v1723 = vmul.f32 %v1722, %v1721
          %v1724 = vmul.f32 0.5, %v1723
          %v1725 = vsub.f32 1.5, %v1724
          %v1726 = vmul.f32 %v1721, %v1725
          %vm1727 = vweird.f32 %v1668
          %vm1728 = vweird.f32 %v1721
          %vm1729 = vmor %vm1727, %vm1728
          %v1730 = vsel %vm1729, %v1721, %v1726
          %v1731 = vrsqrt.pop %v1669
          %v1732 = vmul.f32 %v1731, %v1669
          %v1733 = vmul.f32 %v1732, %v1731
          %v1734 = vmul.f32 0.5, %v1733
          %v1735 = vsub.f32 1.5, %v1734
          %v1736 = vmul.f32 %v1731, %v1735
          %vm1737 = vweird.f32 %v1669
          %vm1738 = vweird.f32 %v1731
          %vm1739 = vmor %vm1737, %vm1738
          %v1740 = vsel %vm1739, %v1731, %v1736
          %v1741 = vrsqrt.pop %v1670
          %v1742 = vmul.f32 %v1741, %v1670
          %v1743 = vmul.f32 %v1742, %v1741
          %v1744 = vmul.f32 0.5, %v1743
          %v1745 = vsub.f32 1.5, %v1744
          %v1746 = vmul.f32 %v1741, %v1745
          %vm1747 = vweird.f32 %v1670
          %vm1748 = vweird.f32 %v1741
          %vm1749 = vmor %vm1747, %vm1748
          %v1750 = vsel %vm1749, %v1741, %v1746
          %v1751 = vmul.f32 %v1515, %v1680
          %v1752 = vmul.f32 %v1516, %v1680
          %v1753 = vmul.f32 %v1517, %v1690
          %v1754 = vmul.f32 %v1518, %v1690
          %v1755 = vmul.f32 %v1519, %v1700
          %v1756 = vmul.f32 %v1520, %v1700
          %v1757 = vmul.f32 %v1521, %v1710
          %v1758 = vmul.f32 %v1522, %v1710
          %v1759 = vmul.f32 %v1523, %v1720
          %v1760 = vmul.f32 %v1524, %v1720
          %v1761 = vmul.f32 %v1525, %v1730
          %v1762 = vmul.f32 %v1526, %v1730
          %v1763 = vmul.f32 %v1527, %v1740
          %v1764 = vmul.f32 %v1528, %v1740
          %v1765 = vmul.f32 %v1529, %v1750
          %v1766 = vmul.f32 %v1530, %v1750
          %v1768 = vperm.slane %v1607, 0
          %v1769 = vperm.slane %v1607, 1
          %v1772 = vmul.f32 %v1751, %v1768
          %v1773 = vmul.f32 %v1752, %v1769
          %v1774 = vmul.f32 %v1753, %v1768
          %v1775 = vmul.f32 %v1754, %v1769
          %v1776 = vmul.f32 %v1755, %v1768
          %v1777 = vmul.f32 %v1756, %v1769
          %v1778 = vmul.f32 %v1757, %v1768
          %v1779 = vmul.f32 %v1758, %v1769
          %v1780 = vmul.f32 %v1759, %v1768
          %v1781 = vmul.f32 %v1760, %v1769
          %v1782 = vmul.f32 %v1761, %v1768
          %v1783 = vmul.f32 %v1762, %v1769
          %v1784 = vmul.f32 %v1763, %v1768
          %v1785 = vmul.f32 %v1764, %v1769
          %v1786 = vmul.f32 %v1765, %v1768
          %v1787 = vmul.f32 %v1766, %v1769
          %v1788 = vld [vmem:[%s4] sm:$0x3]
          %v1789 = vmul.f32 %v1553, %v1553
          %v1790 = vmul.f32 %v1554, %v1554
          %v1791 = vmul.f32 %v1555, %v1555
          %v1792 = vmul.f32 %v1556, %v1556
          %v1793 = vmul.f32 %v1557, %v1557
          %v1794 = vmul.f32 %v1558, %v1558
          %v1795 = vmul.f32 %v1559, %v1559
          %v1796 = vmul.f32 %v1560, %v1560
          %v1797 = vmul.f32 %v1561, %v1561
          %v1798 = vmul.f32 %v1562, %v1562
          %v1799 = vmul.f32 %v1563, %v1563
          %v1800 = vmul.f32 %v1564, %v1564
          %v1801 = vmul.f32 %v1565, %v1565
          %v1802 = vmul.f32 %v1566, %v1566
          %v1803 = vmul.f32 %v1567, %v1567
          %v1804 = vmul.f32 %v1568, %v1568
          %v1805 = vadd.f32 %v1789, %v1790
          %1806 = vadd.xlane.f32.xlu0 %v1805
          %v1807 = vpop.xlane.xlu0 %1806
          %v1808 = vadd.f32 %v1791, %v1792
          %1809 = vadd.xlane.f32.xlu0 %v1808
          %v1810 = vpop.xlane.xlu0 %1809
          %v1811 = vadd.f32 %v1793, %v1794
          %1812 = vadd.xlane.f32.xlu0 %v1811
          %v1813 = vpop.xlane.xlu0 %1812
          %v1814 = vadd.f32 %v1795, %v1796
          %1815 = vadd.xlane.f32.xlu0 %v1814
          %v1816 = vpop.xlane.xlu0 %1815
          %v1817 = vadd.f32 %v1797, %v1798
          %1818 = vadd.xlane.f32.xlu0 %v1817
          %v1819 = vpop.xlane.xlu0 %1818
          %v1820 = vadd.f32 %v1799, %v1800
          %1821 = vadd.xlane.f32.xlu0 %v1820
          %v1822 = vpop.xlane.xlu0 %1821
          %v1823 = vadd.f32 %v1801, %v1802
          %1824 = vadd.xlane.f32.xlu0 %v1823
          %v1825 = vpop.xlane.xlu0 %1824
          %v1826 = vadd.f32 %v1803, %v1804
          %1827 = vadd.xlane.f32.xlu0 %v1826
          %v1828 = vpop.xlane.xlu0 %1827
          %v1829 = vmul.f32 %v1807, %v1654
          %v1830 = vmul.f32 %v1810, %v1654
          %v1831 = vmul.f32 %v1813, %v1654
          %v1832 = vmul.f32 %v1816, %v1654
          %v1833 = vmul.f32 %v1819, %v1654
          %v1834 = vmul.f32 %v1822, %v1654
          %v1835 = vmul.f32 %v1825, %v1654
          %v1836 = vmul.f32 %v1828, %v1654
          %v1837 = vadd.f32 %v1829, 1e-06
          %v1838 = vadd.f32 %v1830, 1e-06
          %v1839 = vadd.f32 %v1831, 1e-06
          %v1840 = vadd.f32 %v1832, 1e-06
          %v1841 = vadd.f32 %v1833, 1e-06
          %v1842 = vadd.f32 %v1834, 1e-06
          %v1843 = vadd.f32 %v1835, 1e-06
          %v1844 = vadd.f32 %v1836, 1e-06
          %v1845 = vrsqrt.pop %v1837
          %v1846 = vmul.f32 %v1845, %v1837
          %v1847 = vmul.f32 %v1846, %v1845
          %v1848 = vmul.f32 0.5, %v1847
          %v1849 = vsub.f32 1.5, %v1848
          %v1850 = vmul.f32 %v1845, %v1849
          %vm1851 = vweird.f32 %v1837
          %vm1852 = vweird.f32 %v1845
          %vm1853 = vmor %vm1851, %vm1852
          %v1854 = vsel %vm1853, %v1845, %v1850
          %v1855 = vrsqrt.pop %v1838
          %v1856 = vmul.f32 %v1855, %v1838
          %v1857 = vmul.f32 %v1856, %v1855
          %v1858 = vmul.f32 0.5, %v1857
          %v1859 = vsub.f32 1.5, %v1858
          %v1860 = vmul.f32 %v1855, %v1859
          %vm1861 = vweird.f32 %v1838
          %vm1862 = vweird.f32 %v1855
          %vm1863 = vmor %vm1861, %vm1862
          %v1864 = vsel %vm1863, %v1855, %v1860
          %v1865 = vrsqrt.pop %v1839
          %v1866 = vmul.f32 %v1865, %v1839
          %v1867 = vmul.f32 %v1866, %v1865
          %v1868 = vmul.f32 0.5, %v1867
          %v1869 = vsub.f32 1.5, %v1868
          %v1870 = vmul.f32 %v1865, %v1869
          %vm1871 = vweird.f32 %v1839
          %vm1872 = vweird.f32 %v1865
          %vm1873 = vmor %vm1871, %vm1872
          %v1874 = vsel %vm1873, %v1865, %v1870
          %v1875 = vrsqrt.pop %v1840
          %v1876 = vmul.f32 %v1875, %v1840
          %v1877 = vmul.f32 %v1876, %v1875
          %v1878 = vmul.f32 0.5, %v1877
          %v1879 = vsub.f32 1.5, %v1878
          %v1880 = vmul.f32 %v1875, %v1879
          %vm1881 = vweird.f32 %v1840
          %vm1882 = vweird.f32 %v1875
          %vm1883 = vmor %vm1881, %vm1882
          %v1884 = vsel %vm1883, %v1875, %v1880
          %v1885 = vrsqrt.pop %v1841
          %v1886 = vmul.f32 %v1885, %v1841
          %v1887 = vmul.f32 %v1886, %v1885
          %v1888 = vmul.f32 0.5, %v1887
          %v1889 = vsub.f32 1.5, %v1888
          %v1890 = vmul.f32 %v1885, %v1889
          %vm1891 = vweird.f32 %v1841
          %vm1892 = vweird.f32 %v1885
          %vm1893 = vmor %vm1891, %vm1892
          %v1894 = vsel %vm1893, %v1885, %v1890
          %v1895 = vrsqrt.pop %v1842
          %v1896 = vmul.f32 %v1895, %v1842
          %v1897 = vmul.f32 %v1896, %v1895
          %v1898 = vmul.f32 0.5, %v1897
          %v1899 = vsub.f32 1.5, %v1898
          %v1900 = vmul.f32 %v1895, %v1899
          %vm1901 = vweird.f32 %v1842
          %vm1902 = vweird.f32 %v1895
          %vm1903 = vmor %vm1901, %vm1902
          %v1904 = vsel %vm1903, %v1895, %v1900
          %v1905 = vrsqrt.pop %v1843
          %v1906 = vmul.f32 %v1905, %v1843
          %v1907 = vmul.f32 %v1906, %v1905
          %v1908 = vmul.f32 0.5, %v1907
          %v1909 = vsub.f32 1.5, %v1908
          %v1910 = vmul.f32 %v1905, %v1909
          %vm1911 = vweird.f32 %v1843
          %vm1912 = vweird.f32 %v1905
          %vm1913 = vmor %vm1911, %vm1912
          %v1914 = vsel %vm1913, %v1905, %v1910
          %v1915 = vrsqrt.pop %v1844
          %v1916 = vmul.f32 %v1915, %v1844
          %v1917 = vmul.f32 %v1916, %v1915
          %v1918 = vmul.f32 0.5, %v1917
          %v1919 = vsub.f32 1.5, %v1918
          %v1920 = vmul.f32 %v1915, %v1919
          %vm1921 = vweird.f32 %v1844
          %vm1922 = vweird.f32 %v1915
          %vm1923 = vmor %vm1921, %vm1922
          %v1924 = vsel %vm1923, %v1915, %v1920
          %v1925 = vmul.f32 %v1553, %v1854
          %v1926 = vmul.f32 %v1554, %v1854
          %v1927 = vmul.f32 %v1555, %v1864
          %v1928 = vmul.f32 %v1556, %v1864
          %v1929 = vmul.f32 %v1557, %v1874
          %v1930 = vmul.f32 %v1558, %v1874
          %v1931 = vmul.f32 %v1559, %v1884
          %v1932 = vmul.f32 %v1560, %v1884
          %v1933 = vmul.f32 %v1561, %v1894
          %v1934 = vmul.f32 %v1562, %v1894
          %v1935 = vmul.f32 %v1563, %v1904
          %v1936 = vmul.f32 %v1564, %v1904
          %v1937 = vmul.f32 %v1565, %v1914
          %v1938 = vmul.f32 %v1566, %v1914
          %v1939 = vmul.f32 %v1567, %v1924
          %v1940 = vmul.f32 %v1568, %v1924
          %v1942 = vperm.slane %v1788, 0
          %v1943 = vperm.slane %v1788, 1
          %v1946 = vmul.f32 %v1925, %v1942
          %v1947 = vmul.f32 %v1926, %v1943
          %v1948 = vmul.f32 %v1927, %v1942
          %v1949 = vmul.f32 %v1928, %v1943
          %v1950 = vmul.f32 %v1929, %v1942
          %v1951 = vmul.f32 %v1930, %v1943
          %v1952 = vmul.f32 %v1931, %v1942
          %v1953 = vmul.f32 %v1932, %v1943
          %v1954 = vmul.f32 %v1933, %v1942
          %v1955 = vmul.f32 %v1934, %v1943
          %v1956 = vmul.f32 %v1935, %v1942
          %v1957 = vmul.f32 %v1936, %v1943
          %v1958 = vmul.f32 %v1937, %v1942
          %v1959 = vmul.f32 %v1938, %v1943
          %v1960 = vmul.f32 %v1939, %v1942
          %v1961 = vmul.f32 %v1940, %v1943
          %v1962 = vld [vmem:[#allocation8] sm:$0xff]
          %v1963 = vld [vmem:[#allocation8 + $0x8] sm:$0xff]
          %v1964 = vld [vmem:[#allocation8 + $0x10] sm:$0xff]
          %v1965 = vld [vmem:[#allocation8 + $0x18] sm:$0xff]
          %v1966 = vld [vmem:[#allocation8 + $0x20] sm:$0xff]
          %v1967 = vld [vmem:[#allocation8 + $0x28] sm:$0xff]
          %v1968 = vld [vmem:[#allocation8 + $0x30] sm:$0xff]
          %v1969 = vld [vmem:[#allocation8 + $0x38] sm:$0xff]
          %v1970 = vld [vmem:[#allocation10] sm:$0xff]
          %v1971 = vld [vmem:[#allocation10 + $0x8] sm:$0xff]
          %v1972 = vld [vmem:[#allocation10 + $0x10] sm:$0xff]
          %v1973 = vld [vmem:[#allocation10 + $0x18] sm:$0xff]
          %v1974 = vld [vmem:[#allocation10 + $0x20] sm:$0xff]
          %v1975 = vld [vmem:[#allocation10 + $0x28] sm:$0xff]
          %v1976 = vld [vmem:[#allocation10 + $0x30] sm:$0xff]
          %v1977 = vld [vmem:[#allocation10 + $0x38] sm:$0xff]
          %v1978 = vld [vmem:[#allocation11] sm:$0xff]
          %v1979 = vld [vmem:[#allocation11 + $0x8] sm:$0xff]
          %v1980 = vld [vmem:[#allocation11 + $0x10] sm:$0xff]
          %v1981 = vld [vmem:[#allocation11 + $0x18] sm:$0xff]
          %v1982 = vld [vmem:[#allocation11 + $0x20] sm:$0xff]
          %v1983 = vld [vmem:[#allocation11 + $0x28] sm:$0xff]
          %v1984 = vld [vmem:[#allocation11 + $0x30] sm:$0xff]
          %v1985 = vld [vmem:[#allocation11 + $0x38] sm:$0xff]
          %1986 = vrot.lane.b32.xlu0 %v1772, 64
          %v1987 = vpop.permute.xlu0 %1986
          %1988 = vrot.lane.b32.xlu0 %v1774, 64
          %v1989 = vpop.permute.xlu0 %1988
          %1990 = vrot.lane.b32.xlu0 %v1776, 64
          %v1991 = vpop.permute.xlu0 %1990
          %1992 = vrot.lane.b32.xlu0 %v1778, 64
          %v1993 = vpop.permute.xlu0 %1992
          %1994 = vrot.lane.b32.xlu0 %v1780, 64
          %v1995 = vpop.permute.xlu0 %1994
          %1996 = vrot.lane.b32.xlu0 %v1782, 64
          %v1997 = vpop.permute.xlu0 %1996
          %1998 = vrot.lane.b32.xlu0 %v1784, 64
          %v1999 = vpop.permute.xlu0 %1998
          %2000 = vrot.lane.b32.xlu0 %v1786, 64
          %v2001 = vpop.permute.xlu0 %2000
          %2002 = vrot.lane.b32.xlu0 %v1773, 64
          %v2003 = vpop.permute.xlu0 %2002
          %2004 = vrot.lane.b32.xlu0 %v1775, 64
          %v2005 = vpop.permute.xlu0 %2004
          %2006 = vrot.lane.b32.xlu0 %v1777, 64
          %v2007 = vpop.permute.xlu0 %2006
          %2008 = vrot.lane.b32.xlu0 %v1779, 64
          %v2009 = vpop.permute.xlu0 %2008
          %2010 = vrot.lane.b32.xlu0 %v1781, 64
          %v2011 = vpop.permute.xlu0 %2010
          %2012 = vrot.lane.b32.xlu0 %v1783, 64
          %v2013 = vpop.permute.xlu0 %2012
          %2014 = vrot.lane.b32.xlu0 %v1785, 64
          %v2015 = vpop.permute.xlu0 %2014
          %2016 = vrot.lane.b32.xlu0 %v1787, 64
          %v2017 = vpop.permute.xlu0 %2016
          %v2018 = vlaneseq
          %v2019 = vand.u32 %v2018, 127
          %vm2020 = vcmp.lt.s32.totalorder %v2019, 64
          %v2021 = vsel %vm2020, %v1987, %v2003
          %v2022 = vsel %vm2020, %v1989, %v2005
          %v2023 = vsel %vm2020, %v1991, %v2007
          %v2024 = vsel %vm2020, %v1993, %v2009
          %v2025 = vsel %vm2020, %v1995, %v2011
          %v2026 = vsel %vm2020, %v1997, %v2013
          %v2027 = vsel %vm2020, %v1999, %v2015
          %v2028 = vsel %vm2020, %v2001, %v2017
          %v2029 = vsel %vm2020, %v2003, %v1987
          %v2030 = vsel %vm2020, %v2005, %v1989
          %v2031 = vsel %vm2020, %v2007, %v1991
          %v2032 = vsel %vm2020, %v2009, %v1993
          %v2033 = vsel %vm2020, %v2011, %v1995
          %v2034 = vsel %vm2020, %v2013, %v1997
          %v2035 = vsel %vm2020, %v2015, %v1999
          %v2036 = vsel %vm2020, %v2017, %v2001
          %v2037 = vmul.f32 %v1772, %v1962
          %v2038 = vmul.f32 %v1773, %v1962
          %v2039 = vmul.f32 %v1774, %v1963
          %v2040 = vmul.f32 %v1775, %v1963
          %v2041 = vmul.f32 %v1776, %v1964
          %v2042 = vmul.f32 %v1777, %v1964
          %v2043 = vmul.f32 %v1778, %v1965
          %v2044 = vmul.f32 %v1779, %v1965
          %v2045 = vmul.f32 %v1780, %v1966
          %v2046 = vmul.f32 %v1781, %v1966
          %v2047 = vmul.f32 %v1782, %v1967
          %v2048 = vmul.f32 %v1783, %v1967
          %v2049 = vmul.f32 %v1784, %v1968
          %v2050 = vmul.f32 %v1785, %v1968
          %v2051 = vmul.f32 %v1786, %v1969
          %v2052 = vmul.f32 %v1787, %v1969
          %v2053 = vmul.f32 %v2021, %v1970
          %v2054 = vmul.f32 %v2029, %v1970
          %v2055 = vmul.f32 %v2022, %v1971
          %v2056 = vmul.f32 %v2030, %v1971
          %v2057 = vmul.f32 %v2023, %v1972
          %v2058 = vmul.f32 %v2031, %v1972
          %v2059 = vmul.f32 %v2024, %v1973
          %v2060 = vmul.f32 %v2032, %v1973
          %v2061 = vmul.f32 %v2025, %v1974
          %v2062 = vmul.f32 %v2033, %v1974
          %v2063 = vmul.f32 %v2026, %v1975
          %v2064 = vmul.f32 %v2034, %v1975
          %v2065 = vmul.f32 %v2027, %v1976
          %v2066 = vmul.f32 %v2035, %v1976
          %v2067 = vmul.f32 %v2028, %v1977
          %v2068 = vmul.f32 %v2036, %v1977
          %v2069 = vadd.f32 %v2037, %v2053
          %v2070 = vadd.f32 %v2038, %v2054
          %v2071 = vadd.f32 %v2039, %v2055
          %v2072 = vadd.f32 %v2040, %v2056
          %v2073 = vadd.f32 %v2041, %v2057
          %v2074 = vadd.f32 %v2042, %v2058
          %v2075 = vadd.f32 %v2043, %v2059
          %v2076 = vadd.f32 %v2044, %v2060
          %v2077 = vadd.f32 %v2045, %v2061
          %v2078 = vadd.f32 %v2046, %v2062
          %v2079 = vadd.f32 %v2047, %v2063
          %v2080 = vadd.f32 %v2048, %v2064
          %v2081 = vadd.f32 %v2049, %v2065
          %v2082 = vadd.f32 %v2050, %v2066
          %v2083 = vadd.f32 %v2051, %v2067
          %v2084 = vadd.f32 %v2052, %v2068
          %v2085 = vmul.f32 %v2029, %v1978
          %v2086 = vmul.f32 %v2021, %v1978
          %v2087 = vmul.f32 %v2030, %v1979
          %v2088 = vmul.f32 %v2022, %v1979
          %v2089 = vmul.f32 %v2031, %v1980
          %v2090 = vmul.f32 %v2023, %v1980
          %v2091 = vmul.f32 %v2032, %v1981
          %v2092 = vmul.f32 %v2024, %v1981
          %v2093 = vmul.f32 %v2033, %v1982
          %v2094 = vmul.f32 %v2025, %v1982
          %v2095 = vmul.f32 %v2034, %v1983
          %v2096 = vmul.f32 %v2026, %v1983
          %v2097 = vmul.f32 %v2035, %v1984
          %v2098 = vmul.f32 %v2027, %v1984
          %v2099 = vmul.f32 %v2036, %v1985
          %v2100 = vmul.f32 %v2028, %v1985
          %v2101 = vadd.f32 %v2069, %v2085
          %v2102 = vadd.f32 %v2070, %v2086
          %v2103 = vadd.f32 %v2071, %v2087
          %v2104 = vadd.f32 %v2072, %v2088
          %v2105 = vadd.f32 %v2073, %v2089
          %v2106 = vadd.f32 %v2074, %v2090
          %v2107 = vadd.f32 %v2075, %v2091
          %v2108 = vadd.f32 %v2076, %v2092
          %v2109 = vadd.f32 %v2077, %v2093
          %v2110 = vadd.f32 %v2078, %v2094
          %v2111 = vadd.f32 %v2079, %v2095
          %v2112 = vadd.f32 %v2080, %v2096
          %v2113 = vadd.f32 %v2081, %v2097
          %v2114 = vadd.f32 %v2082, %v2098
          %v2115 = vadd.f32 %v2083, %v2099
          %v2116 = vadd.f32 %v2084, %v2100
          %v2117 = vmul.f32 %v2101, 0.088388346
          %v2118 = vmul.f32 %v2102, 0.088388346
          %v2119 = vmul.f32 %v2103, 0.088388346
          %v2120 = vmul.f32 %v2104, 0.088388346
          %v2121 = vmul.f32 %v2105, 0.088388346
          %v2122 = vmul.f32 %v2106, 0.088388346
          %v2123 = vmul.f32 %v2107, 0.088388346
          %v2124 = vmul.f32 %v2108, 0.088388346
          %v2125 = vmul.f32 %v2109, 0.088388346
          %v2126 = vmul.f32 %v2110, 0.088388346
          %v2127 = vmul.f32 %v2111, 0.088388346
          %v2128 = vmul.f32 %v2112, 0.088388346
          %v2129 = vmul.f32 %v2113, 0.088388346
          %v2130 = vmul.f32 %v2114, 0.088388346
          %v2131 = vmul.f32 %v2115, 0.088388346
          %v2132 = vmul.f32 %v2116, 0.088388346
          %2133 = vst [vmem:[%s570] sm:$0xff] %v2117
          %2134 = vst [vmem:[%s570 + $0x8] sm:$0xff] %v2118
          %2135 = vst [vmem:[%s570 + $0x10] sm:$0xff] %v2119
          %2136 = vst [vmem:[%s570 + $0x18] sm:$0xff] %v2120
          %2137 = vst [vmem:[%s570 + $0x20] sm:$0xff] %v2121
          %2138 = vst [vmem:[%s570 + $0x28] sm:$0xff] %v2122
          %2139 = vst [vmem:[%s570 + $0x30] sm:$0xff] %v2123
          %2140 = vst [vmem:[%s570 + $0x38] sm:$0xff] %v2124
          %2141 = vst [vmem:[%s570 + $0x40] sm:$0xff] %v2125
          %2142 = vst [vmem:[%s570 + $0x48] sm:$0xff] %v2126
          %2143 = vst [vmem:[%s570 + $0x50] sm:$0xff] %v2127
          %2144 = vst [vmem:[%s570 + $0x58] sm:$0xff] %v2128
          %2145 = vst [vmem:[%s570 + $0x60] sm:$0xff] %v2129
          %2146 = vst [vmem:[%s570 + $0x68] sm:$0xff] %v2130
          %2147 = vst [vmem:[%s570 + $0x70] sm:$0xff] %v2131
          %2148 = vst [vmem:[%s570 + $0x78] sm:$0xff] %v2132
          %2149 = vrot.lane.b32.xlu0 %v1946, 64
          %v2150 = vpop.permute.xlu0 %2149
          %2151 = vrot.lane.b32.xlu0 %v1948, 64
          %v2152 = vpop.permute.xlu0 %2151
          %2153 = vrot.lane.b32.xlu0 %v1950, 64
          %v2154 = vpop.permute.xlu0 %2153
          %2155 = vrot.lane.b32.xlu0 %v1952, 64
          %v2156 = vpop.permute.xlu0 %2155
          %2157 = vrot.lane.b32.xlu0 %v1954, 64
          %v2158 = vpop.permute.xlu0 %2157
          %2159 = vrot.lane.b32.xlu0 %v1956, 64
          %v2160 = vpop.permute.xlu0 %2159
          %2161 = vrot.lane.b32.xlu0 %v1958, 64
          %v2162 = vpop.permute.xlu0 %2161
          %2163 = vrot.lane.b32.xlu0 %v1960, 64
          %v2164 = vpop.permute.xlu0 %2163
          %2165 = vrot.lane.b32.xlu0 %v1947, 64
          %v2166 = vpop.permute.xlu0 %2165
          %2167 = vrot.lane.b32.xlu0 %v1949, 64
          %v2168 = vpop.permute.xlu0 %2167
          %2169 = vrot.lane.b32.xlu0 %v1951, 64
          %v2170 = vpop.permute.xlu0 %2169
          %2171 = vrot.lane.b32.xlu0 %v1953, 64
          %v2172 = vpop.permute.xlu0 %2171
          %2173 = vrot.lane.b32.xlu0 %v1955, 64
          %v2174 = vpop.permute.xlu0 %2173
          %2175 = vrot.lane.b32.xlu0 %v1957, 64
          %v2176 = vpop.permute.xlu0 %2175
          %2177 = vrot.lane.b32.xlu0 %v1959, 64
          %v2178 = vpop.permute.xlu0 %2177
          %2179 = vrot.lane.b32.xlu0 %v1961, 64
          %v2180 = vpop.permute.xlu0 %2179
          %v2181 = vsel %vm2020, %v2150, %v2166
          %v2182 = vsel %vm2020, %v2152, %v2168
          %v2183 = vsel %vm2020, %v2154, %v2170
          %v2184 = vsel %vm2020, %v2156, %v2172
          %v2185 = vsel %vm2020, %v2158, %v2174
          %v2186 = vsel %vm2020, %v2160, %v2176
          %v2187 = vsel %vm2020, %v2162, %v2178
          %v2188 = vsel %vm2020, %v2164, %v2180
          %v2189 = vsel %vm2020, %v2166, %v2150
          %v2190 = vsel %vm2020, %v2168, %v2152
          %v2191 = vsel %vm2020, %v2170, %v2154
          %v2192 = vsel %vm2020, %v2172, %v2156
          %v2193 = vsel %vm2020, %v2174, %v2158
          %v2194 = vsel %vm2020, %v2176, %v2160
          %v2195 = vsel %vm2020, %v2178, %v2162
          %v2196 = vsel %vm2020, %v2180, %v2164
          %v2197 = vmul.f32 %v1946, %v1962
          %v2198 = vmul.f32 %v1947, %v1962
          %v2199 = vmul.f32 %v1948, %v1963
          %v2200 = vmul.f32 %v1949, %v1963
          %v2201 = vmul.f32 %v1950, %v1964
          %v2202 = vmul.f32 %v1951, %v1964
          %v2203 = vmul.f32 %v1952, %v1965
          %v2204 = vmul.f32 %v1953, %v1965
          %v2205 = vmul.f32 %v1954, %v1966
          %v2206 = vmul.f32 %v1955, %v1966
          %v2207 = vmul.f32 %v1956, %v1967
          %v2208 = vmul.f32 %v1957, %v1967
          %v2209 = vmul.f32 %v1958, %v1968
          %v2210 = vmul.f32 %v1959, %v1968
          %v2211 = vmul.f32 %v1960, %v1969
          %v2212 = vmul.f32 %v1961, %v1969
          %v2213 = vmul.f32 %v2181, %v1970
          %v2214 = vmul.f32 %v2189, %v1970
          %v2215 = vmul.f32 %v2182, %v1971
          %v2216 = vmul.f32 %v2190, %v1971
          %v2217 = vmul.f32 %v2183, %v1972
          %v2218 = vmul.f32 %v2191, %v1972
          %v2219 = vmul.f32 %v2184, %v1973
          %v2220 = vmul.f32 %v2192, %v1973
          %v2221 = vmul.f32 %v2185, %v1974
          %v2222 = vmul.f32 %v2193, %v1974
          %v2223 = vmul.f32 %v2186, %v1975
          %v2224 = vmul.f32 %v2194, %v1975
          %v2225 = vmul.f32 %v2187, %v1976
          %v2226 = vmul.f32 %v2195, %v1976
          %v2227 = vmul.f32 %v2188, %v1977
          %v2228 = vmul.f32 %v2196, %v1977
          %v2229 = vadd.f32 %v2197, %v2213
          %v2230 = vadd.f32 %v2198, %v2214
          %v2231 = vadd.f32 %v2199, %v2215
          %v2232 = vadd.f32 %v2200, %v2216
          %v2233 = vadd.f32 %v2201, %v2217
          %v2234 = vadd.f32 %v2202, %v2218
          %v2235 = vadd.f32 %v2203, %v2219
          %v2236 = vadd.f32 %v2204, %v2220
          %v2237 = vadd.f32 %v2205, %v2221
          %v2238 = vadd.f32 %v2206, %v2222
          %v2239 = vadd.f32 %v2207, %v2223
          %v2240 = vadd.f32 %v2208, %v2224
          %v2241 = vadd.f32 %v2209, %v2225
          %v2242 = vadd.f32 %v2210, %v2226
          %v2243 = vadd.f32 %v2211, %v2227
          %v2244 = vadd.f32 %v2212, %v2228
          %v2245 = vmul.f32 %v2189, %v1978
          %v2246 = vmul.f32 %v2181, %v1978
          %v2247 = vmul.f32 %v2190, %v1979
          %v2248 = vmul.f32 %v2182, %v1979
          %v2249 = vmul.f32 %v2191, %v1980
          %v2250 = vmul.f32 %v2183, %v1980
          %v2251 = vmul.f32 %v2192, %v1981
          %v2252 = vmul.f32 %v2184, %v1981
          %v2253 = vmul.f32 %v2193, %v1982
          %v2254 = vmul.f32 %v2185, %v1982
          %v2255 = vmul.f32 %v2194, %v1983
          %v2256 = vmul.f32 %v2186, %v1983
          %v2257 = vmul.f32 %v2195, %v1984
          %v2258 = vmul.f32 %v2187, %v1984
          %v2259 = vmul.f32 %v2196, %v1985
          %v2260 = vmul.f32 %v2188, %v1985
          %v2261 = vadd.f32 %v2229, %v2245
          %v2262 = vadd.f32 %v2230, %v2246
          %v2263 = vadd.f32 %v2231, %v2247
          %v2264 = vadd.f32 %v2232, %v2248
          %v2265 = vadd.f32 %v2233, %v2249
          %v2266 = vadd.f32 %v2234, %v2250
          %v2267 = vadd.f32 %v2235, %v2251
          %v2268 = vadd.f32 %v2236, %v2252
          %v2269 = vadd.f32 %v2237, %v2253
          %v2270 = vadd.f32 %v2238, %v2254
          %v2271 = vadd.f32 %v2239, %v2255
          %v2272 = vadd.f32 %v2240, %v2256
          %v2273 = vadd.f32 %v2241, %v2257
          %v2274 = vadd.f32 %v2242, %v2258
          %v2275 = vadd.f32 %v2243, %v2259
          %v2276 = vadd.f32 %v2244, %v2260
          %2277 = vst [vmem:[%s581] sm:$0xff] %v2261
          %2278 = vst [vmem:[%s581 + $0x8] sm:$0xff] %v2262
          %2279 = vst [vmem:[%s581 + $0x10] sm:$0xff] %v2263
          %2280 = vst [vmem:[%s581 + $0x18] sm:$0xff] %v2264
          %2281 = vst [vmem:[%s581 + $0x20] sm:$0xff] %v2265
          %2282 = vst [vmem:[%s581 + $0x28] sm:$0xff] %v2266
          %2283 = vst [vmem:[%s581 + $0x30] sm:$0xff] %v2267
          %2284 = vst [vmem:[%s581 + $0x38] sm:$0xff] %v2268
          %2285 = vst [vmem:[%s581 + $0x40] sm:$0xff] %v2269
          %2286 = vst [vmem:[%s581 + $0x48] sm:$0xff] %v2270
          %2287 = vst [vmem:[%s581 + $0x50] sm:$0xff] %v2271
          %2288 = vst [vmem:[%s581 + $0x58] sm:$0xff] %v2272
          %2289 = vst [vmem:[%s581 + $0x60] sm:$0xff] %v2273
          %2290 = vst [vmem:[%s581 + $0x68] sm:$0xff] %v2274
          %2291 = vst [vmem:[%s581 + $0x70] sm:$0xff] %v2275
          %2292 = vst [vmem:[%s581 + $0x78] sm:$0xff] %v2276
          %2293 = vst [vmem:[%s592] sm:$0xff] %v1591
          %2294 = vst [vmem:[%s592 + $0x8] sm:$0xff] %v1592
          %2295 = vst [vmem:[%s592 + $0x10] sm:$0xff] %v1593
          %2296 = vst [vmem:[%s592 + $0x18] sm:$0xff] %v1594
          %2297 = vst [vmem:[%s592 + $0x20] sm:$0xff] %v1595
          %2298 = vst [vmem:[%s592 + $0x28] sm:$0xff] %v1596
          %2299 = vst [vmem:[%s592 + $0x30] sm:$0xff] %v1597
          %2300 = vst [vmem:[%s592 + $0x38] sm:$0xff] %v1598
          %2301 = vst [vmem:[%s592 + $0x40] sm:$0xff] %v1599
          %2302 = vst [vmem:[%s592 + $0x48] sm:$0xff] %v1600
          %2303 = vst [vmem:[%s592 + $0x50] sm:$0xff] %v1601
          %2304 = vst [vmem:[%s592 + $0x58] sm:$0xff] %v1602
          %2305 = vst [vmem:[%s592 + $0x60] sm:$0xff] %v1603
          %2306 = vst [vmem:[%s592 + $0x68] sm:$0xff] %v1604
          %2307 = vst [vmem:[%s592 + $0x70] sm:$0xff] %v1605
          %2308 = vst [vmem:[%s592 + $0x78] sm:$0xff] %v1606
        $region84: #{wan_self_attention_forward.3} parent=51 // pred_fallthru
          _
        %s2309 = smul.u32 8, %s34
        %p2310 = scmp.lt.s32.totalorder %s33, 1
        %s2311 = scalar_select %p2310, %s33, 1
        %p2312 = scmp.lt.s32.totalorder %s2309, 7
        %s2313 = scalar_select %p2312, %s2309, 7
        %s2314 = smul.addr %s2313, 2
        %s2315 = smul.addr %s2311, 16
        %s2316 = sadd.s32 %s2314, %s2315
        %s2317 = smul.addr %s2316, 8
        %s2318 = scalar_lea.vmem %s8, %s2317
        %s2319 = smul.u32 8, %s34
        %p2320 = scmp.lt.s32.totalorder %s33, 1
        %s2321 = scalar_select %p2320, %s33, 1
        %p2322 = scmp.lt.s32.totalorder %s2319, 7
        %s2323 = scalar_select %p2322, %s2319, 7
        %s2324 = smul.addr %s2323, 2
        %s2325 = smul.addr %s2321, 16
        %s2326 = sadd.s32 %s2324, %s2325
        %s2327 = smul.addr %s2326, 8
        %s2328 = scalar_lea.vmem %s9, %s2327
        %s2329 = smul.u32 8, %s34
        %p2330 = scmp.lt.s32.totalorder %s33, 1
        %s2331 = scalar_select %p2330, %s33, 1
        %p2332 = scmp.lt.s32.totalorder %s2329, 7
        %s2333 = scalar_select %p2332, %s2329, 7
        %s2334 = smul.addr %s2333, 2
        %s2335 = smul.addr %s2331, 16
        %s2336 = sadd.s32 %s2334, %s2335
        %s2337 = smul.addr %s2336, 8
        %s2338 = scalar_lea.vmem %s10, %s2337
        // Predicated region
        $region85: #{wan_self_attention_forward.3} parent=51 // pred_check
          %p2339 = pneg %p264
        $region86: #{wan_self_attention_forward.3} parent=51 // pred_check_branch
          %2341 = sbr.rel (%p2339) target = $region88
        $region87: #{wan_self_attention_forward.3} parent=51 // pred_region
          %s2342 = smul.u32 8, %s34
        $region88: #{wan_self_attention_forward.3} parent=51 // pred_fallthru
          _
        // Predicated region
        $region89: #{wan_self_attention_forward.3} parent=51 // pred_check
          %p2343 = pneg %p292
        $region90: #{wan_self_attention_forward.3} parent=51 // pred_check_branch
          %2345 = sbr.rel (%p2343) target = $region92
        $region91: #{wan_self_attention_forward.3} parent=51 // pred_region
          %s2346 = smul.u32 8, %s34
        $region92: #{wan_self_attention_forward.3} parent=51 // pred_fallthru
          _
        // Predicated region
        $region93: #{wan_self_attention_forward.3} parent=51 // pred_check
          %p2347 = pneg %p320
        $region94: #{wan_self_attention_forward.3} parent=51 // pred_check_branch
          %2349 = sbr.rel (%p2347) target = $region96
        $region95: #{wan_self_attention_forward.3} parent=51 // pred_region
          %s2350 = smul.u32 8, %s34
        $region96: #{wan_self_attention_forward.3} parent=51 // pred_fallthru
          _
      $region52: #{wan_self_attention_forward.3} parent=5 // pred_fallthru
        _
      %p2351 = scmp.le.s32.totalorder 2, %s23
      // Predicated region
      $region97: #{wan_self_attention_forward.3} parent=5 // pred_check
        %p2352 = pneg %p2351
      $region98: #{wan_self_attention_forward.3} parent=5 // pred_check_branch
        %2354 = sbr.rel (%p2352) target = $region100
      $region99: #{wan_self_attention_forward.3} parent=5 // pred_region
        %s2355 = ssub.s32 %s23, 2
        // Predicated region
        $region101: #{wan_self_attention_forward.3} parent=99 // pred_check
          %p2356 = pneg %p270
        $region102: #{wan_self_attention_forward.3} parent=99 // pred_check_branch
          %2358 = sbr.rel (%p2356) target = $region104
        $region103: #{wan_self_attention_forward.3} parent=99 // pred_region
          %s2359 = smul.u32 8, %s37
          %p2360 = scmp.lt.s32.totalorder %s36, 1
          %s2361 = scalar_select %p2360, %s36, 1
          %p2362 = scmp.lt.s32.totalorder %s2359, 7
          %s2363 = scalar_select %p2362, %s2359, 7
          %s2364 = smul.addr %s2363, 2
          %s2365 = smul.addr %s2361, 16
          %s2366 = sadd.s32 %s2364, %s2365
          %s2367 = smul.addr %s2366, 8
          %s2368 = scalar_lea.vmem %s8, %s2367
        $region104: #{wan_self_attention_forward.3} parent=99 // pred_fallthru
          _
        // Predicated region
        $region105: #{wan_self_attention_forward.3} parent=99 // pred_check
          %p2369 = pneg %p298
        $region106: #{wan_self_attention_forward.3} parent=99 // pred_check_branch
          %2371 = sbr.rel (%p2369) target = $region108
        $region107: #{wan_self_attention_forward.3} parent=99 // pred_region
          %s2372 = smul.u32 8, %s37
          %p2373 = scmp.lt.s32.totalorder %s36, 1
          %s2374 = scalar_select %p2373, %s36, 1
          %p2375 = scmp.lt.s32.totalorder %s2372, 7
          %s2376 = scalar_select %p2375, %s2372, 7
          %s2377 = smul.addr %s2376, 2
          %s2378 = smul.addr %s2374, 16
          %s2379 = sadd.s32 %s2377, %s2378
          %s2380 = smul.addr %s2379, 8
          %s2381 = scalar_lea.vmem %s9, %s2380
        $region108: #{wan_self_attention_forward.3} parent=99 // pred_fallthru
          _
        // Predicated region
        $region109: #{wan_self_attention_forward.3} parent=99 // pred_check
          %p2382 = pneg %p326
        $region110: #{wan_self_attention_forward.3} parent=99 // pred_check_branch
          %2384 = sbr.rel (%p2382) target = $region112
        $region111: #{wan_self_attention_forward.3} parent=99 // pred_region
          %s2385 = smul.u32 8, %s37
          %p2386 = scmp.lt.s32.totalorder %s36, 1
          %s2387 = scalar_select %p2386, %s36, 1
          %p2388 = scmp.lt.s32.totalorder %s2385, 7
          %s2389 = scalar_select %p2388, %s2385, 7
          %s2390 = smul.addr %s2389, 2
          %s2391 = smul.addr %s2387, 16
          %s2392 = sadd.s32 %s2390, %s2391
          %s2393 = smul.addr %s2392, 8
          %s2394 = scalar_lea.vmem %s10, %s2393
        $region112: #{wan_self_attention_forward.3} parent=99 // pred_fallthru
          _
      $region100: #{wan_self_attention_forward.3} parent=5 // pred_fallthru
        _
    $region6: #{wan_self_attention_forward.3} parent=1 // loop_footer
      %s27 = sadd.s32 1, %s23
    $region7: #{wan_self_attention_forward.3} parent=1 // loop_footer_branch
      %22 = sbr.rel target = $region3
    $region8: #{wan_self_attention_forward.3} parent=1 // loop_exit
      _
    %2395 = vsyncpa [#allocation4], 1
    %s2396 = scalar_lea.sflag [#allocation4], 1
    %2397 = vsyncpa %s2396, 1
    %2398 = vsyncpa [#allocation6], 1
    %2399 = vsyncpa [#allocation9], 1
    %2400 = vsyncpa [#allocation12], 1

</llo_original>
